<compile_context>
chip_gen: v6e
topology: v6e:2x2x1
jax: 0.10.0
libtpu: 0.0.40
codegen_flags: <defaults>
</compile_context>

<pallas_src>
import jax
import jax.numpy as jnp
from jax.experimental import pallas as pl
from jax.experimental.pallas import tpu as pltpu

B = 2
L = 20                 # sequence length implied by lstm_input_size = 18*64
C_IN = 4               # input_size
C1_OUT = 32            # conv1d_out_channels
K1 = 3                 # conv1d_kernel_size
C2_OUT = 64            # conv2d_out_channels
K2 = 3                 # conv2d_kernel_size[0]  (second dim is 1)
L1 = L - K1 + 1        # 18 (conv1 'VALID'; conv2d keeps height via pad=(1,0))
HID = 32               # hidden_layer_size
NL = 2                 # num_layers
FLAT = L1 * C2_OUT     # 1152 == lstm_input_size
OUT = 4                # output_size
R = B * L1             # 36: valid conv output rows in the interleaved stack


# --------------------------- fused Pallas kernel ----------------------------
def _dnn_fused_kernel(x_ref, w1_ref, b1_ref, w2_ref, b2_ref,
                      wl1_ref, bl1_ref, wg0_ref, bg0_ref,
                      wg1_ref, bg1_ref, wd_ref, bd_ref, o_ref):
    # x_ref: (B*L, C_IN), batch-interleaved: row 2*t + b == x[b, t].
    xs = x_ref[...]                                    # (40, 4)

    # conv1 (Conv1d, VALID) as K1 shifted-tap matmuls on the interleaved
    # stack.  Shifts of 2*k rows keep the two batches separate, so all 36
    # output rows (row 2*l + b) are valid — no masking, no garbage rows.
    acc1 = jnp.dot(xs[0:R, :], w1_ref[0], preferred_element_type=jnp.float32)
    for k in range(1, K1):
        acc1 = acc1 + jnp.dot(xs[2 * k:2 * k + R, :], w1_ref[k],
                              preferred_element_type=jnp.float32)
    c1 = jnp.maximum(acc1 + b1_ref[...], 0.0)          # (36, 32)

    # conv2d kernel (3,1), padding (1,0): in interleaved row space the
    # per-batch zero pad is exactly two zero rows at each end of the stack.
    zpad = jnp.zeros((B, C1_OUT), jnp.float32)
    c1p = jnp.concatenate([zpad, c1, zpad], axis=0)    # (40, 32)
    acc2 = jnp.dot(c1p[0:R, :], w2_ref[0], preferred_element_type=jnp.float32)
    for k in range(1, K2):
        acc2 = acc2 + jnp.dot(c1p[2 * k:2 * k + R, :], w2_ref[k],
                              preferred_element_type=jnp.float32)
    c2 = jnp.maximum(acc2 + b2_ref[...], 0.0)          # (36, 64)

    # linear_1 applied to PyTorch's channel-major NCHW .view(B, -1) flatten
    # without any activation transpose: the weight was pre-permuted at trace
    # time so h_b = bias + sum_l c2[b, l, :] @ wl1[l].  Interleaved rows
    # 2*l : 2*l+2 hold both batches for position l, so every dot is an M=2
    # matmul; the 18 partial products are summed with a balanced tree so the
    # adds are independent rather than a serial accumulation chain.
    parts = [jnp.dot(c2[2 * l:2 * l + 2, :], wl1_ref[l],
                     preferred_element_type=jnp.float32) for l in range(L1)]
    while len(parts) > 1:
        nxt = [parts[i] + parts[i + 1] for i in range(0, len(parts) - 1, 2)]
        if len(parts) % 2:
            nxt.append(parts[-1])
        parts = nxt
    h = jnp.maximum(parts[0] + bl1_ref[...], 0.0)      # (2, 32), ReLU

    # Two stacked LSTM layers, a single time step, zero initial (h, c): the
    # recurrent (W_hh @ 0) and forget-gate (f * 0) terms vanish exactly, so
    # each layer is ONE fused (B, 32) @ (32, 96) gate matmul.  (Only valid
    # for seq_len == 1 with zero initial state — the case this module hits.)
    def lstm_layer(xin, wg_ref, bg_ref):
        g = jnp.dot(xin, wg_ref[...],
                    preferred_element_type=jnp.float32) + bg_ref[...]
        i = jax.nn.sigmoid(g[:, 0:HID])
        c = jnp.tanh(g[:, HID:2 * HID])
        o = jax.nn.sigmoid(g[:, 2 * HID:3 * HID])
        return o * jnp.tanh(i * c)

    h0 = lstm_layer(h, wg0_ref, bg0_ref)               # layer 0 final hidden
    h1 = lstm_layer(h0, wg1_ref, bg1_ref)              # layer 1 final hidden

    # dense on concat([h0, h1], -1): split the weight rows instead of concat.
    # TODO(synk): nn.Dropout(0.2) is identity in eval mode; no RNG dropout here.
    o_ref[...] = (
        jnp.dot(h0, wd_ref[0:HID, :], preferred_element_type=jnp.float32)
        + jnp.dot(h1, wd_ref[HID:2 * HID, :], preferred_element_type=jnp.float32)
        + bd_ref[...])


# --------------------------- trace-time weight prep --------------------------
def _prep_params(p):
    # conv taps as (K, C_in, C_out): w[k, ci, co] = conv_w[co, ci, k]
    w1 = jnp.transpose(p["conv1_w"], (2, 1, 0))                    # (3, 4, 32)
    b1 = p["conv1_b"].reshape(1, C1_OUT)
    w2 = jnp.transpose(p["conv2_w"][..., 0], (2, 1, 0))            # (3, 32, 64)
    b2 = p["conv2_b"].reshape(1, C2_OUT)

    # linear_1 weight permuted so a channels-last (l, c) conv2 output matches
    # PyTorch's NCHW flatten: wl1[l, c, h] = lin1_w[h, c*L1 + l].
    wl1 = jnp.transpose(p["lin1_w"].reshape(HID, C2_OUT, L1), (2, 1, 0))
    bl1 = p["lin1_b"].reshape(1, HID)

    def gate_pack(w_ih, b_ih, b_hh):
        # PyTorch gate order (i, f, g, o); forget gate is dead at seq_len=1
        # with zero initial state, so fuse only (i, g, o) into one matmul.
        w = w_ih.reshape(4, HID, HID)
        bsum = (b_ih + b_hh).reshape(4, HID)
        wg = jnp.concatenate([w[0], w[2], w[3]], axis=0).T         # (32, 96)
        bg = jnp.concatenate([bsum[0], bsum[2], bsum[3]],
                             axis=0).reshape(1, 3 * HID)
        return wg, bg

    wg0, bg0 = gate_pack(p["w_ih_l0"], p["b_ih_l0"], p["b_hh_l0"])
    wg1, bg1 = gate_pack(p["w_ih_l1"], p["b_ih_l1"], p["b_hh_l1"])
    wd = p["dense_w"].T                                            # (64, 4)
    bd = p["dense_b"].reshape(1, OUT)
    return (w1, b1, w2, b2, wl1, bl1, wg0, bg0, wg1, bg1, wd, bd)


# --------------------------- forward (single pallas_call) --------------------
def dnn_net_forward(x, p):
    bsz = x.shape[0]
    assert bsz == B, "kernel is statically specialized to the batch size"
    # Interleave batch rows along the sequence axis (row 2*t + b == x[b, t])
    # so every in-kernel matmul processes both batch elements at once.
    x_il = jnp.transpose(x, (1, 0, 2)).reshape(bsz * L, C_IN)
    args = _prep_params(p)

    flops = 2 * bsz * (L1 * K1 * C_IN * C1_OUT
                       + L1 * K2 * C1_OUT * C2_OUT
                       + FLAT * HID
                       + NL * HID * 3 * HID
                       + NL * HID * OUT)
    bytes_accessed = 4 * (x_il.size + sum(a.size for a in args) + bsz * OUT)

    return pl.pallas_call(
        _dnn_fused_kernel,
        out_shape=jax.ShapeDtypeStruct((bsz, OUT), jnp.float32),
        in_specs=[pl.BlockSpec(memory_space=pltpu.MemorySpace.VMEM)]
                 * (1 + len(args)),
        out_specs=pl.BlockSpec(memory_space=pltpu.MemorySpace.VMEM),
        cost_estimate=pl.CostEstimate(flops=flops,
                                      transcendentals=8 * bsz * HID,
                                      bytes_accessed=bytes_accessed),
    )(x_il, *args)


# --------------------------- parameters -------------------------------------
def init_params(key):
    ks = jax.random.split(key, 10)
    s = 0.1
    p = {}
    p["conv1_w"] = s * jax.random.normal(ks[0], (C1_OUT, C_IN, K1), jnp.float32)
    p["conv1_b"] = s * jax.random.normal(ks[1], (C1_OUT,), jnp.float32)
    p["conv2_w"] = s * jax.random.normal(ks[2], (C2_OUT, C1_OUT, K2, 1), jnp.float32)
    p["conv2_b"] = s * jax.random.normal(ks[3], (C2_OUT,), jnp.float32)
    p["lin1_w"] = s * jax.random.normal(ks[4], (HID, FLAT), jnp.float32)
    p["lin1_b"] = s * jax.random.normal(ks[5], (HID,), jnp.float32)
    # LSTM: init_weights() zeroes all biases; weight_hh (orthogonal) only ever
    # multiplies the zero initial hidden state at seq_len=1, so it is omitted.
    p["w_ih_l0"] = s * jax.random.normal(ks[6], (4 * HID, HID), jnp.float32)
    p["b_ih_l0"] = jnp.zeros((4 * HID,), jnp.float32)
    p["b_hh_l0"] = jnp.zeros((4 * HID,), jnp.float32)
    p["w_ih_l1"] = s * jax.random.normal(ks[7], (4 * HID, HID), jnp.float32)
    p["b_ih_l1"] = jnp.zeros((4 * HID,), jnp.float32)
    p["b_hh_l1"] = jnp.zeros((4 * HID,), jnp.float32)
    p["dense_w"] = s * jax.random.normal(ks[8], (OUT, NL * HID), jnp.float32)
    p["dense_b"] = s * jax.random.normal(ks[9], (OUT,), jnp.float32)
    return p


# --------------------------- pure-JAX reference ------------------------------
def reference_forward(x, p):
    xt = jnp.transpose(x, (0, 2, 1))                                # (B, 4, 20)
    c1 = jax.lax.conv_general_dilated(
        xt, p["conv1_w"], window_strides=(1,), padding="VALID",
        dimension_numbers=("NCH", "OIH", "NCH"))
    c1 = jax.nn.relu(c1 + p["conv1_b"][None, :, None])              # (B, 32, 18)
    c1 = c1[..., None]                                              # (B, 32, 18, 1)
    c2 = jax.lax.conv_general_dilated(
        c1, p["conv2_w"], window_strides=(1, 1), padding=((1, 1), (0, 0)),
        dimension_numbers=("NCHW", "OIHW", "NCHW"))
    c2 = jax.nn.relu(c2 + p["conv2_b"][None, :, None, None])        # (B, 64, 18, 1)
    z = c2.reshape(x.shape[0], -1)                                  # (B, 1152)
    h = jax.nn.relu(z @ p["lin1_w"].T + p["lin1_b"])                # (B, 32)

    def cell(xin, w_ih, b_ih, b_hh):
        g = xin @ w_ih.T + b_ih + b_hh
        i, f, gg, o = jnp.split(g, 4, axis=-1)
        c = jax.nn.sigmoid(i) * jnp.tanh(gg)      # f * c_prev == 0
        return jax.nn.sigmoid(o) * jnp.tanh(c)

    h0 = cell(h, p["w_ih_l0"], p["b_ih_l0"], p["b_hh_l0"])
    h1 = cell(h0, p["w_ih_l1"], p["b_ih_l1"], p["b_hh_l1"])
    hcat = jnp.concatenate([h0, h1], axis=-1)
    return hcat @ p["dense_w"].T + p["dense_b"]


if __name__ == "__main__":
    key = jax.random.PRNGKey(0)
    kx, kp = jax.random.split(key)
    x = jax.random.normal(kx, (B, L, C_IN), jnp.float32)
    params = init_params(kp)

    fwd = jax.jit(dnn_net_forward)
    out = jax.block_until_ready(fwd(x, params))

    # Reference at HIGHEST matmul precision; the kernel path is all-f32 MXU,
    # so the 5e-3 tolerance catches any layout/ordering bug (O(0.1) errors)
    # while remaining robust to f32 matmul precision modes.
    with jax.default_matmul_precision("highest"):
        ref = jax.block_until_ready(reference_forward(x, params))

    if out.shape != (B, OUT) or not bool(jnp.all(jnp.isfinite(out))):
        raise RuntimeError("bad kernel output")
    if not bool(jnp.allclose(out, ref, atol=5e-3, rtol=5e-3)):
        raise RuntimeError("mismatch vs pure-JAX reference")
    print("KERNEL_OK")
</pallas_src>

<mosaic_0001>
module attributes {stable_mosaic.version = 11 : i64} {
  func.func @_dnn_fused_kernel(%arg0: memref<40x4xf32, #tpu.memory_space<vmem>>, %arg1: memref<3x4x32xf32, #tpu.memory_space<vmem>>, %arg2: memref<1x32xf32, #tpu.memory_space<vmem>>, %arg3: memref<3x32x64xf32, #tpu.memory_space<vmem>>, %arg4: memref<1x64xf32, #tpu.memory_space<vmem>>, %arg5: memref<18x64x32xf32, #tpu.memory_space<vmem>>, %arg6: memref<1x32xf32, #tpu.memory_space<vmem>>, %arg7: memref<32x96xf32, #tpu.memory_space<vmem>>, %arg8: memref<1x96xf32, #tpu.memory_space<vmem>>, %arg9: memref<32x96xf32, #tpu.memory_space<vmem>>, %arg10: memref<1x96xf32, #tpu.memory_space<vmem>>, %arg11: memref<64x4xf32, #tpu.memory_space<vmem>>, %arg12: memref<1x4xf32, #tpu.memory_space<vmem>>, %arg13: memref<2x4xf32, #tpu.memory_space<vmem>>) attributes {dimension_semantics = [], scalar_prefetch = 0 : i64, scratch_operands = 0 : i64, tpu.core_type = #tpu.core_type<tc>} {
    %c0 = arith.constant 0 : index
    %c0_0 = arith.constant 0 : index
    %0 = vector.load %arg0[%c0, %c0_0] : memref<40x4xf32, #tpu.memory_space<vmem>>, vector<40x4xf32>
    %1 = vector.extract_strided_slice %0 {offsets = [0, 0], sizes = [36, 4], strides = [1, 1]} : vector<40x4xf32> to vector<36x4xf32>
    %c0_1 = arith.constant 0 : index
    %c0_2 = arith.constant 0 : index
    %c0_3 = arith.constant 0 : index
    %2 = vector.load %arg1[%c0_1, %c0_2, %c0_3] : memref<3x4x32xf32, #tpu.memory_space<vmem>>, vector<1x4x32xf32>
    %3 = vector.shape_cast %2 : vector<1x4x32xf32> to vector<4x32xf32>
    %cst = arith.constant dense<0.000000e+00> : vector<36x32xf32>
    %4 = tpu.matmul %1, %3, %cst {dimension_numbers = #tpu.dot_dimension_numbers<[1], [0], [0], [1], [0, 0, 1, 1], [], []>} : vector<36x4xf32>, vector<4x32xf32>, vector<36x32xf32> -> vector<36x32xf32>
    %5 = vector.extract_strided_slice %0 {offsets = [2, 0], sizes = [36, 4], strides = [1, 1]} : vector<40x4xf32> to vector<36x4xf32>
    %c1 = arith.constant 1 : index
    %c0_4 = arith.constant 0 : index
    %c0_5 = arith.constant 0 : index
    %6 = vector.load %arg1[%c1, %c0_4, %c0_5] : memref<3x4x32xf32, #tpu.memory_space<vmem>>, vector<1x4x32xf32>
    %7 = vector.shape_cast %6 : vector<1x4x32xf32> to vector<4x32xf32>
    %cst_6 = arith.constant dense<0.000000e+00> : vector<36x32xf32>
    %8 = tpu.matmul %5, %7, %cst_6 {dimension_numbers = #tpu.dot_dimension_numbers<[1], [0], [0], [1], [0, 0, 1, 1], [], []>} : vector<36x4xf32>, vector<4x32xf32>, vector<36x32xf32> -> vector<36x32xf32>
    %9 = arith.addf %4, %8 : vector<36x32xf32>
    %10 = vector.extract_strided_slice %0 {offsets = [4, 0], sizes = [36, 4], strides = [1, 1]} : vector<40x4xf32> to vector<36x4xf32>
    %c2 = arith.constant 2 : index
    %c0_7 = arith.constant 0 : index
    %c0_8 = arith.constant 0 : index
    %11 = vector.load %arg1[%c2, %c0_7, %c0_8] : memref<3x4x32xf32, #tpu.memory_space<vmem>>, vector<1x4x32xf32>
    %12 = vector.shape_cast %11 : vector<1x4x32xf32> to vector<4x32xf32>
    %cst_9 = arith.constant dense<0.000000e+00> : vector<36x32xf32>
    %13 = tpu.matmul %10, %12, %cst_9 {dimension_numbers = #tpu.dot_dimension_numbers<[1], [0], [0], [1], [0, 0, 1, 1], [], []>} : vector<36x4xf32>, vector<4x32xf32>, vector<36x32xf32> -> vector<36x32xf32>
    %14 = arith.addf %9, %13 : vector<36x32xf32>
    %c0_10 = arith.constant 0 : index
    %c0_11 = arith.constant 0 : index
    %15 = vector.load %arg2[%c0_10, %c0_11] : memref<1x32xf32, #tpu.memory_space<vmem>>, vector<1x32xf32>
    %16 = vector.broadcast %15 : vector<1x32xf32> to vector<36x32xf32>
    %17 = arith.addf %14, %16 : vector<36x32xf32>
    %cst_12 = arith.constant 0.000000e+00 : f32
    %18 = vector.broadcast %cst_12 : f32 to vector<36x32xf32>
    %19 = arith.maximumf %17, %18 : vector<36x32xf32>
    %cst_13 = arith.constant 0.000000e+00 : f32
    %20 = vector.broadcast %cst_13 : f32 to vector<2x32xf32>
    %21 = tpu.concatenate %20, %19, %20 in 0 : vector<2x32xf32>, vector<36x32xf32>, vector<2x32xf32> -> vector<40x32xf32>
    %22 = vector.extract_strided_slice %21 {offsets = [0, 0], sizes = [36, 32], strides = [1, 1]} : vector<40x32xf32> to vector<36x32xf32>
    %c0_14 = arith.constant 0 : index
    %c0_15 = arith.constant 0 : index
    %c0_16 = arith.constant 0 : index
    %23 = vector.load %arg3[%c0_14, %c0_15, %c0_16] : memref<3x32x64xf32, #tpu.memory_space<vmem>>, vector<1x32x64xf32>
    %24 = vector.shape_cast %23 : vector<1x32x64xf32> to vector<32x64xf32>
    %cst_17 = arith.constant dense<0.000000e+00> : vector<36x64xf32>
    %25 = tpu.matmul %22, %24, %cst_17 {dimension_numbers = #tpu.dot_dimension_numbers<[1], [0], [0], [1], [0, 0, 1, 1], [], []>} : vector<36x32xf32>, vector<32x64xf32>, vector<36x64xf32> -> vector<36x64xf32>
    %26 = vector.extract_strided_slice %21 {offsets = [2, 0], sizes = [36, 32], strides = [1, 1]} : vector<40x32xf32> to vector<36x32xf32>
    %c1_18 = arith.constant 1 : index
    %c0_19 = arith.constant 0 : index
    %c0_20 = arith.constant 0 : index
    %27 = vector.load %arg3[%c1_18, %c0_19, %c0_20] : memref<3x32x64xf32, #tpu.memory_space<vmem>>, vector<1x32x64xf32>
    %28 = vector.shape_cast %27 : vector<1x32x64xf32> to vector<32x64xf32>
    %cst_21 = arith.constant dense<0.000000e+00> : vector<36x64xf32>
    %29 = tpu.matmul %26, %28, %cst_21 {dimension_numbers = #tpu.dot_dimension_numbers<[1], [0], [0], [1], [0, 0, 1, 1], [], []>} : vector<36x32xf32>, vector<32x64xf32>, vector<36x64xf32> -> vector<36x64xf32>
    %30 = arith.addf %25, %29 : vector<36x64xf32>
    %31 = vector.extract_strided_slice %21 {offsets = [4, 0], sizes = [36, 32], strides = [1, 1]} : vector<40x32xf32> to vector<36x32xf32>
    %c2_22 = arith.constant 2 : index
    %c0_23 = arith.constant 0 : index
    %c0_24 = arith.constant 0 : index
    %32 = vector.load %arg3[%c2_22, %c0_23, %c0_24] : memref<3x32x64xf32, #tpu.memory_space<vmem>>, vector<1x32x64xf32>
    %33 = vector.shape_cast %32 : vector<1x32x64xf32> to vector<32x64xf32>
    %cst_25 = arith.constant dense<0.000000e+00> : vector<36x64xf32>
    %34 = tpu.matmul %31, %33, %cst_25 {dimension_numbers = #tpu.dot_dimension_numbers<[1], [0], [0], [1], [0, 0, 1, 1], [], []>} : vector<36x32xf32>, vector<32x64xf32>, vector<36x64xf32> -> vector<36x64xf32>
    %35 = arith.addf %30, %34 : vector<36x64xf32>
    %c0_26 = arith.constant 0 : index
    %c0_27 = arith.constant 0 : index
    %36 = vector.load %arg4[%c0_26, %c0_27] : memref<1x64xf32, #tpu.memory_space<vmem>>, vector<1x64xf32>
    %37 = vector.broadcast %36 : vector<1x64xf32> to vector<36x64xf32>
    %38 = arith.addf %35, %37 : vector<36x64xf32>
    %cst_28 = arith.constant 0.000000e+00 : f32
    %39 = vector.broadcast %cst_28 : f32 to vector<36x64xf32>
    %40 = arith.maximumf %38, %39 : vector<36x64xf32>
    %41 = vector.extract_strided_slice %40 {offsets = [0, 0], sizes = [2, 64], strides = [1, 1]} : vector<36x64xf32> to vector<2x64xf32>
    %c0_29 = arith.constant 0 : index
    %c0_30 = arith.constant 0 : index
    %c0_31 = arith.constant 0 : index
    %42 = vector.load %arg5[%c0_29, %c0_30, %c0_31] : memref<18x64x32xf32, #tpu.memory_space<vmem>>, vector<1x64x32xf32>
    %43 = vector.shape_cast %42 : vector<1x64x32xf32> to vector<64x32xf32>
    %cst_32 = arith.constant dense<0.000000e+00> : vector<2x32xf32>
    %44 = tpu.matmul %41, %43, %cst_32 {dimension_numbers = #tpu.dot_dimension_numbers<[1], [0], [0], [1], [0, 0, 1, 1], [], []>} : vector<2x64xf32>, vector<64x32xf32>, vector<2x32xf32> -> vector<2x32xf32>
    %45 = vector.extract_strided_slice %40 {offsets = [2, 0], sizes = [2, 64], strides = [1, 1]} : vector<36x64xf32> to vector<2x64xf32>
    %c1_33 = arith.constant 1 : index
    %c0_34 = arith.constant 0 : index
    %c0_35 = arith.constant 0 : index
    %46 = vector.load %arg5[%c1_33, %c0_34, %c0_35] : memref<18x64x32xf32, #tpu.memory_space<vmem>>, vector<1x64x32xf32>
    %47 = vector.shape_cast %46 : vector<1x64x32xf32> to vector<64x32xf32>
    %cst_36 = arith.constant dense<0.000000e+00> : vector<2x32xf32>
    %48 = tpu.matmul %45, %47, %cst_36 {dimension_numbers = #tpu.dot_dimension_numbers<[1], [0], [0], [1], [0, 0, 1, 1], [], []>} : vector<2x64xf32>, vector<64x32xf32>, vector<2x32xf32> -> vector<2x32xf32>
    %49 = vector.extract_strided_slice %40 {offsets = [4, 0], sizes = [2, 64], strides = [1, 1]} : vector<36x64xf32> to vector<2x64xf32>
    %c2_37 = arith.constant 2 : index
    %c0_38 = arith.constant 0 : index
    %c0_39 = arith.constant 0 : index
    %50 = vector.load %arg5[%c2_37, %c0_38, %c0_39] : memref<18x64x32xf32, #tpu.memory_space<vmem>>, vector<1x64x32xf32>
    %51 = vector.shape_cast %50 : vector<1x64x32xf32> to vector<64x32xf32>
    %cst_40 = arith.constant dense<0.000000e+00> : vector<2x32xf32>
    %52 = tpu.matmul %49, %51, %cst_40 {dimension_numbers = #tpu.dot_dimension_numbers<[1], [0], [0], [1], [0, 0, 1, 1], [], []>} : vector<2x64xf32>, vector<64x32xf32>, vector<2x32xf32> -> vector<2x32xf32>
    %53 = vector.extract_strided_slice %40 {offsets = [6, 0], sizes = [2, 64], strides = [1, 1]} : vector<36x64xf32> to vector<2x64xf32>
    %c3 = arith.constant 3 : index
    %c0_41 = arith.constant 0 : index
    %c0_42 = arith.constant 0 : index
    %54 = vector.load %arg5[%c3, %c0_41, %c0_42] : memref<18x64x32xf32, #tpu.memory_space<vmem>>, vector<1x64x32xf32>
    %55 = vector.shape_cast %54 : vector<1x64x32xf32> to vector<64x32xf32>
    %cst_43 = arith.constant dense<0.000000e+00> : vector<2x32xf32>
    %56 = tpu.matmul %53, %55, %cst_43 {dimension_numbers = #tpu.dot_dimension_numbers<[1], [0], [0], [1], [0, 0, 1, 1], [], []>} : vector<2x64xf32>, vector<64x32xf32>, vector<2x32xf32> -> vector<2x32xf32>
    %57 = vector.extract_strided_slice %40 {offsets = [8, 0], sizes = [2, 64], strides = [1, 1]} : vector<36x64xf32> to vector<2x64xf32>
    %c4 = arith.constant 4 : index
    %c0_44 = arith.constant 0 : index
    %c0_45 = arith.constant 0 : index
    %58 = vector.load %arg5[%c4, %c0_44, %c0_45] : memref<18x64x32xf32, #tpu.memory_space<vmem>>, vector<1x64x32xf32>
    %59 = vector.shape_cast %58 : vector<1x64x32xf32> to vector<64x32xf32>
    %cst_46 = arith.constant dense<0.000000e+00> : vector<2x32xf32>
    %60 = tpu.matmul %57, %59, %cst_46 {dimension_numbers = #tpu.dot_dimension_numbers<[1], [0], [0], [1], [0, 0, 1, 1], [], []>} : vector<2x64xf32>, vector<64x32xf32>, vector<2x32xf32> -> vector<2x32xf32>
    %61 = vector.extract_strided_slice %40 {offsets = [10, 0], sizes = [2, 64], strides = [1, 1]} : vector<36x64xf32> to vector<2x64xf32>
    %c5 = arith.constant 5 : index
    %c0_47 = arith.constant 0 : index
    %c0_48 = arith.constant 0 : index
    %62 = vector.load %arg5[%c5, %c0_47, %c0_48] : memref<18x64x32xf32, #tpu.memory_space<vmem>>, vector<1x64x32xf32>
    %63 = vector.shape_cast %62 : vector<1x64x32xf32> to vector<64x32xf32>
    %cst_49 = arith.constant dense<0.000000e+00> : vector<2x32xf32>
    %64 = tpu.matmul %61, %63, %cst_49 {dimension_numbers = #tpu.dot_dimension_numbers<[1], [0], [0], [1], [0, 0, 1, 1], [], []>} : vector<2x64xf32>, vector<64x32xf32>, vector<2x32xf32> -> vector<2x32xf32>
    %65 = vector.extract_strided_slice %40 {offsets = [12, 0], sizes = [2, 64], strides = [1, 1]} : vector<36x64xf32> to vector<2x64xf32>
    %c6 = arith.constant 6 : index
    %c0_50 = arith.constant 0 : index
    %c0_51 = arith.constant 0 : index
    %66 = vector.load %arg5[%c6, %c0_50, %c0_51] : memref<18x64x32xf32, #tpu.memory_space<vmem>>, vector<1x64x32xf32>
    %67 = vector.shape_cast %66 : vector<1x64x32xf32> to vector<64x32xf32>
    %cst_52 = arith.constant dense<0.000000e+00> : vector<2x32xf32>
    %68 = tpu.matmul %65, %67, %cst_52 {dimension_numbers = #tpu.dot_dimension_numbers<[1], [0], [0], [1], [0, 0, 1, 1], [], []>} : vector<2x64xf32>, vector<64x32xf32>, vector<2x32xf32> -> vector<2x32xf32>
    %69 = vector.extract_strided_slice %40 {offsets = [14, 0], sizes = [2, 64], strides = [1, 1]} : vector<36x64xf32> to vector<2x64xf32>
    %c7 = arith.constant 7 : index
    %c0_53 = arith.constant 0 : index
    %c0_54 = arith.constant 0 : index
    %70 = vector.load %arg5[%c7, %c0_53, %c0_54] : memref<18x64x32xf32, #tpu.memory_space<vmem>>, vector<1x64x32xf32>
    %71 = vector.shape_cast %70 : vector<1x64x32xf32> to vector<64x32xf32>
    %cst_55 = arith.constant dense<0.000000e+00> : vector<2x32xf32>
    %72 = tpu.matmul %69, %71, %cst_55 {dimension_numbers = #tpu.dot_dimension_numbers<[1], [0], [0], [1], [0, 0, 1, 1], [], []>} : vector<2x64xf32>, vector<64x32xf32>, vector<2x32xf32> -> vector<2x32xf32>
    %73 = vector.extract_strided_slice %40 {offsets = [16, 0], sizes = [2, 64], strides = [1, 1]} : vector<36x64xf32> to vector<2x64xf32>
    %c8 = arith.constant 8 : index
    %c0_56 = arith.constant 0 : index
    %c0_57 = arith.constant 0 : index
    %74 = vector.load %arg5[%c8, %c0_56, %c0_57] : memref<18x64x32xf32, #tpu.memory_space<vmem>>, vector<1x64x32xf32>
    %75 = vector.shape_cast %74 : vector<1x64x32xf32> to vector<64x32xf32>
    %cst_58 = arith.constant dense<0.000000e+00> : vector<2x32xf32>
    %76 = tpu.matmul %73, %75, %cst_58 {dimension_numbers = #tpu.dot_dimension_numbers<[1], [0], [0], [1], [0, 0, 1, 1], [], []>} : vector<2x64xf32>, vector<64x32xf32>, vector<2x32xf32> -> vector<2x32xf32>
    %77 = vector.extract_strided_slice %40 {offsets = [18, 0], sizes = [2, 64], strides = [1, 1]} : vector<36x64xf32> to vector<2x64xf32>
    %c9 = arith.constant 9 : index
    %c0_59 = arith.constant 0 : index
    %c0_60 = arith.constant 0 : index
    %78 = vector.load %arg5[%c9, %c0_59, %c0_60] : memref<18x64x32xf32, #tpu.memory_space<vmem>>, vector<1x64x32xf32>
    %79 = vector.shape_cast %78 : vector<1x64x32xf32> to vector<64x32xf32>
    %cst_61 = arith.constant dense<0.000000e+00> : vector<2x32xf32>
    %80 = tpu.matmul %77, %79, %cst_61 {dimension_numbers = #tpu.dot_dimension_numbers<[1], [0], [0], [1], [0, 0, 1, 1], [], []>} : vector<2x64xf32>, vector<64x32xf32>, vector<2x32xf32> -> vector<2x32xf32>
    %81 = vector.extract_strided_slice %40 {offsets = [20, 0], sizes = [2, 64], strides = [1, 1]} : vector<36x64xf32> to vector<2x64xf32>
    %c10 = arith.constant 10 : index
    %c0_62 = arith.constant 0 : index
    %c0_63 = arith.constant 0 : index
    %82 = vector.load %arg5[%c10, %c0_62, %c0_63] : memref<18x64x32xf32, #tpu.memory_space<vmem>>, vector<1x64x32xf32>
    %83 = vector.shape_cast %82 : vector<1x64x32xf32> to vector<64x32xf32>
    %cst_64 = arith.constant dense<0.000000e+00> : vector<2x32xf32>
    %84 = tpu.matmul %81, %83, %cst_64 {dimension_numbers = #tpu.dot_dimension_numbers<[1], [0], [0], [1], [0, 0, 1, 1], [], []>} : vector<2x64xf32>, vector<64x32xf32>, vector<2x32xf32> -> vector<2x32xf32>
    %85 = vector.extract_strided_slice %40 {offsets = [22, 0], sizes = [2, 64], strides = [1, 1]} : vector<36x64xf32> to vector<2x64xf32>
    %c11 = arith.constant 11 : index
    %c0_65 = arith.constant 0 : index
    %c0_66 = arith.constant 0 : index
    %86 = vector.load %arg5[%c11, %c0_65, %c0_66] : memref<18x64x32xf32, #tpu.memory_space<vmem>>, vector<1x64x32xf32>
    %87 = vector.shape_cast %86 : vector<1x64x32xf32> to vector<64x32xf32>
    %cst_67 = arith.constant dense<0.000000e+00> : vector<2x32xf32>
    %88 = tpu.matmul %85, %87, %cst_67 {dimension_numbers = #tpu.dot_dimension_numbers<[1], [0], [0], [1], [0, 0, 1, 1], [], []>} : vector<2x64xf32>, vector<64x32xf32>, vector<2x32xf32> -> vector<2x32xf32>
    %89 = vector.extract_strided_slice %40 {offsets = [24, 0], sizes = [2, 64], strides = [1, 1]} : vector<36x64xf32> to vector<2x64xf32>
    %c12 = arith.constant 12 : index
    %c0_68 = arith.constant 0 : index
    %c0_69 = arith.constant 0 : index
    %90 = vector.load %arg5[%c12, %c0_68, %c0_69] : memref<18x64x32xf32, #tpu.memory_space<vmem>>, vector<1x64x32xf32>
    %91 = vector.shape_cast %90 : vector<1x64x32xf32> to vector<64x32xf32>
    %cst_70 = arith.constant dense<0.000000e+00> : vector<2x32xf32>
    %92 = tpu.matmul %89, %91, %cst_70 {dimension_numbers = #tpu.dot_dimension_numbers<[1], [0], [0], [1], [0, 0, 1, 1], [], []>} : vector<2x64xf32>, vector<64x32xf32>, vector<2x32xf32> -> vector<2x32xf32>
    %93 = vector.extract_strided_slice %40 {offsets = [26, 0], sizes = [2, 64], strides = [1, 1]} : vector<36x64xf32> to vector<2x64xf32>
    %c13 = arith.constant 13 : index
    %c0_71 = arith.constant 0 : index
    %c0_72 = arith.constant 0 : index
    %94 = vector.load %arg5[%c13, %c0_71, %c0_72] : memref<18x64x32xf32, #tpu.memory_space<vmem>>, vector<1x64x32xf32>
    %95 = vector.shape_cast %94 : vector<1x64x32xf32> to vector<64x32xf32>
    %cst_73 = arith.constant dense<0.000000e+00> : vector<2x32xf32>
    %96 = tpu.matmul %93, %95, %cst_73 {dimension_numbers = #tpu.dot_dimension_numbers<[1], [0], [0], [1], [0, 0, 1, 1], [], []>} : vector<2x64xf32>, vector<64x32xf32>, vector<2x32xf32> -> vector<2x32xf32>
    %97 = vector.extract_strided_slice %40 {offsets = [28, 0], sizes = [2, 64], strides = [1, 1]} : vector<36x64xf32> to vector<2x64xf32>
    %c14 = arith.constant 14 : index
    %c0_74 = arith.constant 0 : index
    %c0_75 = arith.constant 0 : index
    %98 = vector.load %arg5[%c14, %c0_74, %c0_75] : memref<18x64x32xf32, #tpu.memory_space<vmem>>, vector<1x64x32xf32>
    %99 = vector.shape_cast %98 : vector<1x64x32xf32> to vector<64x32xf32>
    %cst_76 = arith.constant dense<0.000000e+00> : vector<2x32xf32>
    %100 = tpu.matmul %97, %99, %cst_76 {dimension_numbers = #tpu.dot_dimension_numbers<[1], [0], [0], [1], [0, 0, 1, 1], [], []>} : vector<2x64xf32>, vector<64x32xf32>, vector<2x32xf32> -> vector<2x32xf32>
    %101 = vector.extract_strided_slice %40 {offsets = [30, 0], sizes = [2, 64], strides = [1, 1]} : vector<36x64xf32> to vector<2x64xf32>
    %c15 = arith.constant 15 : index
    %c0_77 = arith.constant 0 : index
    %c0_78 = arith.constant 0 : index
    %102 = vector.load %arg5[%c15, %c0_77, %c0_78] : memref<18x64x32xf32, #tpu.memory_space<vmem>>, vector<1x64x32xf32>
    %103 = vector.shape_cast %102 : vector<1x64x32xf32> to vector<64x32xf32>
    %cst_79 = arith.constant dense<0.000000e+00> : vector<2x32xf32>
    %104 = tpu.matmul %101, %103, %cst_79 {dimension_numbers = #tpu.dot_dimension_numbers<[1], [0], [0], [1], [0, 0, 1, 1], [], []>} : vector<2x64xf32>, vector<64x32xf32>, vector<2x32xf32> -> vector<2x32xf32>
    %105 = vector.extract_strided_slice %40 {offsets = [32, 0], sizes = [2, 64], strides = [1, 1]} : vector<36x64xf32> to vector<2x64xf32>
    %c16 = arith.constant 16 : index
    %c0_80 = arith.constant 0 : index
    %c0_81 = arith.constant 0 : index
    %106 = vector.load %arg5[%c16, %c0_80, %c0_81] : memref<18x64x32xf32, #tpu.memory_space<vmem>>, vector<1x64x32xf32>
    %107 = vector.shape_cast %106 : vector<1x64x32xf32> to vector<64x32xf32>
    %cst_82 = arith.constant dense<0.000000e+00> : vector<2x32xf32>
    %108 = tpu.matmul %105, %107, %cst_82 {dimension_numbers = #tpu.dot_dimension_numbers<[1], [0], [0], [1], [0, 0, 1, 1], [], []>} : vector<2x64xf32>, vector<64x32xf32>, vector<2x32xf32> -> vector<2x32xf32>
    %109 = vector.extract_strided_slice %40 {offsets = [34, 0], sizes = [2, 64], strides = [1, 1]} : vector<36x64xf32> to vector<2x64xf32>
    %c17 = arith.constant 17 : index
    %c0_83 = arith.constant 0 : index
    %c0_84 = arith.constant 0 : index
    %110 = vector.load %arg5[%c17, %c0_83, %c0_84] : memref<18x64x32xf32, #tpu.memory_space<vmem>>, vector<1x64x32xf32>
    %111 = vector.shape_cast %110 : vector<1x64x32xf32> to vector<64x32xf32>
    %cst_85 = arith.constant dense<0.000000e+00> : vector<2x32xf32>
    %112 = tpu.matmul %109, %111, %cst_85 {dimension_numbers = #tpu.dot_dimension_numbers<[1], [0], [0], [1], [0, 0, 1, 1], [], []>} : vector<2x64xf32>, vector<64x32xf32>, vector<2x32xf32> -> vector<2x32xf32>
    %113 = arith.addf %44, %48 : vector<2x32xf32>
    %114 = arith.addf %52, %56 : vector<2x32xf32>
    %115 = arith.addf %60, %64 : vector<2x32xf32>
    %116 = arith.addf %68, %72 : vector<2x32xf32>
    %117 = arith.addf %76, %80 : vector<2x32xf32>
    %118 = arith.addf %84, %88 : vector<2x32xf32>
    %119 = arith.addf %92, %96 : vector<2x32xf32>
    %120 = arith.addf %100, %104 : vector<2x32xf32>
    %121 = arith.addf %108, %112 : vector<2x32xf32>
    %122 = arith.addf %113, %114 : vector<2x32xf32>
    %123 = arith.addf %115, %116 : vector<2x32xf32>
    %124 = arith.addf %117, %118 : vector<2x32xf32>
    %125 = arith.addf %119, %120 : vector<2x32xf32>
    %126 = arith.addf %122, %123 : vector<2x32xf32>
    %127 = arith.addf %124, %125 : vector<2x32xf32>
    %128 = arith.addf %126, %127 : vector<2x32xf32>
    %129 = arith.addf %128, %121 : vector<2x32xf32>
    %c0_86 = arith.constant 0 : index
    %c0_87 = arith.constant 0 : index
    %130 = vector.load %arg6[%c0_86, %c0_87] : memref<1x32xf32, #tpu.memory_space<vmem>>, vector<1x32xf32>
    %131 = vector.broadcast %130 : vector<1x32xf32> to vector<2x32xf32>
    %132 = arith.addf %129, %131 : vector<2x32xf32>
    %cst_88 = arith.constant 0.000000e+00 : f32
    %133 = vector.broadcast %cst_88 : f32 to vector<2x32xf32>
    %134 = arith.maximumf %132, %133 : vector<2x32xf32>
    %c0_89 = arith.constant 0 : index
    %c0_90 = arith.constant 0 : index
    %135 = vector.load %arg7[%c0_89, %c0_90] : memref<32x96xf32, #tpu.memory_space<vmem>>, vector<32x96xf32>
    %cst_91 = arith.constant dense<0.000000e+00> : vector<2x96xf32>
    %136 = tpu.matmul %134, %135, %cst_91 {dimension_numbers = #tpu.dot_dimension_numbers<[1], [0], [0], [1], [0, 0, 1, 1], [], []>} : vector<2x32xf32>, vector<32x96xf32>, vector<2x96xf32> -> vector<2x96xf32>
    %c0_92 = arith.constant 0 : index
    %c0_93 = arith.constant 0 : index
    %137 = vector.load %arg8[%c0_92, %c0_93] : memref<1x96xf32, #tpu.memory_space<vmem>>, vector<1x96xf32>
    %138 = vector.broadcast %137 : vector<1x96xf32> to vector<2x96xf32>
    %139 = arith.addf %136, %138 : vector<2x96xf32>
    %140 = vector.extract_strided_slice %139 {offsets = [0, 0], sizes = [2, 32], strides = [1, 1]} : vector<2x96xf32> to vector<2x32xf32>
    %141 = arith.negf %140 : vector<2x32xf32>
    %142 = math.exp %141 : vector<2x32xf32>
    %cst_94 = arith.constant 1.000000e+00 : f32
    %143 = vector.broadcast %cst_94 : f32 to vector<2x32xf32>
    %144 = arith.addf %143, %142 : vector<2x32xf32>
    %145 = arith.divf %143, %144 : vector<2x32xf32>
    %146 = vector.extract_strided_slice %139 {offsets = [0, 32], sizes = [2, 32], strides = [1, 1]} : vector<2x96xf32> to vector<2x32xf32>
    %147 = math.tanh %146 : vector<2x32xf32>
    %148 = vector.extract_strided_slice %139 {offsets = [0, 64], sizes = [2, 32], strides = [1, 1]} : vector<2x96xf32> to vector<2x32xf32>
    %149 = arith.negf %148 : vector<2x32xf32>
    %150 = math.exp %149 : vector<2x32xf32>
    %cst_95 = arith.constant 1.000000e+00 : f32
    %151 = vector.broadcast %cst_95 : f32 to vector<2x32xf32>
    %152 = arith.addf %151, %150 : vector<2x32xf32>
    %153 = arith.divf %151, %152 : vector<2x32xf32>
    %154 = arith.mulf %145, %147 : vector<2x32xf32>
    %155 = math.tanh %154 : vector<2x32xf32>
    %156 = arith.mulf %153, %155 : vector<2x32xf32>
    %c0_96 = arith.constant 0 : index
    %c0_97 = arith.constant 0 : index
    %157 = vector.load %arg9[%c0_96, %c0_97] : memref<32x96xf32, #tpu.memory_space<vmem>>, vector<32x96xf32>
    %cst_98 = arith.constant dense<0.000000e+00> : vector<2x96xf32>
    %158 = tpu.matmul %156, %157, %cst_98 {dimension_numbers = #tpu.dot_dimension_numbers<[1], [0], [0], [1], [0, 0, 1, 1], [], []>} : vector<2x32xf32>, vector<32x96xf32>, vector<2x96xf32> -> vector<2x96xf32>
    %c0_99 = arith.constant 0 : index
    %c0_100 = arith.constant 0 : index
    %159 = vector.load %arg10[%c0_99, %c0_100] : memref<1x96xf32, #tpu.memory_space<vmem>>, vector<1x96xf32>
    %160 = vector.broadcast %159 : vector<1x96xf32> to vector<2x96xf32>
    %161 = arith.addf %158, %160 : vector<2x96xf32>
    %162 = vector.extract_strided_slice %161 {offsets = [0, 0], sizes = [2, 32], strides = [1, 1]} : vector<2x96xf32> to vector<2x32xf32>
    %163 = arith.negf %162 : vector<2x32xf32>
    %164 = math.exp %163 : vector<2x32xf32>
    %cst_101 = arith.constant 1.000000e+00 : f32
    %165 = vector.broadcast %cst_101 : f32 to vector<2x32xf32>
    %166 = arith.addf %165, %164 : vector<2x32xf32>
    %167 = arith.divf %165, %166 : vector<2x32xf32>
    %168 = vector.extract_strided_slice %161 {offsets = [0, 32], sizes = [2, 32], strides = [1, 1]} : vector<2x96xf32> to vector<2x32xf32>
    %169 = math.tanh %168 : vector<2x32xf32>
    %170 = vector.extract_strided_slice %161 {offsets = [0, 64], sizes = [2, 32], strides = [1, 1]} : vector<2x96xf32> to vector<2x32xf32>
    %171 = arith.negf %170 : vector<2x32xf32>
    %172 = math.exp %171 : vector<2x32xf32>
    %cst_102 = arith.constant 1.000000e+00 : f32
    %173 = vector.broadcast %cst_102 : f32 to vector<2x32xf32>
    %174 = arith.addf %173, %172 : vector<2x32xf32>
    %175 = arith.divf %173, %174 : vector<2x32xf32>
    %176 = arith.mulf %167, %169 : vector<2x32xf32>
    %177 = math.tanh %176 : vector<2x32xf32>
    %178 = arith.mulf %175, %177 : vector<2x32xf32>
    %c0_103 = arith.constant 0 : index
    %c0_104 = arith.constant 0 : index
    %179 = vector.load %arg11[%c0_103, %c0_104] : memref<64x4xf32, #tpu.memory_space<vmem>>, vector<32x4xf32>
    %cst_105 = arith.constant dense<0.000000e+00> : vector<2x4xf32>
    %180 = tpu.matmul %156, %179, %cst_105 {dimension_numbers = #tpu.dot_dimension_numbers<[1], [0], [0], [1], [0, 0, 1, 1], [], []>} : vector<2x32xf32>, vector<32x4xf32>, vector<2x4xf32> -> vector<2x4xf32>
    %c32 = arith.constant 32 : index
    %c0_106 = arith.constant 0 : index
    %181 = vector.load %arg11[%c32, %c0_106] : memref<64x4xf32, #tpu.memory_space<vmem>>, vector<32x4xf32>
    %cst_107 = arith.constant dense<0.000000e+00> : vector<2x4xf32>
    %182 = tpu.matmul %178, %181, %cst_107 {dimension_numbers = #tpu.dot_dimension_numbers<[1], [0], [0], [1], [0, 0, 1, 1], [], []>} : vector<2x32xf32>, vector<32x4xf32>, vector<2x4xf32> -> vector<2x4xf32>
    %183 = arith.addf %180, %182 : vector<2x4xf32>
    %c0_108 = arith.constant 0 : index
    %c0_109 = arith.constant 0 : index
    %184 = vector.load %arg12[%c0_108, %c0_109] : memref<1x4xf32, #tpu.memory_space<vmem>>, vector<1x4xf32>
    %185 = vector.broadcast %184 : vector<1x4xf32> to vector<2x4xf32>
    %186 = arith.addf %183, %185 : vector<2x4xf32>
    %c0_110 = arith.constant 0 : index
    %c0_111 = arith.constant 0 : index
    %187 = vector.load %arg13[%c0_110, %c0_111] : memref<2x4xf32, #tpu.memory_space<vmem>>, vector<2x4xf32>
    tpu.vector_store %arg13[%c0_110, %c0_111], %186 {strides = array<i32>} : memref<2x4xf32, #tpu.memory_space<vmem>>, vector<2x4xf32>,
    return
  }
}

</mosaic_0001>

<llo_original>
// kernel: dnn_net_forward.1
$region0: #{dnn_net_forward.1}
  #allocation0 [shape = 'u32[]', space=smem, size = 0x4, offset = 0x4, fixed_abs, tag = 'smem constant byte address 0x4 - core index']
  #allocation1 [shape = 'u32[144,128]{1,0:T(1,128)}', space=vmem, size = 0x12000, scoped, tag = 'internal scratch']
  %s0 = inlined_call_operand.vmem [shape: f32[40,4], index: 0, kind: input, shape index: {}]
  %s1 = inlined_call_operand.vmem [shape: f32[3,4,32], index: 1, kind: input, shape index: {}]
  %s2 = inlined_call_operand.vmem [shape: f32[1,32], index: 2, kind: input, shape index: {}]
  %s3 = inlined_call_operand.vmem [shape: f32[3,32,64], index: 3, kind: input, shape index: {}]
  %s4 = inlined_call_operand.vmem [shape: f32[1,64], index: 4, kind: input, shape index: {}]
  %s5 = inlined_call_operand.vmem [shape: f32[18,64,32], index: 5, kind: input, shape index: {}]
  %s6 = inlined_call_operand.vmem [shape: f32[1,32], index: 6, kind: input, shape index: {}]
  %s7 = inlined_call_operand.vmem [shape: f32[32,96], index: 7, kind: input, shape index: {}]
  %s8 = inlined_call_operand.vmem [shape: f32[1,96], index: 8, kind: input, shape index: {}]
  %s9 = inlined_call_operand.vmem [shape: f32[32,96], index: 9, kind: input, shape index: {}]
  %s10 = inlined_call_operand.vmem [shape: f32[1,96], index: 10, kind: input, shape index: {}]
  %s11 = inlined_call_operand.vmem [shape: f32[64,4], index: 11, kind: input, shape index: {}]
  %s12 = inlined_call_operand.vmem [shape: f32[1,4], index: 12, kind: input, shape index: {}]
  %s13 = inlined_call_operand.hbm [shape: f32[2,4], index: 13, kind: output, shape index: {}]
  %s14 = sld [smem:[#allocation0]]
  $region62: #{dnn_net_forward.1} parent=0
    _
  %s16 = ssub.s32 1, %s14
  %s17 = scalar_select 0, %s16, %s14
  $region1: #{dnn_net_forward.1} parent=0
    #allocation2 [shape = 'u8[1024]{0}', space=vmem, size = 0x400, scoped, tag = 'output window, operand 0, single buffered']
    #allocation3 [shape = 's32[1]{0}', space=sflag, size = 0x4, scoped, tag = 'scoped memory for dnn_net_forward.1']
    %18 = vsyncpa [#allocation3], 0
    // Predicated region
    $region2: #{dnn_net_forward.1} parent=1 // pred_check
      _
    $region3: #{dnn_net_forward.1} parent=1 // pred_check_branch
      %20 = sbr.rel (0) target = $region5
    $region4: #{dnn_net_forward.1} parent=1 // pred_region
      _
    $region5: #{dnn_net_forward.1} parent=1 // pred_fallthru
      _
    // Predicated region
    $region6: #{dnn_net_forward.1} parent=1 // pred_check
      _
    $region7: #{dnn_net_forward.1} parent=1 // pred_check_branch
      %22 = sbr.rel (0) target = $region9
    $region8: #{dnn_net_forward.1} parent=1 // pred_region
      _
    $region9: #{dnn_net_forward.1} parent=1 // pred_fallthru
      _
    // Predicated region
    $region10: #{dnn_net_forward.1} parent=1 // pred_check
      _
    $region11: #{dnn_net_forward.1} parent=1 // pred_check_branch
      %24 = sbr.rel (0) target = $region13
    $region12: #{dnn_net_forward.1} parent=1 // pred_region
      _
    $region13: #{dnn_net_forward.1} parent=1 // pred_fallthru
      _
    // Predicated region
    $region14: #{dnn_net_forward.1} parent=1 // pred_check
      _
    $region15: #{dnn_net_forward.1} parent=1 // pred_check_branch
      %26 = sbr.rel (0) target = $region17
    $region16: #{dnn_net_forward.1} parent=1 // pred_region
      _
    $region17: #{dnn_net_forward.1} parent=1 // pred_fallthru
      _
    // Predicated region
    $region18: #{dnn_net_forward.1} parent=1 // pred_check
      _
    $region19: #{dnn_net_forward.1} parent=1 // pred_check_branch
      %28 = sbr.rel (0) target = $region21
    $region20: #{dnn_net_forward.1} parent=1 // pred_region
      _
    $region21: #{dnn_net_forward.1} parent=1 // pred_fallthru
      _
    // Predicated region
    $region22: #{dnn_net_forward.1} parent=1 // pred_check
      _
    $region23: #{dnn_net_forward.1} parent=1 // pred_check_branch
      %30 = sbr.rel (0) target = $region25
    $region24: #{dnn_net_forward.1} parent=1 // pred_region
      _
    $region25: #{dnn_net_forward.1} parent=1 // pred_fallthru
      _
    // Predicated region
    $region26: #{dnn_net_forward.1} parent=1 // pred_check
      _
    $region27: #{dnn_net_forward.1} parent=1 // pred_check_branch
      %32 = sbr.rel (0) target = $region29
    $region28: #{dnn_net_forward.1} parent=1 // pred_region
      _
    $region29: #{dnn_net_forward.1} parent=1 // pred_fallthru
      _
    // Predicated region
    $region30: #{dnn_net_forward.1} parent=1 // pred_check
      _
    $region31: #{dnn_net_forward.1} parent=1 // pred_check_branch
      %34 = sbr.rel (0) target = $region33
    $region32: #{dnn_net_forward.1} parent=1 // pred_region
      _
    $region33: #{dnn_net_forward.1} parent=1 // pred_fallthru
      _
    // Predicated region
    $region34: #{dnn_net_forward.1} parent=1 // pred_check
      _
    $region35: #{dnn_net_forward.1} parent=1 // pred_check_branch
      %36 = sbr.rel (0) target = $region37
    $region36: #{dnn_net_forward.1} parent=1 // pred_region
      _
    $region37: #{dnn_net_forward.1} parent=1 // pred_fallthru
      _
    // Predicated region
    $region38: #{dnn_net_forward.1} parent=1 // pred_check
      _
    $region39: #{dnn_net_forward.1} parent=1 // pred_check_branch
      %38 = sbr.rel (0) target = $region41
    $region40: #{dnn_net_forward.1} parent=1 // pred_region
      _
    $region41: #{dnn_net_forward.1} parent=1 // pred_fallthru
      _
    // Predicated region
    $region42: #{dnn_net_forward.1} parent=1 // pred_check
      _
    $region43: #{dnn_net_forward.1} parent=1 // pred_check_branch
      %40 = sbr.rel (0) target = $region45
    $region44: #{dnn_net_forward.1} parent=1 // pred_region
      _
    $region45: #{dnn_net_forward.1} parent=1 // pred_fallthru
      _
    // Predicated region
    $region46: #{dnn_net_forward.1} parent=1 // pred_check
      _
    $region47: #{dnn_net_forward.1} parent=1 // pred_check_branch
      %42 = sbr.rel (0) target = $region49
    $region48: #{dnn_net_forward.1} parent=1 // pred_region
      _
    $region49: #{dnn_net_forward.1} parent=1 // pred_fallthru
      _
    // Predicated region
    $region50: #{dnn_net_forward.1} parent=1 // pred_check
      _
    $region51: #{dnn_net_forward.1} parent=1 // pred_check_branch
      %44 = sbr.rel (0) target = $region53
    $region52: #{dnn_net_forward.1} parent=1 // pred_region
      _
    $region53: #{dnn_net_forward.1} parent=1 // pred_fallthru
      _
    %v45 = vld [vmem:[%s0] sm:$0xff]
    %v46 = vld [vmem:[%s0 + $0x8] sm:$0xff]
    %v47 = vld [vmem:[%s0 + $0x10] sm:$0xff]
    %v48 = vld [vmem:[%s0 + $0x18] sm:$0xff]
    %v49 = vld [vmem:[%s0 + $0x20] sm:$0xff]
    %v50 = vld [vmem:[%s1] sm:$0xf]
    %s51 = scalar_lea.vmem %s1, 4
    %v52 = vld [vmem:[%s51] sm:$0xf]
    %vm58 = vcmask 1045504
    %v59 = vrot.slane %v45, 2
    %v60 = vrot.slane %v46, 2
    %v61 = vsel %vm58, %v59, %v60
    %v62 = vrot.slane %v47, 2
    %v63 = vsel %vm58, %v60, %v62
    %v64 = vrot.slane %v48, 2
    %v65 = vsel %vm58, %v62, %v64
    %v66 = vrot.slane %v49, 2
    %v67 = vsel %vm58, %v64, %v66
    %vm68 = vcmask 31744
    %v69 = vsel %vm68, %v61, 0
    %v71 = vsel %vm68, %v63, 0
    %v73 = vsel %vm68, %v65, 0
    %v75 = vsel %vm68, %v67, 0
    %v77 = vsel %vm68, %v66, 0
    %vm79 = vcmask 1043456
    %v81 = vsel %vm79, %v52, 0
    %83 = vmatprep.subr.mxu0 0.0
    %84 = vmatpush1.msra.mxu0 0.0
    %85 = vmatprep.subr.mxu0 0.0
    %86 = vmatpush1.msra.mxu0 0.0
    %87 = vmatprep.subr.mxu0 0.0
    %88 = vmatpush1.msra.mxu0 0.0
    %89 = vmatprep.subr.mxu0 0.0
    %90 = vmatpush1.msra.mxu0 0.0
    %91 = vmatprep.subr.mxu0 0.0
    %92 = vmatpush1.msra.mxu0 0.0
    %93 = vmatprep.subr.mxu0 0.0
    %94 = vmatpush1.msra.mxu0 0.0
    %95 = vmatprep.subr.mxu0 0.0
    %96 = vmatpush1.msra.mxu0 0.0
    %97 = vmatprep.subr.mxu0 0.0
    %98 = vmatpush1.msra.mxu0 0.0
    %99 = vmatprep.subr.mxu0 0.0
    %100 = vmatpush1.msra.mxu0 0.0
    %101 = vmatprep.subr.mxu0 0.0
    %102 = vmatpush1.msra.mxu0 0.0
    %103 = vmatprep.subr.mxu0 0.0
    %104 = vmatpush1.msra.mxu0 0.0
    %105 = vmatprep.subr.mxu0 0.0
    %106 = vmatpush1.msra.mxu0 0.0
    %107 = vmatprep.subr.mxu0 0.0
    %108 = vmatpush1.msra.mxu0 0.0
    %109 = vmatprep.subr.mxu0 0.0
    %110 = vmatpush1.msra.mxu0 0.0
    %111 = vmatprep.subr.mxu0 0.0
    %112 = vmatpush1.msra.mxu0 0.0
    %113 = vmatprep.subr.mxu0 0.0
    %114 = vmatpush1.msra.mxu0 %v81
    %115 = vmatprep.subr.mxu0 0.0
    %116 = vmatpush2.msra.mxu0 0.0
    %117 = vmatprep.subr.mxu0 0.0
    %118 = vmatpush2.msra.mxu0 0.0
    %119 = vmatprep.subr.mxu0 0.0
    %120 = vmatpush2.msra.mxu0 0.0
    %121 = vmatprep.subr.mxu0 0.0
    %122 = vmatpush2.msra.mxu0 0.0
    %123 = vmatprep.subr.mxu0 0.0
    %124 = vmatpush2.msra.mxu0 0.0
    %125 = vmatprep.subr.mxu0 0.0
    %126 = vmatpush2.msra.mxu0 0.0
    %127 = vmatprep.subr.mxu0 0.0
    %128 = vmatpush2.msra.mxu0 0.0
    %129 = vmatprep.subr.mxu0 0.0
    %130 = vmatpush2.msra.mxu0 0.0
    %131 = vmatprep.subr.mxu0 0.0
    %132 = vmatpush2.msra.mxu0 0.0
    %133 = vmatprep.subr.mxu0 0.0
    %134 = vmatpush2.msra.mxu0 0.0
    %135 = vmatprep.subr.mxu0 0.0
    %136 = vmatpush2.msra.mxu0 0.0
    %137 = vmatprep.subr.mxu0 0.0
    %138 = vmatpush2.msra.mxu0 0.0
    %139 = vmatprep.subr.mxu0 0.0
    %140 = vmatpush2.msra.mxu0 0.0
    %141 = vmatprep.subr.mxu0 0.0
    %142 = vmatpush2.msra.mxu0 0.0
    %143 = vmatprep.subr.mxu0 0.0
    %144 = vmatpush2.msra.mxu0 0.0
    %145 = vmatprep.subr.mxu0 0.0
    %146 = vmatpush2.msra.mxu0 0.0
    %147 = vmatprep.mubr.f32.mxu0 0.0
    %148 = vmatmul.mubr.f32.gmra.mxu0 %v69
    %v149 = vpop.f32.mrf.mxu0
    %v150 = vadd.f32 0.0, %v149
    %v151 = vpop.f32.mrf.mxu0
    %152 = vmatprep.mubr.f32.mxu0 0.0
    %153 = vmatmul.mubr.f32.gmra.mxu0 %v71
    %v154 = vpop.f32.mrf.mxu0
    %v155 = vadd.f32 0.0, %v154
    %v156 = vpop.f32.mrf.mxu0
    %157 = vmatprep.mubr.f32.mxu0 0.0
    %158 = vmatmul.mubr.f32.gmra.mxu0 %v73
    %v159 = vpop.f32.mrf.mxu0
    %v160 = vadd.f32 0.0, %v159
    %v161 = vpop.f32.mrf.mxu0
    %162 = vmatprep.mubr.f32.mxu0 0.0
    %163 = vmatmul.mubr.f32.gmra.mxu0 %v75
    %v164 = vpop.f32.mrf.mxu0
    %v165 = vadd.f32 0.0, %v164
    %v166 = vpop.f32.mrf.mxu0
    %167 = vmatprep.mubr.f32.mxu0 0.0
    %168 = vmatmul.mubr.f32.gmra.mxu0 %v77
    %v169 = vpop.f32.mrf.mxu0
    %v170 = vadd.f32 0.0, %v169
    %v171 = vpop.f32.mrf.mxu0
    %172 = vdwg.mxu0
    %v173 = vsel %vm68, %v45, 0
    %v175 = vsel %vm68, %v46, 0
    %v177 = vsel %vm68, %v47, 0
    %v179 = vsel %vm68, %v48, 0
    %v181 = vsel %vm68, %v49, 0
    %v184 = vsel %vm79, %v50, 0
    %186 = vmatprep.subr.mxu0 0.0
    %187 = vmatpush1.msra.mxu0 0.0
    %188 = vmatprep.subr.mxu0 0.0
    %189 = vmatpush1.msra.mxu0 0.0
    %190 = vmatprep.subr.mxu0 0.0
    %191 = vmatpush1.msra.mxu0 0.0
    %192 = vmatprep.subr.mxu0 0.0
    %193 = vmatpush1.msra.mxu0 0.0
    %194 = vmatprep.subr.mxu0 0.0
    %195 = vmatpush1.msra.mxu0 0.0
    %196 = vmatprep.subr.mxu0 0.0
    %197 = vmatpush1.msra.mxu0 0.0
    %198 = vmatprep.subr.mxu0 0.0
    %199 = vmatpush1.msra.mxu0 0.0
    %200 = vmatprep.subr.mxu0 0.0
    %201 = vmatpush1.msra.mxu0 0.0
    %202 = vmatprep.subr.mxu0 0.0
    %203 = vmatpush1.msra.mxu0 0.0
    %204 = vmatprep.subr.mxu0 0.0
    %205 = vmatpush1.msra.mxu0 0.0
    %206 = vmatprep.subr.mxu0 0.0
    %207 = vmatpush1.msra.mxu0 0.0
    %208 = vmatprep.subr.mxu0 0.0
    %209 = vmatpush1.msra.mxu0 0.0
    %210 = vmatprep.subr.mxu0 0.0
    %211 = vmatpush1.msra.mxu0 0.0
    %212 = vmatprep.subr.mxu0 0.0
    %213 = vmatpush1.msra.mxu0 0.0
    %214 = vmatprep.subr.mxu0 0.0
    %215 = vmatpush1.msra.mxu0 0.0
    %216 = vmatprep.subr.mxu0 0.0
    %217 = vmatpush1.msra.mxu0 %v184
    %218 = vmatprep.subr.mxu0 0.0
    %219 = vmatpush2.msra.mxu0 0.0
    %220 = vmatprep.subr.mxu0 0.0
    %221 = vmatpush2.msra.mxu0 0.0
    %222 = vmatprep.subr.mxu0 0.0
    %223 = vmatpush2.msra.mxu0 0.0
    %224 = vmatprep.subr.mxu0 0.0
    %225 = vmatpush2.msra.mxu0 0.0
    %226 = vmatprep.subr.mxu0 0.0
    %227 = vmatpush2.msra.mxu0 0.0
    %228 = vmatprep.subr.mxu0 0.0
    %229 = vmatpush2.msra.mxu0 0.0
    %230 = vmatprep.subr.mxu0 0.0
    %231 = vmatpush2.msra.mxu0 0.0
    %232 = vmatprep.subr.mxu0 0.0
    %233 = vmatpush2.msra.mxu0 0.0
    %234 = vmatprep.subr.mxu0 0.0
    %235 = vmatpush2.msra.mxu0 0.0
    %236 = vmatprep.subr.mxu0 0.0
    %237 = vmatpush2.msra.mxu0 0.0
    %238 = vmatprep.subr.mxu0 0.0
    %239 = vmatpush2.msra.mxu0 0.0
    %240 = vmatprep.subr.mxu0 0.0
    %241 = vmatpush2.msra.mxu0 0.0
    %242 = vmatprep.subr.mxu0 0.0
    %243 = vmatpush2.msra.mxu0 0.0
    %244 = vmatprep.subr.mxu0 0.0
    %245 = vmatpush2.msra.mxu0 0.0
    %246 = vmatprep.subr.mxu0 0.0
    %247 = vmatpush2.msra.mxu0 0.0
    %248 = vmatprep.subr.mxu0 0.0
    %249 = vmatpush2.msra.mxu0 0.0
    %250 = vmatprep.mubr.f32.mxu0 0.0
    %251 = vmatmul.mubr.f32.gmra.mxu0 %v173
    %v252 = vpop.f32.mrf.mxu0
    %v253 = vadd.f32 %v150, %v252
    %v254 = vpop.f32.mrf.mxu0
    %255 = vmatprep.mubr.f32.mxu0 0.0
    %256 = vmatmul.mubr.f32.gmra.mxu0 %v175
    %v257 = vpop.f32.mrf.mxu0
    %v258 = vadd.f32 %v155, %v257
    %v259 = vpop.f32.mrf.mxu0
    %260 = vmatprep.mubr.f32.mxu0 0.0
    %261 = vmatmul.mubr.f32.gmra.mxu0 %v177
    %v262 = vpop.f32.mrf.mxu0
    %v263 = vadd.f32 %v160, %v262
    %v264 = vpop.f32.mrf.mxu0
    %265 = vmatprep.mubr.f32.mxu0 0.0
    %266 = vmatmul.mubr.f32.gmra.mxu0 %v179
    %v267 = vpop.f32.mrf.mxu0
    %v268 = vadd.f32 %v165, %v267
    %v269 = vpop.f32.mrf.mxu0
    %270 = vmatprep.mubr.f32.mxu0 0.0
    %271 = vmatmul.mubr.f32.gmra.mxu0 %v181
    %v272 = vpop.f32.mrf.mxu0
    %v273 = vadd.f32 %v170, %v272
    %v274 = vpop.f32.mrf.mxu0
    %275 = vdwg.mxu0
    %s276 = scalar_lea.vmem %s1, 8
    %v277 = vld [vmem:[%s276] sm:$0xf]
    %v278 = vrot.slane %v45, 4
    %v279 = vrot.slane %v46, 4
    %v280 = vsel %vm79, %v278, %v279
    %v281 = vrot.slane %v47, 4
    %v282 = vsel %vm79, %v279, %v281
    %v283 = vrot.slane %v48, 4
    %v284 = vsel %vm79, %v281, %v283
    %v285 = vrot.slane %v49, 4
    %v286 = vsel %vm79, %v283, %v285
    %v287 = vsel %vm68, %v280, 0
    %v289 = vsel %vm68, %v282, 0
    %v291 = vsel %vm68, %v284, 0
    %v293 = vsel %vm68, %v286, 0
    %v295 = vsel %vm68, %v285, 0
    %v298 = vsel %vm79, %v277, 0
    %300 = vmatprep.subr.mxu0 0.0
    %301 = vmatpush1.msra.mxu0 0.0
    %302 = vmatprep.subr.mxu0 0.0
    %303 = vmatpush1.msra.mxu0 0.0
    %304 = vmatprep.subr.mxu0 0.0
    %305 = vmatpush1.msra.mxu0 0.0
    %306 = vmatprep.subr.mxu0 0.0
    %307 = vmatpush1.msra.mxu0 0.0
    %308 = vmatprep.subr.mxu0 0.0
    %309 = vmatpush1.msra.mxu0 0.0
    %310 = vmatprep.subr.mxu0 0.0
    %311 = vmatpush1.msra.mxu0 0.0
    %312 = vmatprep.subr.mxu0 0.0
    %313 = vmatpush1.msra.mxu0 0.0
    %314 = vmatprep.subr.mxu0 0.0
    %315 = vmatpush1.msra.mxu0 0.0
    %316 = vmatprep.subr.mxu0 0.0
    %317 = vmatpush1.msra.mxu0 0.0
    %318 = vmatprep.subr.mxu0 0.0
    %319 = vmatpush1.msra.mxu0 0.0
    %320 = vmatprep.subr.mxu0 0.0
    %321 = vmatpush1.msra.mxu0 0.0
    %322 = vmatprep.subr.mxu0 0.0
    %323 = vmatpush1.msra.mxu0 0.0
    %324 = vmatprep.subr.mxu0 0.0
    %325 = vmatpush1.msra.mxu0 0.0
    %326 = vmatprep.subr.mxu0 0.0
    %327 = vmatpush1.msra.mxu0 0.0
    %328 = vmatprep.subr.mxu0 0.0
    %329 = vmatpush1.msra.mxu0 0.0
    %330 = vmatprep.subr.mxu0 0.0
    %331 = vmatpush1.msra.mxu0 %v298
    %332 = vmatprep.subr.mxu0 0.0
    %333 = vmatpush2.msra.mxu0 0.0
    %334 = vmatprep.subr.mxu0 0.0
    %335 = vmatpush2.msra.mxu0 0.0
    %336 = vmatprep.subr.mxu0 0.0
    %337 = vmatpush2.msra.mxu0 0.0
    %338 = vmatprep.subr.mxu0 0.0
    %339 = vmatpush2.msra.mxu0 0.0
    %340 = vmatprep.subr.mxu0 0.0
    %341 = vmatpush2.msra.mxu0 0.0
    %342 = vmatprep.subr.mxu0 0.0
    %343 = vmatpush2.msra.mxu0 0.0
    %344 = vmatprep.subr.mxu0 0.0
    %345 = vmatpush2.msra.mxu0 0.0
    %346 = vmatprep.subr.mxu0 0.0
    %347 = vmatpush2.msra.mxu0 0.0
    %348 = vmatprep.subr.mxu0 0.0
    %349 = vmatpush2.msra.mxu0 0.0
    %350 = vmatprep.subr.mxu0 0.0
    %351 = vmatpush2.msra.mxu0 0.0
    %352 = vmatprep.subr.mxu0 0.0
    %353 = vmatpush2.msra.mxu0 0.0
    %354 = vmatprep.subr.mxu0 0.0
    %355 = vmatpush2.msra.mxu0 0.0
    %356 = vmatprep.subr.mxu0 0.0
    %357 = vmatpush2.msra.mxu0 0.0
    %358 = vmatprep.subr.mxu0 0.0
    %359 = vmatpush2.msra.mxu0 0.0
    %360 = vmatprep.subr.mxu0 0.0
    %361 = vmatpush2.msra.mxu0 0.0
    %362 = vmatprep.subr.mxu0 0.0
    %363 = vmatpush2.msra.mxu0 0.0
    %364 = vmatprep.mubr.f32.mxu0 0.0
    %365 = vmatmul.mubr.f32.gmra.mxu0 %v287
    %v366 = vpop.f32.mrf.mxu0
    %v367 = vadd.f32 0.0, %v366
    %v368 = vpop.f32.mrf.mxu0
    %369 = vmatprep.mubr.f32.mxu0 0.0
    %370 = vmatmul.mubr.f32.gmra.mxu0 %v289
    %v371 = vpop.f32.mrf.mxu0
    %v372 = vadd.f32 0.0, %v371
    %v373 = vpop.f32.mrf.mxu0
    %374 = vmatprep.mubr.f32.mxu0 0.0
    %375 = vmatmul.mubr.f32.gmra.mxu0 %v291
    %v376 = vpop.f32.mrf.mxu0
    %v377 = vadd.f32 0.0, %v376
    %v378 = vpop.f32.mrf.mxu0
    %379 = vmatprep.mubr.f32.mxu0 0.0
    %380 = vmatmul.mubr.f32.gmra.mxu0 %v293
    %v381 = vpop.f32.mrf.mxu0
    %v382 = vadd.f32 0.0, %v381
    %v383 = vpop.f32.mrf.mxu0
    %384 = vmatprep.mubr.f32.mxu0 0.0
    %385 = vmatmul.mubr.f32.gmra.mxu0 %v295
    %v386 = vpop.f32.mrf.mxu0
    %v387 = vadd.f32 0.0, %v386
    %v388 = vpop.f32.mrf.mxu0
    %389 = vdwg.mxu0
    %v390 = vadd.f32 %v253, %v367
    %v391 = vadd.f32 %v258, %v372
    %v392 = vadd.f32 %v263, %v377
    %v393 = vadd.f32 %v268, %v382
    %v394 = vadd.f32 %v273, %v387
    %v395 = vld [vmem:[%s2] sm:$0x1]
    %v397 = vlaneseq
    %v398 = vshrl.u32 %v397, 7
    %v399 = vsub.s32 0, %v398
    %v400 = vrot.slane %v395, %v399
    %v402 = vadd.f32 %v390, %v400
    %v403 = vadd.f32 %v391, %v400
    %v404 = vadd.f32 %v392, %v400
    %v405 = vadd.f32 %v393, %v400
    %v406 = vadd.f32 %v394, %v400
    %v407 = vmax.f32 %v402, 0.0
    %v408 = vmax.f32 %v403, 0.0
    %v409 = vmax.f32 %v404, 0.0
    %v410 = vmax.f32 %v405, 0.0
    %v411 = vmax.f32 %v406, 0.0
    %vm417 = vcmask 1041408
    %v418 = vrot.slane %v407, 6
    %v419 = vrot.slane %v408, 6
    %v420 = vsel %vm417, %v418, %v419
    %v421 = vrot.slane %v409, 6
    %v422 = vsel %vm417, %v419, %v421
    %v423 = vrot.slane %v410, 6
    %v424 = vsel %vm417, %v421, %v423
    %v425 = vrot.slane %v411, 6
    %v426 = vsel %vm417, %v423, %v425
    %v429 = vsel %vm417, 0.0, %v418
    %v430 = vsel %vm58, %v426, 0.0
    %v431 = vld [vmem:[%s3] sm:$0xff]
    %v432 = vld [vmem:[%s3 + $0x8] sm:$0xff]
    %v433 = vld [vmem:[%s3 + $0x10] sm:$0xff]
    %v434 = vld [vmem:[%s3 + $0x18] sm:$0xff]
    %s435 = scalar_lea.vmem %s3, 32
    %v436 = vld [vmem:[%s435] sm:$0xff]
    %v437 = vld [vmem:[%s435 + $0x8] sm:$0xff]
    %v438 = vld [vmem:[%s435 + $0x10] sm:$0xff]
    %v439 = vld [vmem:[%s435 + $0x18] sm:$0xff]
    %v442 = vrot.slane %v429, 2
    %v443 = vrot.slane %v420, 2
    %v444 = vsel %vm58, %v442, %v443
    %v445 = vrot.slane %v422, 2
    %v446 = vsel %vm58, %v443, %v445
    %v447 = vrot.slane %v424, 2
    %v448 = vsel %vm58, %v445, %v447
    %v449 = vrot.slane %v430, 2
    %v450 = vsel %vm58, %v447, %v449
    %vm451 = vcmask 261120
    %v452 = vsel %vm451, %v444, 0
    %v454 = vsel %vm451, %v446, 0
    %v456 = vsel %vm451, %v448, 0
    %v458 = vsel %vm451, %v450, 0
    %v460 = vsel %vm451, %v449, 0
    %462 = vmatprep.subr.mxu0 0.0
    %463 = vmatpush1.msra.mxu0 0.0
    %464 = vmatprep.subr.mxu0 0.0
    %465 = vmatpush1.msra.mxu0 0.0
    %466 = vmatprep.subr.mxu0 0.0
    %467 = vmatpush1.msra.mxu0 0.0
    %468 = vmatprep.subr.mxu0 0.0
    %469 = vmatpush1.msra.mxu0 0.0
    %470 = vmatprep.subr.mxu0 0.0
    %471 = vmatpush1.msra.mxu0 0.0
    %472 = vmatprep.subr.mxu0 0.0
    %473 = vmatpush1.msra.mxu0 0.0
    %474 = vmatprep.subr.mxu0 0.0
    %475 = vmatpush1.msra.mxu0 0.0
    %476 = vmatprep.subr.mxu0 0.0
    %477 = vmatpush1.msra.mxu0 0.0
    %478 = vmatprep.subr.mxu0 0.0
    %479 = vmatpush1.msra.mxu0 0.0
    %480 = vmatprep.subr.mxu0 0.0
    %481 = vmatpush1.msra.mxu0 0.0
    %482 = vmatprep.subr.mxu0 0.0
    %483 = vmatpush1.msra.mxu0 0.0
    %484 = vmatprep.subr.mxu0 0.0
    %485 = vmatpush1.msra.mxu0 0.0
    %486 = vmatprep.subr.mxu0 0.0
    %487 = vmatpush1.msra.mxu0 %v439
    %488 = vmatprep.subr.mxu0 0.0
    %489 = vmatpush1.msra.mxu0 %v438
    %490 = vmatprep.subr.mxu0 0.0
    %491 = vmatpush1.msra.mxu0 %v437
    %492 = vmatprep.subr.mxu0 0.0
    %493 = vmatpush1.msra.mxu0 %v436
    %494 = vmatprep.subr.mxu0 0.0
    %495 = vmatpush2.msra.mxu0 0.0
    %496 = vmatprep.subr.mxu0 0.0
    %497 = vmatpush2.msra.mxu0 0.0
    %498 = vmatprep.subr.mxu0 0.0
    %499 = vmatpush2.msra.mxu0 0.0
    %500 = vmatprep.subr.mxu0 0.0
    %501 = vmatpush2.msra.mxu0 0.0
    %502 = vmatprep.subr.mxu0 0.0
    %503 = vmatpush2.msra.mxu0 0.0
    %504 = vmatprep.subr.mxu0 0.0
    %505 = vmatpush2.msra.mxu0 0.0
    %506 = vmatprep.subr.mxu0 0.0
    %507 = vmatpush2.msra.mxu0 0.0
    %508 = vmatprep.subr.mxu0 0.0
    %509 = vmatpush2.msra.mxu0 0.0
    %510 = vmatprep.subr.mxu0 0.0
    %511 = vmatpush2.msra.mxu0 0.0
    %512 = vmatprep.subr.mxu0 0.0
    %513 = vmatpush2.msra.mxu0 0.0
    %514 = vmatprep.subr.mxu0 0.0
    %515 = vmatpush2.msra.mxu0 0.0
    %516 = vmatprep.subr.mxu0 0.0
    %517 = vmatpush2.msra.mxu0 0.0
    %518 = vmatprep.subr.mxu0 0.0
    %519 = vmatpush2.msra.mxu0 0.0
    %520 = vmatprep.subr.mxu0 0.0
    %521 = vmatpush2.msra.mxu0 0.0
    %522 = vmatprep.subr.mxu0 0.0
    %523 = vmatpush2.msra.mxu0 0.0
    %524 = vmatprep.subr.mxu0 0.0
    %525 = vmatpush2.msra.mxu0 0.0
    %526 = vmatprep.mubr.f32.mxu0 0.0
    %527 = vmatmul.mubr.f32.gmra.mxu0 %v452
    %v528 = vpop.f32.mrf.mxu0
    %v529 = vadd.f32 0.0, %v528
    %v530 = vpop.f32.mrf.mxu0
    %531 = vmatprep.mubr.f32.mxu0 0.0
    %532 = vmatmul.mubr.f32.gmra.mxu0 %v454
    %v533 = vpop.f32.mrf.mxu0
    %v534 = vadd.f32 0.0, %v533
    %v535 = vpop.f32.mrf.mxu0
    %536 = vmatprep.mubr.f32.mxu0 0.0
    %537 = vmatmul.mubr.f32.gmra.mxu0 %v456
    %v538 = vpop.f32.mrf.mxu0
    %v539 = vadd.f32 0.0, %v538
    %v540 = vpop.f32.mrf.mxu0
    %541 = vmatprep.mubr.f32.mxu0 0.0
    %542 = vmatmul.mubr.f32.gmra.mxu0 %v458
    %v543 = vpop.f32.mrf.mxu0
    %v544 = vadd.f32 0.0, %v543
    %v545 = vpop.f32.mrf.mxu0
    %546 = vmatprep.mubr.f32.mxu0 0.0
    %547 = vmatmul.mubr.f32.gmra.mxu0 %v460
    %v548 = vpop.f32.mrf.mxu0
    %v549 = vadd.f32 0.0, %v548
    %v550 = vpop.f32.mrf.mxu0
    %551 = vdwg.mxu0
    %v552 = vsel %vm451, %v429, 0
    %v554 = vsel %vm451, %v420, 0
    %v556 = vsel %vm451, %v422, 0
    %v558 = vsel %vm451, %v424, 0
    %v560 = vsel %vm451, %v430, 0
    %562 = vmatprep.subr.mxu0 0.0
    %563 = vmatpush1.msra.mxu0 0.0
    %564 = vmatprep.subr.mxu0 0.0
    %565 = vmatpush1.msra.mxu0 0.0
    %566 = vmatprep.subr.mxu0 0.0
    %567 = vmatpush1.msra.mxu0 0.0
    %568 = vmatprep.subr.mxu0 0.0
    %569 = vmatpush1.msra.mxu0 0.0
    %570 = vmatprep.subr.mxu0 0.0
    %571 = vmatpush1.msra.mxu0 0.0
    %572 = vmatprep.subr.mxu0 0.0
    %573 = vmatpush1.msra.mxu0 0.0
    %574 = vmatprep.subr.mxu0 0.0
    %575 = vmatpush1.msra.mxu0 0.0
    %576 = vmatprep.subr.mxu0 0.0
    %577 = vmatpush1.msra.mxu0 0.0
    %578 = vmatprep.subr.mxu0 0.0
    %579 = vmatpush1.msra.mxu0 0.0
    %580 = vmatprep.subr.mxu0 0.0
    %581 = vmatpush1.msra.mxu0 0.0
    %582 = vmatprep.subr.mxu0 0.0
    %583 = vmatpush1.msra.mxu0 0.0
    %584 = vmatprep.subr.mxu0 0.0
    %585 = vmatpush1.msra.mxu0 0.0
    %586 = vmatprep.subr.mxu0 0.0
    %587 = vmatpush1.msra.mxu0 %v434
    %588 = vmatprep.subr.mxu0 0.0
    %589 = vmatpush1.msra.mxu0 %v433
    %590 = vmatprep.subr.mxu0 0.0
    %591 = vmatpush1.msra.mxu0 %v432
    %592 = vmatprep.subr.mxu0 0.0
    %593 = vmatpush1.msra.mxu0 %v431
    %594 = vmatprep.subr.mxu0 0.0
    %595 = vmatpush2.msra.mxu0 0.0
    %596 = vmatprep.subr.mxu0 0.0
    %597 = vmatpush2.msra.mxu0 0.0
    %598 = vmatprep.subr.mxu0 0.0
    %599 = vmatpush2.msra.mxu0 0.0
    %600 = vmatprep.subr.mxu0 0.0
    %601 = vmatpush2.msra.mxu0 0.0
    %602 = vmatprep.subr.mxu0 0.0
    %603 = vmatpush2.msra.mxu0 0.0
    %604 = vmatprep.subr.mxu0 0.0
    %605 = vmatpush2.msra.mxu0 0.0
    %606 = vmatprep.subr.mxu0 0.0
    %607 = vmatpush2.msra.mxu0 0.0
    %608 = vmatprep.subr.mxu0 0.0
    %609 = vmatpush2.msra.mxu0 0.0
    %610 = vmatprep.subr.mxu0 0.0
    %611 = vmatpush2.msra.mxu0 0.0
    %612 = vmatprep.subr.mxu0 0.0
    %613 = vmatpush2.msra.mxu0 0.0
    %614 = vmatprep.subr.mxu0 0.0
    %615 = vmatpush2.msra.mxu0 0.0
    %616 = vmatprep.subr.mxu0 0.0
    %617 = vmatpush2.msra.mxu0 0.0
    %618 = vmatprep.subr.mxu0 0.0
    %619 = vmatpush2.msra.mxu0 0.0
    %620 = vmatprep.subr.mxu0 0.0
    %621 = vmatpush2.msra.mxu0 0.0
    %622 = vmatprep.subr.mxu0 0.0
    %623 = vmatpush2.msra.mxu0 0.0
    %624 = vmatprep.subr.mxu0 0.0
    %625 = vmatpush2.msra.mxu0 0.0
    %626 = vmatprep.mubr.f32.mxu0 0.0
    %627 = vmatmul.mubr.f32.gmra.mxu0 %v552
    %v628 = vpop.f32.mrf.mxu0
    %v629 = vadd.f32 %v529, %v628
    %v630 = vpop.f32.mrf.mxu0
    %631 = vmatprep.mubr.f32.mxu0 0.0
    %632 = vmatmul.mubr.f32.gmra.mxu0 %v554
    %v633 = vpop.f32.mrf.mxu0
    %v634 = vadd.f32 %v534, %v633
    %v635 = vpop.f32.mrf.mxu0
    %636 = vmatprep.mubr.f32.mxu0 0.0
    %637 = vmatmul.mubr.f32.gmra.mxu0 %v556
    %v638 = vpop.f32.mrf.mxu0
    %v639 = vadd.f32 %v539, %v638
    %v640 = vpop.f32.mrf.mxu0
    %641 = vmatprep.mubr.f32.mxu0 0.0
    %642 = vmatmul.mubr.f32.gmra.mxu0 %v558
    %v643 = vpop.f32.mrf.mxu0
    %v644 = vadd.f32 %v544, %v643
    %v645 = vpop.f32.mrf.mxu0
    %646 = vmatprep.mubr.f32.mxu0 0.0
    %647 = vmatmul.mubr.f32.gmra.mxu0 %v560
    %v648 = vpop.f32.mrf.mxu0
    %v649 = vadd.f32 %v549, %v648
    %v650 = vpop.f32.mrf.mxu0
    %651 = vdwg.mxu0
    %s652 = scalar_lea.vmem %s3, 64
    %v653 = vld [vmem:[%s652] sm:$0xff]
    %v654 = vld [vmem:[%s652 + $0x8] sm:$0xff]
    %v655 = vld [vmem:[%s652 + $0x10] sm:$0xff]
    %v656 = vld [vmem:[%s652 + $0x18] sm:$0xff]
    %v657 = vrot.slane %v429, 4
    %v658 = vrot.slane %v420, 4
    %v659 = vsel %vm79, %v657, %v658
    %v660 = vrot.slane %v422, 4
    %v661 = vsel %vm79, %v658, %v660
    %v662 = vrot.slane %v424, 4
    %v663 = vsel %vm79, %v660, %v662
    %v664 = vrot.slane %v430, 4
    %v665 = vsel %vm79, %v662, %v664
    %v666 = vsel %vm451, %v659, 0
    %v668 = vsel %vm451, %v661, 0
    %v670 = vsel %vm451, %v663, 0
    %v672 = vsel %vm451, %v665, 0
    %v674 = vsel %vm451, %v664, 0
    %676 = vmatprep.subr.mxu0 0.0
    %677 = vmatpush1.msra.mxu0 0.0
    %678 = vmatprep.subr.mxu0 0.0
    %679 = vmatpush1.msra.mxu0 0.0
    %680 = vmatprep.subr.mxu0 0.0
    %681 = vmatpush1.msra.mxu0 0.0
    %682 = vmatprep.subr.mxu0 0.0
    %683 = vmatpush1.msra.mxu0 0.0
    %684 = vmatprep.subr.mxu0 0.0
    %685 = vmatpush1.msra.mxu0 0.0
    %686 = vmatprep.subr.mxu0 0.0
    %687 = vmatpush1.msra.mxu0 0.0
    %688 = vmatprep.subr.mxu0 0.0
    %689 = vmatpush1.msra.mxu0 0.0
    %690 = vmatprep.subr.mxu0 0.0
    %691 = vmatpush1.msra.mxu0 0.0
    %692 = vmatprep.subr.mxu0 0.0
    %693 = vmatpush1.msra.mxu0 0.0
    %694 = vmatprep.subr.mxu0 0.0
    %695 = vmatpush1.msra.mxu0 0.0
    %696 = vmatprep.subr.mxu0 0.0
    %697 = vmatpush1.msra.mxu0 0.0
    %698 = vmatprep.subr.mxu0 0.0
    %699 = vmatpush1.msra.mxu0 0.0
    %700 = vmatprep.subr.mxu0 0.0
    %701 = vmatpush1.msra.mxu0 %v656
    %702 = vmatprep.subr.mxu0 0.0
    %703 = vmatpush1.msra.mxu0 %v655
    %704 = vmatprep.subr.mxu0 0.0
    %705 = vmatpush1.msra.mxu0 %v654
    %706 = vmatprep.subr.mxu0 0.0
    %707 = vmatpush1.msra.mxu0 %v653
    %708 = vmatprep.subr.mxu0 0.0
    %709 = vmatpush2.msra.mxu0 0.0
    %710 = vmatprep.subr.mxu0 0.0
    %711 = vmatpush2.msra.mxu0 0.0
    %712 = vmatprep.subr.mxu0 0.0
    %713 = vmatpush2.msra.mxu0 0.0
    %714 = vmatprep.subr.mxu0 0.0
    %715 = vmatpush2.msra.mxu0 0.0
    %716 = vmatprep.subr.mxu0 0.0
    %717 = vmatpush2.msra.mxu0 0.0
    %718 = vmatprep.subr.mxu0 0.0
    %719 = vmatpush2.msra.mxu0 0.0
    %720 = vmatprep.subr.mxu0 0.0
    %721 = vmatpush2.msra.mxu0 0.0
    %722 = vmatprep.subr.mxu0 0.0
    %723 = vmatpush2.msra.mxu0 0.0
    %724 = vmatprep.subr.mxu0 0.0
    %725 = vmatpush2.msra.mxu0 0.0
    %726 = vmatprep.subr.mxu0 0.0
    %727 = vmatpush2.msra.mxu0 0.0
    %728 = vmatprep.subr.mxu0 0.0
    %729 = vmatpush2.msra.mxu0 0.0
    %730 = vmatprep.subr.mxu0 0.0
    %731 = vmatpush2.msra.mxu0 0.0
    %732 = vmatprep.subr.mxu0 0.0
    %733 = vmatpush2.msra.mxu0 0.0
    %734 = vmatprep.subr.mxu0 0.0
    %735 = vmatpush2.msra.mxu0 0.0
    %736 = vmatprep.subr.mxu0 0.0
    %737 = vmatpush2.msra.mxu0 0.0
    %738 = vmatprep.subr.mxu0 0.0
    %739 = vmatpush2.msra.mxu0 0.0
    %740 = vmatprep.mubr.f32.mxu0 0.0
    %741 = vmatmul.mubr.f32.gmra.mxu0 %v666
    %v742 = vpop.f32.mrf.mxu0
    %v743 = vadd.f32 0.0, %v742
    %v744 = vpop.f32.mrf.mxu0
    %745 = vmatprep.mubr.f32.mxu0 0.0
    %746 = vmatmul.mubr.f32.gmra.mxu0 %v668
    %v747 = vpop.f32.mrf.mxu0
    %v748 = vadd.f32 0.0, %v747
    %v749 = vpop.f32.mrf.mxu0
    %750 = vmatprep.mubr.f32.mxu0 0.0
    %751 = vmatmul.mubr.f32.gmra.mxu0 %v670
    %v752 = vpop.f32.mrf.mxu0
    %v753 = vadd.f32 0.0, %v752
    %v754 = vpop.f32.mrf.mxu0
    %755 = vmatprep.mubr.f32.mxu0 0.0
    %756 = vmatmul.mubr.f32.gmra.mxu0 %v672
    %v757 = vpop.f32.mrf.mxu0
    %v758 = vadd.f32 0.0, %v757
    %v759 = vpop.f32.mrf.mxu0
    %760 = vmatprep.mubr.f32.mxu0 0.0
    %761 = vmatmul.mubr.f32.gmra.mxu0 %v674
    %v762 = vpop.f32.mrf.mxu0
    %v763 = vadd.f32 0.0, %v762
    %v764 = vpop.f32.mrf.mxu0
    %765 = vdwg.mxu0
    %v766 = vadd.f32 %v629, %v743
    %v767 = vadd.f32 %v634, %v748
    %v768 = vadd.f32 %v639, %v753
    %v769 = vadd.f32 %v644, %v758
    %v770 = vadd.f32 %v649, %v763
    %v771 = vld [vmem:[%s4] sm:$0x1]
    %v773 = vlaneseq
    %v774 = vshrl.u32 %v773, 7
    %v775 = vsub.s32 0, %v774
    %v776 = vrot.slane %v771, %v775
    %v778 = vadd.f32 %v766, %v776
    %v779 = vadd.f32 %v767, %v776
    %v780 = vadd.f32 %v768, %v776
    %v781 = vadd.f32 %v769, %v776
    %v782 = vadd.f32 %v770, %v776
    %v783 = vmax.f32 %v778, 0.0
    %v784 = vmax.f32 %v779, 0.0
    %v785 = vmax.f32 %v780, 0.0
    %v786 = vmax.f32 %v781, 0.0
    %v787 = vmax.f32 %v782, 0.0
    %v788 = vld [vmem:[%s5] sm:$0xff]
    %v789 = vld [vmem:[%s5 + $0x8] sm:$0xff]
    %v790 = vld [vmem:[%s5 + $0x10] sm:$0xff]
    %v791 = vld [vmem:[%s5 + $0x18] sm:$0xff]
    %v792 = vld [vmem:[%s5 + $0x20] sm:$0xff]
    %v793 = vld [vmem:[%s5 + $0x28] sm:$0xff]
    %v794 = vld [vmem:[%s5 + $0x30] sm:$0xff]
    %v795 = vld [vmem:[%s5 + $0x38] sm:$0xff]
    %s796 = scalar_lea.vmem %s5, 64
    %v797 = vld [vmem:[%s796] sm:$0xff]
    %v798 = vld [vmem:[%s796 + $0x8] sm:$0xff]
    %v799 = vld [vmem:[%s796 + $0x10] sm:$0xff]
    %v800 = vld [vmem:[%s796 + $0x18] sm:$0xff]
    %v801 = vld [vmem:[%s796 + $0x20] sm:$0xff]
    %v802 = vld [vmem:[%s796 + $0x28] sm:$0xff]
    %v803 = vld [vmem:[%s796 + $0x30] sm:$0xff]
    %v804 = vld [vmem:[%s796 + $0x38] sm:$0xff]
    %v806 = vrot.slane %v783, 2
    %vm807 = vcmask 523264
    %v808 = vsel %vm807, %v806, 0
    %810 = vmatprep.subr.mxu0 0.0
    %811 = vmatpush1.msra.mxu0 0.0
    %812 = vmatprep.subr.mxu0 0.0
    %813 = vmatpush1.msra.mxu0 0.0
    %814 = vmatprep.subr.mxu0 0.0
    %815 = vmatpush1.msra.mxu0 0.0
    %816 = vmatprep.subr.mxu0 0.0
    %817 = vmatpush1.msra.mxu0 0.0
    %818 = vmatprep.subr.mxu0 0.0
    %819 = vmatpush1.msra.mxu0 0.0
    %820 = vmatprep.subr.mxu0 0.0
    %821 = vmatpush1.msra.mxu0 0.0
    %822 = vmatprep.subr.mxu0 0.0
    %823 = vmatpush1.msra.mxu0 0.0
    %824 = vmatprep.subr.mxu0 0.0
    %825 = vmatpush1.msra.mxu0 0.0
    %826 = vmatprep.subr.mxu0 0.0
    %827 = vmatpush1.msra.mxu0 %v804
    %828 = vmatprep.subr.mxu0 0.0
    %829 = vmatpush1.msra.mxu0 %v803
    %830 = vmatprep.subr.mxu0 0.0
    %831 = vmatpush1.msra.mxu0 %v802
    %832 = vmatprep.subr.mxu0 0.0
    %833 = vmatpush1.msra.mxu0 %v801
    %834 = vmatprep.subr.mxu0 0.0
    %835 = vmatpush1.msra.mxu0 %v800
    %836 = vmatprep.subr.mxu0 0.0
    %837 = vmatpush1.msra.mxu0 %v799
    %838 = vmatprep.subr.mxu0 0.0
    %839 = vmatpush1.msra.mxu0 %v798
    %840 = vmatprep.subr.mxu0 0.0
    %841 = vmatpush1.msra.mxu0 %v797
    %842 = vmatprep.subr.mxu0 0.0
    %843 = vmatpush2.msra.mxu0 0.0
    %844 = vmatprep.subr.mxu0 0.0
    %845 = vmatpush2.msra.mxu0 0.0
    %846 = vmatprep.subr.mxu0 0.0
    %847 = vmatpush2.msra.mxu0 0.0
    %848 = vmatprep.subr.mxu0 0.0
    %849 = vmatpush2.msra.mxu0 0.0
    %850 = vmatprep.subr.mxu0 0.0
    %851 = vmatpush2.msra.mxu0 0.0
    %852 = vmatprep.subr.mxu0 0.0
    %853 = vmatpush2.msra.mxu0 0.0
    %854 = vmatprep.subr.mxu0 0.0
    %855 = vmatpush2.msra.mxu0 0.0
    %856 = vmatprep.subr.mxu0 0.0
    %857 = vmatpush2.msra.mxu0 0.0
    %858 = vmatprep.subr.mxu0 0.0
    %859 = vmatpush2.msra.mxu0 0.0
    %860 = vmatprep.subr.mxu0 0.0
    %861 = vmatpush2.msra.mxu0 0.0
    %862 = vmatprep.subr.mxu0 0.0
    %863 = vmatpush2.msra.mxu0 0.0
    %864 = vmatprep.subr.mxu0 0.0
    %865 = vmatpush2.msra.mxu0 0.0
    %866 = vmatprep.subr.mxu0 0.0
    %867 = vmatpush2.msra.mxu0 0.0
    %868 = vmatprep.subr.mxu0 0.0
    %869 = vmatpush2.msra.mxu0 0.0
    %870 = vmatprep.subr.mxu0 0.0
    %871 = vmatpush2.msra.mxu0 0.0
    %872 = vmatprep.subr.mxu0 0.0
    %873 = vmatpush2.msra.mxu0 0.0
    %874 = vmatprep.mubr.f32.mxu0 0.0
    %875 = vmatmul.mubr.f32.gmra.mxu0 %v808
    %v876 = vpop.f32.mrf.mxu0
    %v877 = vadd.f32 0.0, %v876
    %v878 = vpop.f32.mrf.mxu0
    %879 = vdwg.mxu0
    %s880 = scalar_lea.vmem %s5, 128
    %v881 = vld [vmem:[%s880] sm:$0xff]
    %v882 = vld [vmem:[%s880 + $0x8] sm:$0xff]
    %v883 = vld [vmem:[%s880 + $0x10] sm:$0xff]
    %v884 = vld [vmem:[%s880 + $0x18] sm:$0xff]
    %v885 = vld [vmem:[%s880 + $0x20] sm:$0xff]
    %v886 = vld [vmem:[%s880 + $0x28] sm:$0xff]
    %v887 = vld [vmem:[%s880 + $0x30] sm:$0xff]
    %v888 = vld [vmem:[%s880 + $0x38] sm:$0xff]
    %s889 = scalar_lea.vmem %s5, 192
    %v890 = vld [vmem:[%s889] sm:$0xff]
    %v891 = vld [vmem:[%s889 + $0x8] sm:$0xff]
    %v892 = vld [vmem:[%s889 + $0x10] sm:$0xff]
    %v893 = vld [vmem:[%s889 + $0x18] sm:$0xff]
    %v894 = vld [vmem:[%s889 + $0x20] sm:$0xff]
    %v895 = vld [vmem:[%s889 + $0x28] sm:$0xff]
    %v896 = vld [vmem:[%s889 + $0x30] sm:$0xff]
    %v897 = vld [vmem:[%s889 + $0x38] sm:$0xff]
    %v898 = vrot.slane %v783, 6
    %v899 = vsel %vm807, %v898, 0
    %901 = vmatprep.subr.mxu0 0.0
    %902 = vmatpush1.msra.mxu0 0.0
    %903 = vmatprep.subr.mxu0 0.0
    %904 = vmatpush1.msra.mxu0 0.0
    %905 = vmatprep.subr.mxu0 0.0
    %906 = vmatpush1.msra.mxu0 0.0
    %907 = vmatprep.subr.mxu0 0.0
    %908 = vmatpush1.msra.mxu0 0.0
    %909 = vmatprep.subr.mxu0 0.0
    %910 = vmatpush1.msra.mxu0 0.0
    %911 = vmatprep.subr.mxu0 0.0
    %912 = vmatpush1.msra.mxu0 0.0
    %913 = vmatprep.subr.mxu0 0.0
    %914 = vmatpush1.msra.mxu0 0.0
    %915 = vmatprep.subr.mxu0 0.0
    %916 = vmatpush1.msra.mxu0 0.0
    %917 = vmatprep.subr.mxu0 0.0
    %918 = vmatpush1.msra.mxu0 %v897
    %919 = vmatprep.subr.mxu0 0.0
    %920 = vmatpush1.msra.mxu0 %v896
    %921 = vmatprep.subr.mxu0 0.0
    %922 = vmatpush1.msra.mxu0 %v895
    %923 = vmatprep.subr.mxu0 0.0
    %924 = vmatpush1.msra.mxu0 %v894
    %925 = vmatprep.subr.mxu0 0.0
    %926 = vmatpush1.msra.mxu0 %v893
    %927 = vmatprep.subr.mxu0 0.0
    %928 = vmatpush1.msra.mxu0 %v892
    %929 = vmatprep.subr.mxu0 0.0
    %930 = vmatpush1.msra.mxu0 %v891
    %931 = vmatprep.subr.mxu0 0.0
    %932 = vmatpush1.msra.mxu0 %v890
    %933 = vmatprep.subr.mxu0 0.0
    %934 = vmatpush2.msra.mxu0 0.0
    %935 = vmatprep.subr.mxu0 0.0
    %936 = vmatpush2.msra.mxu0 0.0
    %937 = vmatprep.subr.mxu0 0.0
    %938 = vmatpush2.msra.mxu0 0.0
    %939 = vmatprep.subr.mxu0 0.0
    %940 = vmatpush2.msra.mxu0 0.0
    %941 = vmatprep.subr.mxu0 0.0
    %942 = vmatpush2.msra.mxu0 0.0
    %943 = vmatprep.subr.mxu0 0.0
    %944 = vmatpush2.msra.mxu0 0.0
    %945 = vmatprep.subr.mxu0 0.0
    %946 = vmatpush2.msra.mxu0 0.0
    %947 = vmatprep.subr.mxu0 0.0
    %948 = vmatpush2.msra.mxu0 0.0
    %949 = vmatprep.subr.mxu0 0.0
    %950 = vmatpush2.msra.mxu0 0.0
    %951 = vmatprep.subr.mxu0 0.0
    %952 = vmatpush2.msra.mxu0 0.0
    %953 = vmatprep.subr.mxu0 0.0
    %954 = vmatpush2.msra.mxu0 0.0
    %955 = vmatprep.subr.mxu0 0.0
    %956 = vmatpush2.msra.mxu0 0.0
    %957 = vmatprep.subr.mxu0 0.0
    %958 = vmatpush2.msra.mxu0 0.0
    %959 = vmatprep.subr.mxu0 0.0
    %960 = vmatpush2.msra.mxu0 0.0
    %961 = vmatprep.subr.mxu0 0.0
    %962 = vmatpush2.msra.mxu0 0.0
    %963 = vmatprep.subr.mxu0 0.0
    %964 = vmatpush2.msra.mxu0 0.0
    %965 = vmatprep.mubr.f32.mxu0 0.0
    %966 = vmatmul.mubr.f32.gmra.mxu0 %v899
    %v967 = vpop.f32.mrf.mxu0
    %v968 = vadd.f32 0.0, %v967
    %v969 = vpop.f32.mrf.mxu0
    %970 = vdwg.mxu0
    %s971 = scalar_lea.vmem %s5, 256
    %v972 = vld [vmem:[%s971] sm:$0xff]
    %v973 = vld [vmem:[%s971 + $0x8] sm:$0xff]
    %v974 = vld [vmem:[%s971 + $0x10] sm:$0xff]
    %v975 = vld [vmem:[%s971 + $0x18] sm:$0xff]
    %v976 = vld [vmem:[%s971 + $0x20] sm:$0xff]
    %v977 = vld [vmem:[%s971 + $0x28] sm:$0xff]
    %v978 = vld [vmem:[%s971 + $0x30] sm:$0xff]
    %v979 = vld [vmem:[%s971 + $0x38] sm:$0xff]
    %s980 = scalar_lea.vmem %s5, 320
    %v981 = vld [vmem:[%s980] sm:$0xff]
    %v982 = vld [vmem:[%s980 + $0x8] sm:$0xff]
    %v983 = vld [vmem:[%s980 + $0x10] sm:$0xff]
    %v984 = vld [vmem:[%s980 + $0x18] sm:$0xff]
    %v985 = vld [vmem:[%s980 + $0x20] sm:$0xff]
    %v986 = vld [vmem:[%s980 + $0x28] sm:$0xff]
    %v987 = vld [vmem:[%s980 + $0x30] sm:$0xff]
    %v988 = vld [vmem:[%s980 + $0x38] sm:$0xff]
    %v990 = vrot.slane %v784, 2
    %v991 = vsel %vm807, %v990, 0
    %993 = vmatprep.subr.mxu0 0.0
    %994 = vmatpush1.msra.mxu0 0.0
    %995 = vmatprep.subr.mxu0 0.0
    %996 = vmatpush1.msra.mxu0 0.0
    %997 = vmatprep.subr.mxu0 0.0
    %998 = vmatpush1.msra.mxu0 0.0
    %999 = vmatprep.subr.mxu0 0.0
    %1000 = vmatpush1.msra.mxu0 0.0
    %1001 = vmatprep.subr.mxu0 0.0
    %1002 = vmatpush1.msra.mxu0 0.0
    %1003 = vmatprep.subr.mxu0 0.0
    %1004 = vmatpush1.msra.mxu0 0.0
    %1005 = vmatprep.subr.mxu0 0.0
    %1006 = vmatpush1.msra.mxu0 0.0
    %1007 = vmatprep.subr.mxu0 0.0
    %1008 = vmatpush1.msra.mxu0 0.0
    %1009 = vmatprep.subr.mxu0 0.0
    %1010 = vmatpush1.msra.mxu0 %v988
    %1011 = vmatprep.subr.mxu0 0.0
    %1012 = vmatpush1.msra.mxu0 %v987
    %1013 = vmatprep.subr.mxu0 0.0
    %1014 = vmatpush1.msra.mxu0 %v986
    %1015 = vmatprep.subr.mxu0 0.0
    %1016 = vmatpush1.msra.mxu0 %v985
    %1017 = vmatprep.subr.mxu0 0.0
    %1018 = vmatpush1.msra.mxu0 %v984
    %1019 = vmatprep.subr.mxu0 0.0
    %1020 = vmatpush1.msra.mxu0 %v983
    %1021 = vmatprep.subr.mxu0 0.0
    %1022 = vmatpush1.msra.mxu0 %v982
    %1023 = vmatprep.subr.mxu0 0.0
    %1024 = vmatpush1.msra.mxu0 %v981
    %1025 = vmatprep.subr.mxu0 0.0
    %1026 = vmatpush2.msra.mxu0 0.0
    %1027 = vmatprep.subr.mxu0 0.0
    %1028 = vmatpush2.msra.mxu0 0.0
    %1029 = vmatprep.subr.mxu0 0.0
    %1030 = vmatpush2.msra.mxu0 0.0
    %1031 = vmatprep.subr.mxu0 0.0
    %1032 = vmatpush2.msra.mxu0 0.0
    %1033 = vmatprep.subr.mxu0 0.0
    %1034 = vmatpush2.msra.mxu0 0.0
    %1035 = vmatprep.subr.mxu0 0.0
    %1036 = vmatpush2.msra.mxu0 0.0
    %1037 = vmatprep.subr.mxu0 0.0
    %1038 = vmatpush2.msra.mxu0 0.0
    %1039 = vmatprep.subr.mxu0 0.0
    %1040 = vmatpush2.msra.mxu0 0.0
    %1041 = vmatprep.subr.mxu0 0.0
    %1042 = vmatpush2.msra.mxu0 0.0
    %1043 = vmatprep.subr.mxu0 0.0
    %1044 = vmatpush2.msra.mxu0 0.0
    %1045 = vmatprep.subr.mxu0 0.0
    %1046 = vmatpush2.msra.mxu0 0.0
    %1047 = vmatprep.subr.mxu0 0.0
    %1048 = vmatpush2.msra.mxu0 0.0
    %1049 = vmatprep.subr.mxu0 0.0
    %1050 = vmatpush2.msra.mxu0 0.0
    %1051 = vmatprep.subr.mxu0 0.0
    %1052 = vmatpush2.msra.mxu0 0.0
    %1053 = vmatprep.subr.mxu0 0.0
    %1054 = vmatpush2.msra.mxu0 0.0
    %1055 = vmatprep.subr.mxu0 0.0
    %1056 = vmatpush2.msra.mxu0 0.0
    %1057 = vmatprep.mubr.f32.mxu0 0.0
    %1058 = vmatmul.mubr.f32.gmra.mxu0 %v991
    %v1059 = vpop.f32.mrf.mxu0
    %v1060 = vadd.f32 0.0, %v1059
    %v1061 = vpop.f32.mrf.mxu0
    %1062 = vdwg.mxu0
    %s1063 = scalar_lea.vmem %s5, 384
    %v1064 = vld [vmem:[%s1063] sm:$0xff]
    %v1065 = vld [vmem:[%s1063 + $0x8] sm:$0xff]
    %v1066 = vld [vmem:[%s1063 + $0x10] sm:$0xff]
    %v1067 = vld [vmem:[%s1063 + $0x18] sm:$0xff]
    %v1068 = vld [vmem:[%s1063 + $0x20] sm:$0xff]
    %v1069 = vld [vmem:[%s1063 + $0x28] sm:$0xff]
    %v1070 = vld [vmem:[%s1063 + $0x30] sm:$0xff]
    %v1071 = vld [vmem:[%s1063 + $0x38] sm:$0xff]
    %s1072 = scalar_lea.vmem %s5, 448
    %v1073 = vld [vmem:[%s1072] sm:$0xff]
    %v1074 = vld [vmem:[%s1072 + $0x8] sm:$0xff]
    %v1075 = vld [vmem:[%s1072 + $0x10] sm:$0xff]
    %v1076 = vld [vmem:[%s1072 + $0x18] sm:$0xff]
    %v1077 = vld [vmem:[%s1072 + $0x20] sm:$0xff]
    %v1078 = vld [vmem:[%s1072 + $0x28] sm:$0xff]
    %v1079 = vld [vmem:[%s1072 + $0x30] sm:$0xff]
    %v1080 = vld [vmem:[%s1072 + $0x38] sm:$0xff]
    %v1081 = vrot.slane %v784, 6
    %v1082 = vsel %vm807, %v1081, 0
    %1084 = vmatprep.subr.mxu0 0.0
    %1085 = vmatpush1.msra.mxu0 0.0
    %1086 = vmatprep.subr.mxu0 0.0
    %1087 = vmatpush1.msra.mxu0 0.0
    %1088 = vmatprep.subr.mxu0 0.0
    %1089 = vmatpush1.msra.mxu0 0.0
    %1090 = vmatprep.subr.mxu0 0.0
    %1091 = vmatpush1.msra.mxu0 0.0
    %1092 = vmatprep.subr.mxu0 0.0
    %1093 = vmatpush1.msra.mxu0 0.0
    %1094 = vmatprep.subr.mxu0 0.0
    %1095 = vmatpush1.msra.mxu0 0.0
    %1096 = vmatprep.subr.mxu0 0.0
    %1097 = vmatpush1.msra.mxu0 0.0
    %1098 = vmatprep.subr.mxu0 0.0
    %1099 = vmatpush1.msra.mxu0 0.0
    %1100 = vmatprep.subr.mxu0 0.0
    %1101 = vmatpush1.msra.mxu0 %v1080
    %1102 = vmatprep.subr.mxu0 0.0
    %1103 = vmatpush1.msra.mxu0 %v1079
    %1104 = vmatprep.subr.mxu0 0.0
    %1105 = vmatpush1.msra.mxu0 %v1078
    %1106 = vmatprep.subr.mxu0 0.0
    %1107 = vmatpush1.msra.mxu0 %v1077
    %1108 = vmatprep.subr.mxu0 0.0
    %1109 = vmatpush1.msra.mxu0 %v1076
    %1110 = vmatprep.subr.mxu0 0.0
    %1111 = vmatpush1.msra.mxu0 %v1075
    %1112 = vmatprep.subr.mxu0 0.0
    %1113 = vmatpush1.msra.mxu0 %v1074
    %1114 = vmatprep.subr.mxu0 0.0
    %1115 = vmatpush1.msra.mxu0 %v1073
    %1116 = vmatprep.subr.mxu0 0.0
    %1117 = vmatpush2.msra.mxu0 0.0
    %1118 = vmatprep.subr.mxu0 0.0
    %1119 = vmatpush2.msra.mxu0 0.0
    %1120 = vmatprep.subr.mxu0 0.0
    %1121 = vmatpush2.msra.mxu0 0.0
    %1122 = vmatprep.subr.mxu0 0.0
    %1123 = vmatpush2.msra.mxu0 0.0
    %1124 = vmatprep.subr.mxu0 0.0
    %1125 = vmatpush2.msra.mxu0 0.0
    %1126 = vmatprep.subr.mxu0 0.0
    %1127 = vmatpush2.msra.mxu0 0.0
    %1128 = vmatprep.subr.mxu0 0.0
    %1129 = vmatpush2.msra.mxu0 0.0
    %1130 = vmatprep.subr.mxu0 0.0
    %1131 = vmatpush2.msra.mxu0 0.0
    %1132 = vmatprep.subr.mxu0 0.0
    %1133 = vmatpush2.msra.mxu0 0.0
    %1134 = vmatprep.subr.mxu0 0.0
    %1135 = vmatpush2.msra.mxu0 0.0
    %1136 = vmatprep.subr.mxu0 0.0
    %1137 = vmatpush2.msra.mxu0 0.0
    %1138 = vmatprep.subr.mxu0 0.0
    %1139 = vmatpush2.msra.mxu0 0.0
    %1140 = vmatprep.subr.mxu0 0.0
    %1141 = vmatpush2.msra.mxu0 0.0
    %1142 = vmatprep.subr.mxu0 0.0
    %1143 = vmatpush2.msra.mxu0 0.0
    %1144 = vmatprep.subr.mxu0 0.0
    %1145 = vmatpush2.msra.mxu0 0.0
    %1146 = vmatprep.subr.mxu0 0.0
    %1147 = vmatpush2.msra.mxu0 0.0
    %1148 = vmatprep.mubr.f32.mxu0 0.0
    %1149 = vmatmul.mubr.f32.gmra.mxu0 %v1082
    %v1150 = vpop.f32.mrf.mxu0
    %v1151 = vadd.f32 0.0, %v1150
    %v1152 = vpop.f32.mrf.mxu0
    %1153 = vdwg.mxu0
    %s1154 = scalar_lea.vmem %s5, 512
    %v1155 = vld [vmem:[%s1154] sm:$0xff]
    %v1156 = vld [vmem:[%s1154 + $0x8] sm:$0xff]
    %v1157 = vld [vmem:[%s1154 + $0x10] sm:$0xff]
    %v1158 = vld [vmem:[%s1154 + $0x18] sm:$0xff]
    %v1159 = vld [vmem:[%s1154 + $0x20] sm:$0xff]
    %v1160 = vld [vmem:[%s1154 + $0x28] sm:$0xff]
    %v1161 = vld [vmem:[%s1154 + $0x30] sm:$0xff]
    %v1162 = vld [vmem:[%s1154 + $0x38] sm:$0xff]
    %s1163 = scalar_lea.vmem %s5, 576
    %v1164 = vld [vmem:[%s1163] sm:$0xff]
    %v1165 = vld [vmem:[%s1163 + $0x8] sm:$0xff]
    %v1166 = vld [vmem:[%s1163 + $0x10] sm:$0xff]
    %v1167 = vld [vmem:[%s1163 + $0x18] sm:$0xff]
    %v1168 = vld [vmem:[%s1163 + $0x20] sm:$0xff]
    %v1169 = vld [vmem:[%s1163 + $0x28] sm:$0xff]
    %v1170 = vld [vmem:[%s1163 + $0x30] sm:$0xff]
    %v1171 = vld [vmem:[%s1163 + $0x38] sm:$0xff]
    %v1173 = vrot.slane %v785, 2
    %v1174 = vsel %vm807, %v1173, 0
    %1176 = vmatprep.subr.mxu0 0.0
    %1177 = vmatpush1.msra.mxu0 0.0
    %1178 = vmatprep.subr.mxu0 0.0
    %1179 = vmatpush1.msra.mxu0 0.0
    %1180 = vmatprep.subr.mxu0 0.0
    %1181 = vmatpush1.msra.mxu0 0.0
    %1182 = vmatprep.subr.mxu0 0.0
    %1183 = vmatpush1.msra.mxu0 0.0
    %1184 = vmatprep.subr.mxu0 0.0
    %1185 = vmatpush1.msra.mxu0 0.0
    %1186 = vmatprep.subr.mxu0 0.0
    %1187 = vmatpush1.msra.mxu0 0.0
    %1188 = vmatprep.subr.mxu0 0.0
    %1189 = vmatpush1.msra.mxu0 0.0
    %1190 = vmatprep.subr.mxu0 0.0
    %1191 = vmatpush1.msra.mxu0 0.0
    %1192 = vmatprep.subr.mxu0 0.0
    %1193 = vmatpush1.msra.mxu0 %v1171
    %1194 = vmatprep.subr.mxu0 0.0
    %1195 = vmatpush1.msra.mxu0 %v1170
    %1196 = vmatprep.subr.mxu0 0.0
    %1197 = vmatpush1.msra.mxu0 %v1169
    %1198 = vmatprep.subr.mxu0 0.0
    %1199 = vmatpush1.msra.mxu0 %v1168
    %1200 = vmatprep.subr.mxu0 0.0
    %1201 = vmatpush1.msra.mxu0 %v1167
    %1202 = vmatprep.subr.mxu0 0.0
    %1203 = vmatpush1.msra.mxu0 %v1166
    %1204 = vmatprep.subr.mxu0 0.0
    %1205 = vmatpush1.msra.mxu0 %v1165
    %1206 = vmatprep.subr.mxu0 0.0
    %1207 = vmatpush1.msra.mxu0 %v1164
    %1208 = vmatprep.subr.mxu0 0.0
    %1209 = vmatpush2.msra.mxu0 0.0
    %1210 = vmatprep.subr.mxu0 0.0
    %1211 = vmatpush2.msra.mxu0 0.0
    %1212 = vmatprep.subr.mxu0 0.0
    %1213 = vmatpush2.msra.mxu0 0.0
    %1214 = vmatprep.subr.mxu0 0.0
    %1215 = vmatpush2.msra.mxu0 0.0
    %1216 = vmatprep.subr.mxu0 0.0
    %1217 = vmatpush2.msra.mxu0 0.0
    %1218 = vmatprep.subr.mxu0 0.0
    %1219 = vmatpush2.msra.mxu0 0.0
    %1220 = vmatprep.subr.mxu0 0.0
    %1221 = vmatpush2.msra.mxu0 0.0
    %1222 = vmatprep.subr.mxu0 0.0
    %1223 = vmatpush2.msra.mxu0 0.0
    %1224 = vmatprep.subr.mxu0 0.0
    %1225 = vmatpush2.msra.mxu0 0.0
    %1226 = vmatprep.subr.mxu0 0.0
    %1227 = vmatpush2.msra.mxu0 0.0
    %1228 = vmatprep.subr.mxu0 0.0
    %1229 = vmatpush2.msra.mxu0 0.0
    %1230 = vmatprep.subr.mxu0 0.0
    %1231 = vmatpush2.msra.mxu0 0.0
    %1232 = vmatprep.subr.mxu0 0.0
    %1233 = vmatpush2.msra.mxu0 0.0
    %1234 = vmatprep.subr.mxu0 0.0
    %1235 = vmatpush2.msra.mxu0 0.0
    %1236 = vmatprep.subr.mxu0 0.0
    %1237 = vmatpush2.msra.mxu0 0.0
    %1238 = vmatprep.subr.mxu0 0.0
    %1239 = vmatpush2.msra.mxu0 0.0
    %1240 = vmatprep.mubr.f32.mxu0 0.0
    %1241 = vmatmul.mubr.f32.gmra.mxu0 %v1174
    %v1242 = vpop.f32.mrf.mxu0
    %v1243 = vadd.f32 0.0, %v1242
    %v1244 = vpop.f32.mrf.mxu0
    %1245 = vdwg.mxu0
    %s1246 = scalar_lea.vmem %s5, 640
    %v1247 = vld [vmem:[%s1246] sm:$0xff]
    %v1248 = vld [vmem:[%s1246 + $0x8] sm:$0xff]
    %v1249 = vld [vmem:[%s1246 + $0x10] sm:$0xff]
    %v1250 = vld [vmem:[%s1246 + $0x18] sm:$0xff]
    %v1251 = vld [vmem:[%s1246 + $0x20] sm:$0xff]
    %v1252 = vld [vmem:[%s1246 + $0x28] sm:$0xff]
    %v1253 = vld [vmem:[%s1246 + $0x30] sm:$0xff]
    %v1254 = vld [vmem:[%s1246 + $0x38] sm:$0xff]
    %s1255 = scalar_lea.vmem %s5, 704
    %v1256 = vld [vmem:[%s1255] sm:$0xff]
    %v1257 = vld [vmem:[%s1255 + $0x8] sm:$0xff]
    %v1258 = vld [vmem:[%s1255 + $0x10] sm:$0xff]
    %v1259 = vld [vmem:[%s1255 + $0x18] sm:$0xff]
    %v1260 = vld [vmem:[%s1255 + $0x20] sm:$0xff]
    %v1261 = vld [vmem:[%s1255 + $0x28] sm:$0xff]
    %v1262 = vld [vmem:[%s1255 + $0x30] sm:$0xff]
    %v1263 = vld [vmem:[%s1255 + $0x38] sm:$0xff]
    %v1264 = vrot.slane %v785, 6
    %v1265 = vsel %vm807, %v1264, 0
    %1267 = vmatprep.subr.mxu0 0.0
    %1268 = vmatpush1.msra.mxu0 0.0
    %1269 = vmatprep.subr.mxu0 0.0
    %1270 = vmatpush1.msra.mxu0 0.0
    %1271 = vmatprep.subr.mxu0 0.0
    %1272 = vmatpush1.msra.mxu0 0.0
    %1273 = vmatprep.subr.mxu0 0.0
    %1274 = vmatpush1.msra.mxu0 0.0
    %1275 = vmatprep.subr.mxu0 0.0
    %1276 = vmatpush1.msra.mxu0 0.0
    %1277 = vmatprep.subr.mxu0 0.0
    %1278 = vmatpush1.msra.mxu0 0.0
    %1279 = vmatprep.subr.mxu0 0.0
    %1280 = vmatpush1.msra.mxu0 0.0
    %1281 = vmatprep.subr.mxu0 0.0
    %1282 = vmatpush1.msra.mxu0 0.0
    %1283 = vmatprep.subr.mxu0 0.0
    %1284 = vmatpush1.msra.mxu0 %v1263
    %1285 = vmatprep.subr.mxu0 0.0
    %1286 = vmatpush1.msra.mxu0 %v1262
    %1287 = vmatprep.subr.mxu0 0.0
    %1288 = vmatpush1.msra.mxu0 %v1261
    %1289 = vmatprep.subr.mxu0 0.0
    %1290 = vmatpush1.msra.mxu0 %v1260
    %1291 = vmatprep.subr.mxu0 0.0
    %1292 = vmatpush1.msra.mxu0 %v1259
    %1293 = vmatprep.subr.mxu0 0.0
    %1294 = vmatpush1.msra.mxu0 %v1258
    %1295 = vmatprep.subr.mxu0 0.0
    %1296 = vmatpush1.msra.mxu0 %v1257
    %1297 = vmatprep.subr.mxu0 0.0
    %1298 = vmatpush1.msra.mxu0 %v1256
    %1299 = vmatprep.subr.mxu0 0.0
    %1300 = vmatpush2.msra.mxu0 0.0
    %1301 = vmatprep.subr.mxu0 0.0
    %1302 = vmatpush2.msra.mxu0 0.0
    %1303 = vmatprep.subr.mxu0 0.0
    %1304 = vmatpush2.msra.mxu0 0.0
    %1305 = vmatprep.subr.mxu0 0.0
    %1306 = vmatpush2.msra.mxu0 0.0
    %1307 = vmatprep.subr.mxu0 0.0
    %1308 = vmatpush2.msra.mxu0 0.0
    %1309 = vmatprep.subr.mxu0 0.0
    %1310 = vmatpush2.msra.mxu0 0.0
    %1311 = vmatprep.subr.mxu0 0.0
    %1312 = vmatpush2.msra.mxu0 0.0
    %1313 = vmatprep.subr.mxu0 0.0
    %1314 = vmatpush2.msra.mxu0 0.0
    %1315 = vmatprep.subr.mxu0 0.0
    %1316 = vmatpush2.msra.mxu0 0.0
    %1317 = vmatprep.subr.mxu0 0.0
    %1318 = vmatpush2.msra.mxu0 0.0
    %1319 = vmatprep.subr.mxu0 0.0
    %1320 = vmatpush2.msra.mxu0 0.0
    %1321 = vmatprep.subr.mxu0 0.0
    %1322 = vmatpush2.msra.mxu0 0.0
    %1323 = vmatprep.subr.mxu0 0.0
    %1324 = vmatpush2.msra.mxu0 0.0
    %1325 = vmatprep.subr.mxu0 0.0
    %1326 = vmatpush2.msra.mxu0 0.0
    %1327 = vmatprep.subr.mxu0 0.0
    %1328 = vmatpush2.msra.mxu0 0.0
    %1329 = vmatprep.subr.mxu0 0.0
    %1330 = vmatpush2.msra.mxu0 0.0
    %1331 = vmatprep.mubr.f32.mxu0 0.0
    %1332 = vmatmul.mubr.f32.gmra.mxu0 %v1265
    %v1333 = vpop.f32.mrf.mxu0
    %v1334 = vadd.f32 0.0, %v1333
    %v1335 = vpop.f32.mrf.mxu0
    %1336 = vdwg.mxu0
    %s1337 = scalar_lea.vmem %s5, 768
    %v1338 = vld [vmem:[%s1337] sm:$0xff]
    %v1339 = vld [vmem:[%s1337 + $0x8] sm:$0xff]
    %v1340 = vld [vmem:[%s1337 + $0x10] sm:$0xff]
    %v1341 = vld [vmem:[%s1337 + $0x18] sm:$0xff]
    %v1342 = vld [vmem:[%s1337 + $0x20] sm:$0xff]
    %v1343 = vld [vmem:[%s1337 + $0x28] sm:$0xff]
    %v1344 = vld [vmem:[%s1337 + $0x30] sm:$0xff]
    %v1345 = vld [vmem:[%s1337 + $0x38] sm:$0xff]
    %s1346 = scalar_lea.vmem %s5, 832
    %v1347 = vld [vmem:[%s1346] sm:$0xff]
    %v1348 = vld [vmem:[%s1346 + $0x8] sm:$0xff]
    %v1349 = vld [vmem:[%s1346 + $0x10] sm:$0xff]
    %v1350 = vld [vmem:[%s1346 + $0x18] sm:$0xff]
    %v1351 = vld [vmem:[%s1346 + $0x20] sm:$0xff]
    %v1352 = vld [vmem:[%s1346 + $0x28] sm:$0xff]
    %v1353 = vld [vmem:[%s1346 + $0x30] sm:$0xff]
    %v1354 = vld [vmem:[%s1346 + $0x38] sm:$0xff]
    %v1356 = vrot.slane %v786, 2
    %v1357 = vsel %vm807, %v1356, 0
    %1359 = vmatprep.subr.mxu0 0.0
    %1360 = vmatpush1.msra.mxu0 0.0
    %1361 = vmatprep.subr.mxu0 0.0
    %1362 = vmatpush1.msra.mxu0 0.0
    %1363 = vmatprep.subr.mxu0 0.0
    %1364 = vmatpush1.msra.mxu0 0.0
    %1365 = vmatprep.subr.mxu0 0.0
    %1366 = vmatpush1.msra.mxu0 0.0
    %1367 = vmatprep.subr.mxu0 0.0
    %1368 = vmatpush1.msra.mxu0 0.0
    %1369 = vmatprep.subr.mxu0 0.0
    %1370 = vmatpush1.msra.mxu0 0.0
    %1371 = vmatprep.subr.mxu0 0.0
    %1372 = vmatpush1.msra.mxu0 0.0
    %1373 = vmatprep.subr.mxu0 0.0
    %1374 = vmatpush1.msra.mxu0 0.0
    %1375 = vmatprep.subr.mxu0 0.0
    %1376 = vmatpush1.msra.mxu0 %v1354
    %1377 = vmatprep.subr.mxu0 0.0
    %1378 = vmatpush1.msra.mxu0 %v1353
    %1379 = vmatprep.subr.mxu0 0.0
    %1380 = vmatpush1.msra.mxu0 %v1352
    %1381 = vmatprep.subr.mxu0 0.0
    %1382 = vmatpush1.msra.mxu0 %v1351
    %1383 = vmatprep.subr.mxu0 0.0
    %1384 = vmatpush1.msra.mxu0 %v1350
    %1385 = vmatprep.subr.mxu0 0.0
    %1386 = vmatpush1.msra.mxu0 %v1349
    %1387 = vmatprep.subr.mxu0 0.0
    %1388 = vmatpush1.msra.mxu0 %v1348
    %1389 = vmatprep.subr.mxu0 0.0
    %1390 = vmatpush1.msra.mxu0 %v1347
    %1391 = vmatprep.subr.mxu0 0.0
    %1392 = vmatpush2.msra.mxu0 0.0
    %1393 = vmatprep.subr.mxu0 0.0
    %1394 = vmatpush2.msra.mxu0 0.0
    %1395 = vmatprep.subr.mxu0 0.0
    %1396 = vmatpush2.msra.mxu0 0.0
    %1397 = vmatprep.subr.mxu0 0.0
    %1398 = vmatpush2.msra.mxu0 0.0
    %1399 = vmatprep.subr.mxu0 0.0
    %1400 = vmatpush2.msra.mxu0 0.0
    %1401 = vmatprep.subr.mxu0 0.0
    %1402 = vmatpush2.msra.mxu0 0.0
    %1403 = vmatprep.subr.mxu0 0.0
    %1404 = vmatpush2.msra.mxu0 0.0
    %1405 = vmatprep.subr.mxu0 0.0
    %1406 = vmatpush2.msra.mxu0 0.0
    %1407 = vmatprep.subr.mxu0 0.0
    %1408 = vmatpush2.msra.mxu0 0.0
    %1409 = vmatprep.subr.mxu0 0.0
    %1410 = vmatpush2.msra.mxu0 0.0
    %1411 = vmatprep.subr.mxu0 0.0
    %1412 = vmatpush2.msra.mxu0 0.0
    %1413 = vmatprep.subr.mxu0 0.0
    %1414 = vmatpush2.msra.mxu0 0.0
    %1415 = vmatprep.subr.mxu0 0.0
    %1416 = vmatpush2.msra.mxu0 0.0
    %1417 = vmatprep.subr.mxu0 0.0
    %1418 = vmatpush2.msra.mxu0 0.0
    %1419 = vmatprep.subr.mxu0 0.0
    %1420 = vmatpush2.msra.mxu0 0.0
    %1421 = vmatprep.subr.mxu0 0.0
    %1422 = vmatpush2.msra.mxu0 0.0
    %1423 = vmatprep.mubr.f32.mxu0 0.0
    %1424 = vmatmul.mubr.f32.gmra.mxu0 %v1357
    %v1425 = vpop.f32.mrf.mxu0
    %v1426 = vadd.f32 0.0, %v1425
    %v1427 = vpop.f32.mrf.mxu0
    %1428 = vdwg.mxu0
    %s1429 = scalar_lea.vmem %s5, 896
    %v1430 = vld [vmem:[%s1429] sm:$0xff]
    %v1431 = vld [vmem:[%s1429 + $0x8] sm:$0xff]
    %v1432 = vld [vmem:[%s1429 + $0x10] sm:$0xff]
    %v1433 = vld [vmem:[%s1429 + $0x18] sm:$0xff]
    %v1434 = vld [vmem:[%s1429 + $0x20] sm:$0xff]
    %v1435 = vld [vmem:[%s1429 + $0x28] sm:$0xff]
    %v1436 = vld [vmem:[%s1429 + $0x30] sm:$0xff]
    %v1437 = vld [vmem:[%s1429 + $0x38] sm:$0xff]
    %s1438 = scalar_lea.vmem %s5, 960
    %v1439 = vld [vmem:[%s1438] sm:$0xff]
    %v1440 = vld [vmem:[%s1438 + $0x8] sm:$0xff]
    %v1441 = vld [vmem:[%s1438 + $0x10] sm:$0xff]
    %v1442 = vld [vmem:[%s1438 + $0x18] sm:$0xff]
    %v1443 = vld [vmem:[%s1438 + $0x20] sm:$0xff]
    %v1444 = vld [vmem:[%s1438 + $0x28] sm:$0xff]
    %v1445 = vld [vmem:[%s1438 + $0x30] sm:$0xff]
    %v1446 = vld [vmem:[%s1438 + $0x38] sm:$0xff]
    %v1447 = vrot.slane %v786, 6
    %v1448 = vsel %vm807, %v1447, 0
    %1450 = vmatprep.subr.mxu0 0.0
    %1451 = vmatpush1.msra.mxu0 0.0
    %1452 = vmatprep.subr.mxu0 0.0
    %1453 = vmatpush1.msra.mxu0 0.0
    %1454 = vmatprep.subr.mxu0 0.0
    %1455 = vmatpush1.msra.mxu0 0.0
    %1456 = vmatprep.subr.mxu0 0.0
    %1457 = vmatpush1.msra.mxu0 0.0
    %1458 = vmatprep.subr.mxu0 0.0
    %1459 = vmatpush1.msra.mxu0 0.0
    %1460 = vmatprep.subr.mxu0 0.0
    %1461 = vmatpush1.msra.mxu0 0.0
    %1462 = vmatprep.subr.mxu0 0.0
    %1463 = vmatpush1.msra.mxu0 0.0
    %1464 = vmatprep.subr.mxu0 0.0
    %1465 = vmatpush1.msra.mxu0 0.0
    %1466 = vmatprep.subr.mxu0 0.0
    %1467 = vmatpush1.msra.mxu0 %v1446
    %1468 = vmatprep.subr.mxu0 0.0
    %1469 = vmatpush1.msra.mxu0 %v1445
    %1470 = vmatprep.subr.mxu0 0.0
    %1471 = vmatpush1.msra.mxu0 %v1444
    %1472 = vmatprep.subr.mxu0 0.0
    %1473 = vmatpush1.msra.mxu0 %v1443
    %1474 = vmatprep.subr.mxu0 0.0
    %1475 = vmatpush1.msra.mxu0 %v1442
    %1476 = vmatprep.subr.mxu0 0.0
    %1477 = vmatpush1.msra.mxu0 %v1441
    %1478 = vmatprep.subr.mxu0 0.0
    %1479 = vmatpush1.msra.mxu0 %v1440
    %1480 = vmatprep.subr.mxu0 0.0
    %1481 = vmatpush1.msra.mxu0 %v1439
    %1482 = vmatprep.subr.mxu0 0.0
    %1483 = vmatpush2.msra.mxu0 0.0
    %1484 = vmatprep.subr.mxu0 0.0
    %1485 = vmatpush2.msra.mxu0 0.0
    %1486 = vmatprep.subr.mxu0 0.0
    %1487 = vmatpush2.msra.mxu0 0.0
    %1488 = vmatprep.subr.mxu0 0.0
    %1489 = vmatpush2.msra.mxu0 0.0
    %1490 = vmatprep.subr.mxu0 0.0
    %1491 = vmatpush2.msra.mxu0 0.0
    %1492 = vmatprep.subr.mxu0 0.0
    %1493 = vmatpush2.msra.mxu0 0.0
    %1494 = vmatprep.subr.mxu0 0.0
    %1495 = vmatpush2.msra.mxu0 0.0
    %1496 = vmatprep.subr.mxu0 0.0
    %1497 = vmatpush2.msra.mxu0 0.0
    %1498 = vmatprep.subr.mxu0 0.0
    %1499 = vmatpush2.msra.mxu0 0.0
    %1500 = vmatprep.subr.mxu0 0.0
    %1501 = vmatpush2.msra.mxu0 0.0
    %1502 = vmatprep.subr.mxu0 0.0
    %1503 = vmatpush2.msra.mxu0 0.0
    %1504 = vmatprep.subr.mxu0 0.0
    %1505 = vmatpush2.msra.mxu0 0.0
    %1506 = vmatprep.subr.mxu0 0.0
    %1507 = vmatpush2.msra.mxu0 0.0
    %1508 = vmatprep.subr.mxu0 0.0
    %1509 = vmatpush2.msra.mxu0 0.0
    %1510 = vmatprep.subr.mxu0 0.0
    %1511 = vmatpush2.msra.mxu0 0.0
    %1512 = vmatprep.subr.mxu0 0.0
    %1513 = vmatpush2.msra.mxu0 0.0
    %1514 = vmatprep.mubr.f32.mxu0 0.0
    %1515 = vmatmul.mubr.f32.gmra.mxu0 %v1448
    %v1516 = vpop.f32.mrf.mxu0
    %v1517 = vadd.f32 0.0, %v1516
    %v1518 = vpop.f32.mrf.mxu0
    %1519 = vdwg.mxu0
    %s1520 = scalar_lea.vmem %s5, 1024
    %v1521 = vld [vmem:[%s1520] sm:$0xff]
    %v1522 = vld [vmem:[%s1520 + $0x8] sm:$0xff]
    %v1523 = vld [vmem:[%s1520 + $0x10] sm:$0xff]
    %v1524 = vld [vmem:[%s1520 + $0x18] sm:$0xff]
    %v1525 = vld [vmem:[%s1520 + $0x20] sm:$0xff]
    %v1526 = vld [vmem:[%s1520 + $0x28] sm:$0xff]
    %v1527 = vld [vmem:[%s1520 + $0x30] sm:$0xff]
    %v1528 = vld [vmem:[%s1520 + $0x38] sm:$0xff]
    %s1529 = scalar_lea.vmem %s5, 1088
    %v1530 = vld [vmem:[%s1529] sm:$0xff]
    %v1531 = vld [vmem:[%s1529 + $0x8] sm:$0xff]
    %v1532 = vld [vmem:[%s1529 + $0x10] sm:$0xff]
    %v1533 = vld [vmem:[%s1529 + $0x18] sm:$0xff]
    %v1534 = vld [vmem:[%s1529 + $0x20] sm:$0xff]
    %v1535 = vld [vmem:[%s1529 + $0x28] sm:$0xff]
    %v1536 = vld [vmem:[%s1529 + $0x30] sm:$0xff]
    %v1537 = vld [vmem:[%s1529 + $0x38] sm:$0xff]
    %v1539 = vrot.slane %v787, 2
    %v1540 = vsel %vm807, %v1539, 0
    %1542 = vmatprep.subr.mxu0 0.0
    %1543 = vmatpush1.msra.mxu0 0.0
    %1544 = vmatprep.subr.mxu0 0.0
    %1545 = vmatpush1.msra.mxu0 0.0
    %1546 = vmatprep.subr.mxu0 0.0
    %1547 = vmatpush1.msra.mxu0 0.0
    %1548 = vmatprep.subr.mxu0 0.0
    %1549 = vmatpush1.msra.mxu0 0.0
    %1550 = vmatprep.subr.mxu0 0.0
    %1551 = vmatpush1.msra.mxu0 0.0
    %1552 = vmatprep.subr.mxu0 0.0
    %1553 = vmatpush1.msra.mxu0 0.0
    %1554 = vmatprep.subr.mxu0 0.0
    %1555 = vmatpush1.msra.mxu0 0.0
    %1556 = vmatprep.subr.mxu0 0.0
    %1557 = vmatpush1.msra.mxu0 0.0
    %1558 = vmatprep.subr.mxu0 0.0
    %1559 = vmatpush1.msra.mxu0 %v1537
    %1560 = vmatprep.subr.mxu0 0.0
    %1561 = vmatpush1.msra.mxu0 %v1536
    %1562 = vmatprep.subr.mxu0 0.0
    %1563 = vmatpush1.msra.mxu0 %v1535
    %1564 = vmatprep.subr.mxu0 0.0
    %1565 = vmatpush1.msra.mxu0 %v1534
    %1566 = vmatprep.subr.mxu0 0.0
    %1567 = vmatpush1.msra.mxu0 %v1533
    %1568 = vmatprep.subr.mxu0 0.0
    %1569 = vmatpush1.msra.mxu0 %v1532
    %1570 = vmatprep.subr.mxu0 0.0
    %1571 = vmatpush1.msra.mxu0 %v1531
    %1572 = vmatprep.subr.mxu0 0.0
    %1573 = vmatpush1.msra.mxu0 %v1530
    %1574 = vmatprep.subr.mxu0 0.0
    %1575 = vmatpush2.msra.mxu0 0.0
    %1576 = vmatprep.subr.mxu0 0.0
    %1577 = vmatpush2.msra.mxu0 0.0
    %1578 = vmatprep.subr.mxu0 0.0
    %1579 = vmatpush2.msra.mxu0 0.0
    %1580 = vmatprep.subr.mxu0 0.0
    %1581 = vmatpush2.msra.mxu0 0.0
    %1582 = vmatprep.subr.mxu0 0.0
    %1583 = vmatpush2.msra.mxu0 0.0
    %1584 = vmatprep.subr.mxu0 0.0
    %1585 = vmatpush2.msra.mxu0 0.0
    %1586 = vmatprep.subr.mxu0 0.0
    %1587 = vmatpush2.msra.mxu0 0.0
    %1588 = vmatprep.subr.mxu0 0.0
    %1589 = vmatpush2.msra.mxu0 0.0
    %1590 = vmatprep.subr.mxu0 0.0
    %1591 = vmatpush2.msra.mxu0 0.0
    %1592 = vmatprep.subr.mxu0 0.0
    %1593 = vmatpush2.msra.mxu0 0.0
    %1594 = vmatprep.subr.mxu0 0.0
    %1595 = vmatpush2.msra.mxu0 0.0
    %1596 = vmatprep.subr.mxu0 0.0
    %1597 = vmatpush2.msra.mxu0 0.0
    %1598 = vmatprep.subr.mxu0 0.0
    %1599 = vmatpush2.msra.mxu0 0.0
    %1600 = vmatprep.subr.mxu0 0.0
    %1601 = vmatpush2.msra.mxu0 0.0
    %1602 = vmatprep.subr.mxu0 0.0
    %1603 = vmatpush2.msra.mxu0 0.0
    %1604 = vmatprep.subr.mxu0 0.0
    %1605 = vmatpush2.msra.mxu0 0.0
    %1606 = vmatprep.mubr.f32.mxu0 0.0
    %1607 = vmatmul.mubr.f32.gmra.mxu0 %v1540
    %v1608 = vpop.f32.mrf.mxu0
    %v1609 = vadd.f32 0.0, %v1608
    %v1610 = vpop.f32.mrf.mxu0
    %1611 = vdwg.mxu0
    %v1612 = vsel %vm807, %v783, 0
    %1614 = vmatprep.subr.mxu0 0.0
    %1615 = vmatpush1.msra.mxu0 0.0
    %1616 = vmatprep.subr.mxu0 0.0
    %1617 = vmatpush1.msra.mxu0 0.0
    %1618 = vmatprep.subr.mxu0 0.0
    %1619 = vmatpush1.msra.mxu0 0.0
    %1620 = vmatprep.subr.mxu0 0.0
    %1621 = vmatpush1.msra.mxu0 0.0
    %1622 = vmatprep.subr.mxu0 0.0
    %1623 = vmatpush1.msra.mxu0 0.0
    %1624 = vmatprep.subr.mxu0 0.0
    %1625 = vmatpush1.msra.mxu0 0.0
    %1626 = vmatprep.subr.mxu0 0.0
    %1627 = vmatpush1.msra.mxu0 0.0
    %1628 = vmatprep.subr.mxu0 0.0
    %1629 = vmatpush1.msra.mxu0 0.0
    %1630 = vmatprep.subr.mxu0 0.0
    %1631 = vmatpush1.msra.mxu0 %v795
    %1632 = vmatprep.subr.mxu0 0.0
    %1633 = vmatpush1.msra.mxu0 %v794
    %1634 = vmatprep.subr.mxu0 0.0
    %1635 = vmatpush1.msra.mxu0 %v793
    %1636 = vmatprep.subr.mxu0 0.0
    %1637 = vmatpush1.msra.mxu0 %v792
    %1638 = vmatprep.subr.mxu0 0.0
    %1639 = vmatpush1.msra.mxu0 %v791
    %1640 = vmatprep.subr.mxu0 0.0
    %1641 = vmatpush1.msra.mxu0 %v790
    %1642 = vmatprep.subr.mxu0 0.0
    %1643 = vmatpush1.msra.mxu0 %v789
    %1644 = vmatprep.subr.mxu0 0.0
    %1645 = vmatpush1.msra.mxu0 %v788
    %1646 = vmatprep.subr.mxu0 0.0
    %1647 = vmatpush2.msra.mxu0 0.0
    %1648 = vmatprep.subr.mxu0 0.0
    %1649 = vmatpush2.msra.mxu0 0.0
    %1650 = vmatprep.subr.mxu0 0.0
    %1651 = vmatpush2.msra.mxu0 0.0
    %1652 = vmatprep.subr.mxu0 0.0
    %1653 = vmatpush2.msra.mxu0 0.0
    %1654 = vmatprep.subr.mxu0 0.0
    %1655 = vmatpush2.msra.mxu0 0.0
    %1656 = vmatprep.subr.mxu0 0.0
    %1657 = vmatpush2.msra.mxu0 0.0
    %1658 = vmatprep.subr.mxu0 0.0
    %1659 = vmatpush2.msra.mxu0 0.0
    %1660 = vmatprep.subr.mxu0 0.0
    %1661 = vmatpush2.msra.mxu0 0.0
    %1662 = vmatprep.subr.mxu0 0.0
    %1663 = vmatpush2.msra.mxu0 0.0
    %1664 = vmatprep.subr.mxu0 0.0
    %1665 = vmatpush2.msra.mxu0 0.0
    %1666 = vmatprep.subr.mxu0 0.0
    %1667 = vmatpush2.msra.mxu0 0.0
    %1668 = vmatprep.subr.mxu0 0.0
    %1669 = vmatpush2.msra.mxu0 0.0
    %1670 = vmatprep.subr.mxu0 0.0
    %1671 = vmatpush2.msra.mxu0 0.0
    %1672 = vmatprep.subr.mxu0 0.0
    %1673 = vmatpush2.msra.mxu0 0.0
    %1674 = vmatprep.subr.mxu0 0.0
    %1675 = vmatpush2.msra.mxu0 0.0
    %1676 = vmatprep.subr.mxu0 0.0
    %1677 = vmatpush2.msra.mxu0 0.0
    %1678 = vmatprep.mubr.f32.mxu0 0.0
    %1679 = vmatmul.mubr.f32.gmra.mxu0 %v1612
    %v1680 = vpop.f32.mrf.mxu0
    %v1681 = vadd.f32 %v877, %v1680
    %v1682 = vpop.f32.mrf.mxu0
    %1683 = vdwg.mxu0
    %v1684 = vrot.slane %v783, 4
    %v1685 = vsel %vm807, %v1684, 0
    %1687 = vmatprep.subr.mxu0 0.0
    %1688 = vmatpush1.msra.mxu0 0.0
    %1689 = vmatprep.subr.mxu0 0.0
    %1690 = vmatpush1.msra.mxu0 0.0
    %1691 = vmatprep.subr.mxu0 0.0
    %1692 = vmatpush1.msra.mxu0 0.0
    %1693 = vmatprep.subr.mxu0 0.0
    %1694 = vmatpush1.msra.mxu0 0.0
    %1695 = vmatprep.subr.mxu0 0.0
    %1696 = vmatpush1.msra.mxu0 0.0
    %1697 = vmatprep.subr.mxu0 0.0
    %1698 = vmatpush1.msra.mxu0 0.0
    %1699 = vmatprep.subr.mxu0 0.0
    %1700 = vmatpush1.msra.mxu0 0.0
    %1701 = vmatprep.subr.mxu0 0.0
    %1702 = vmatpush1.msra.mxu0 0.0
    %1703 = vmatprep.subr.mxu0 0.0
    %1704 = vmatpush1.msra.mxu0 %v888
    %1705 = vmatprep.subr.mxu0 0.0
    %1706 = vmatpush1.msra.mxu0 %v887
    %1707 = vmatprep.subr.mxu0 0.0
    %1708 = vmatpush1.msra.mxu0 %v886
    %1709 = vmatprep.subr.mxu0 0.0
    %1710 = vmatpush1.msra.mxu0 %v885
    %1711 = vmatprep.subr.mxu0 0.0
    %1712 = vmatpush1.msra.mxu0 %v884
    %1713 = vmatprep.subr.mxu0 0.0
    %1714 = vmatpush1.msra.mxu0 %v883
    %1715 = vmatprep.subr.mxu0 0.0
    %1716 = vmatpush1.msra.mxu0 %v882
    %1717 = vmatprep.subr.mxu0 0.0
    %1718 = vmatpush1.msra.mxu0 %v881
    %1719 = vmatprep.subr.mxu0 0.0
    %1720 = vmatpush2.msra.mxu0 0.0
    %1721 = vmatprep.subr.mxu0 0.0
    %1722 = vmatpush2.msra.mxu0 0.0
    %1723 = vmatprep.subr.mxu0 0.0
    %1724 = vmatpush2.msra.mxu0 0.0
    %1725 = vmatprep.subr.mxu0 0.0
    %1726 = vmatpush2.msra.mxu0 0.0
    %1727 = vmatprep.subr.mxu0 0.0
    %1728 = vmatpush2.msra.mxu0 0.0
    %1729 = vmatprep.subr.mxu0 0.0
    %1730 = vmatpush2.msra.mxu0 0.0
    %1731 = vmatprep.subr.mxu0 0.0
    %1732 = vmatpush2.msra.mxu0 0.0
    %1733 = vmatprep.subr.mxu0 0.0
    %1734 = vmatpush2.msra.mxu0 0.0
    %1735 = vmatprep.subr.mxu0 0.0
    %1736 = vmatpush2.msra.mxu0 0.0
    %1737 = vmatprep.subr.mxu0 0.0
    %1738 = vmatpush2.msra.mxu0 0.0
    %1739 = vmatprep.subr.mxu0 0.0
    %1740 = vmatpush2.msra.mxu0 0.0
    %1741 = vmatprep.subr.mxu0 0.0
    %1742 = vmatpush2.msra.mxu0 0.0
    %1743 = vmatprep.subr.mxu0 0.0
    %1744 = vmatpush2.msra.mxu0 0.0
    %1745 = vmatprep.subr.mxu0 0.0
    %1746 = vmatpush2.msra.mxu0 0.0
    %1747 = vmatprep.subr.mxu0 0.0
    %1748 = vmatpush2.msra.mxu0 0.0
    %1749 = vmatprep.subr.mxu0 0.0
    %1750 = vmatpush2.msra.mxu0 0.0
    %1751 = vmatprep.mubr.f32.mxu0 0.0
    %1752 = vmatmul.mubr.f32.gmra.mxu0 %v1685
    %v1753 = vpop.f32.mrf.mxu0
    %v1754 = vadd.f32 %v968, %v1753
    %v1755 = vpop.f32.mrf.mxu0
    %1756 = vdwg.mxu0
    %v1757 = vsel %vm807, %v784, 0
    %1759 = vmatprep.subr.mxu0 0.0
    %1760 = vmatpush1.msra.mxu0 0.0
    %1761 = vmatprep.subr.mxu0 0.0
    %1762 = vmatpush1.msra.mxu0 0.0
    %1763 = vmatprep.subr.mxu0 0.0
    %1764 = vmatpush1.msra.mxu0 0.0
    %1765 = vmatprep.subr.mxu0 0.0
    %1766 = vmatpush1.msra.mxu0 0.0
    %1767 = vmatprep.subr.mxu0 0.0
    %1768 = vmatpush1.msra.mxu0 0.0
    %1769 = vmatprep.subr.mxu0 0.0
    %1770 = vmatpush1.msra.mxu0 0.0
    %1771 = vmatprep.subr.mxu0 0.0
    %1772 = vmatpush1.msra.mxu0 0.0
    %1773 = vmatprep.subr.mxu0 0.0
    %1774 = vmatpush1.msra.mxu0 0.0
    %1775 = vmatprep.subr.mxu0 0.0
    %1776 = vmatpush1.msra.mxu0 %v979
    %1777 = vmatprep.subr.mxu0 0.0
    %1778 = vmatpush1.msra.mxu0 %v978
    %1779 = vmatprep.subr.mxu0 0.0
    %1780 = vmatpush1.msra.mxu0 %v977
    %1781 = vmatprep.subr.mxu0 0.0
    %1782 = vmatpush1.msra.mxu0 %v976
    %1783 = vmatprep.subr.mxu0 0.0
    %1784 = vmatpush1.msra.mxu0 %v975
    %1785 = vmatprep.subr.mxu0 0.0
    %1786 = vmatpush1.msra.mxu0 %v974
    %1787 = vmatprep.subr.mxu0 0.0
    %1788 = vmatpush1.msra.mxu0 %v973
    %1789 = vmatprep.subr.mxu0 0.0
    %1790 = vmatpush1.msra.mxu0 %v972
    %1791 = vmatprep.subr.mxu0 0.0
    %1792 = vmatpush2.msra.mxu0 0.0
    %1793 = vmatprep.subr.mxu0 0.0
    %1794 = vmatpush2.msra.mxu0 0.0
    %1795 = vmatprep.subr.mxu0 0.0
    %1796 = vmatpush2.msra.mxu0 0.0
    %1797 = vmatprep.subr.mxu0 0.0
    %1798 = vmatpush2.msra.mxu0 0.0
    %1799 = vmatprep.subr.mxu0 0.0
    %1800 = vmatpush2.msra.mxu0 0.0
    %1801 = vmatprep.subr.mxu0 0.0
    %1802 = vmatpush2.msra.mxu0 0.0
    %1803 = vmatprep.subr.mxu0 0.0
    %1804 = vmatpush2.msra.mxu0 0.0
    %1805 = vmatprep.subr.mxu0 0.0
    %1806 = vmatpush2.msra.mxu0 0.0
    %1807 = vmatprep.subr.mxu0 0.0
    %1808 = vmatpush2.msra.mxu0 0.0
    %1809 = vmatprep.subr.mxu0 0.0
    %1810 = vmatpush2.msra.mxu0 0.0
    %1811 = vmatprep.subr.mxu0 0.0
    %1812 = vmatpush2.msra.mxu0 0.0
    %1813 = vmatprep.subr.mxu0 0.0
    %1814 = vmatpush2.msra.mxu0 0.0
    %1815 = vmatprep.subr.mxu0 0.0
    %1816 = vmatpush2.msra.mxu0 0.0
    %1817 = vmatprep.subr.mxu0 0.0
    %1818 = vmatpush2.msra.mxu0 0.0
    %1819 = vmatprep.subr.mxu0 0.0
    %1820 = vmatpush2.msra.mxu0 0.0
    %1821 = vmatprep.subr.mxu0 0.0
    %1822 = vmatpush2.msra.mxu0 0.0
    %1823 = vmatprep.mubr.f32.mxu0 0.0
    %1824 = vmatmul.mubr.f32.gmra.mxu0 %v1757
    %v1825 = vpop.f32.mrf.mxu0
    %v1826 = vadd.f32 %v1060, %v1825
    %v1827 = vpop.f32.mrf.mxu0
    %1828 = vdwg.mxu0
    %v1829 = vrot.slane %v784, 4
    %v1830 = vsel %vm807, %v1829, 0
    %1832 = vmatprep.subr.mxu0 0.0
    %1833 = vmatpush1.msra.mxu0 0.0
    %1834 = vmatprep.subr.mxu0 0.0
    %1835 = vmatpush1.msra.mxu0 0.0
    %1836 = vmatprep.subr.mxu0 0.0
    %1837 = vmatpush1.msra.mxu0 0.0
    %1838 = vmatprep.subr.mxu0 0.0
    %1839 = vmatpush1.msra.mxu0 0.0
    %1840 = vmatprep.subr.mxu0 0.0
    %1841 = vmatpush1.msra.mxu0 0.0
    %1842 = vmatprep.subr.mxu0 0.0
    %1843 = vmatpush1.msra.mxu0 0.0
    %1844 = vmatprep.subr.mxu0 0.0
    %1845 = vmatpush1.msra.mxu0 0.0
    %1846 = vmatprep.subr.mxu0 0.0
    %1847 = vmatpush1.msra.mxu0 0.0
    %1848 = vmatprep.subr.mxu0 0.0
    %1849 = vmatpush1.msra.mxu0 %v1071
    %1850 = vmatprep.subr.mxu0 0.0
    %1851 = vmatpush1.msra.mxu0 %v1070
    %1852 = vmatprep.subr.mxu0 0.0
    %1853 = vmatpush1.msra.mxu0 %v1069
    %1854 = vmatprep.subr.mxu0 0.0
    %1855 = vmatpush1.msra.mxu0 %v1068
    %1856 = vmatprep.subr.mxu0 0.0
    %1857 = vmatpush1.msra.mxu0 %v1067
    %1858 = vmatprep.subr.mxu0 0.0
    %1859 = vmatpush1.msra.mxu0 %v1066
    %1860 = vmatprep.subr.mxu0 0.0
    %1861 = vmatpush1.msra.mxu0 %v1065
    %1862 = vmatprep.subr.mxu0 0.0
    %1863 = vmatpush1.msra.mxu0 %v1064
    %1864 = vmatprep.subr.mxu0 0.0
    %1865 = vmatpush2.msra.mxu0 0.0
    %1866 = vmatprep.subr.mxu0 0.0
    %1867 = vmatpush2.msra.mxu0 0.0
    %1868 = vmatprep.subr.mxu0 0.0
    %1869 = vmatpush2.msra.mxu0 0.0
    %1870 = vmatprep.subr.mxu0 0.0
    %1871 = vmatpush2.msra.mxu0 0.0
    %1872 = vmatprep.subr.mxu0 0.0
    %1873 = vmatpush2.msra.mxu0 0.0
    %1874 = vmatprep.subr.mxu0 0.0
    %1875 = vmatpush2.msra.mxu0 0.0
    %1876 = vmatprep.subr.mxu0 0.0
    %1877 = vmatpush2.msra.mxu0 0.0
    %1878 = vmatprep.subr.mxu0 0.0
    %1879 = vmatpush2.msra.mxu0 0.0
    %1880 = vmatprep.subr.mxu0 0.0
    %1881 = vmatpush2.msra.mxu0 0.0
    %1882 = vmatprep.subr.mxu0 0.0
    %1883 = vmatpush2.msra.mxu0 0.0
    %1884 = vmatprep.subr.mxu0 0.0
    %1885 = vmatpush2.msra.mxu0 0.0
    %1886 = vmatprep.subr.mxu0 0.0
    %1887 = vmatpush2.msra.mxu0 0.0
    %1888 = vmatprep.subr.mxu0 0.0
    %1889 = vmatpush2.msra.mxu0 0.0
    %1890 = vmatprep.subr.mxu0 0.0
    %1891 = vmatpush2.msra.mxu0 0.0
    %1892 = vmatprep.subr.mxu0 0.0
    %1893 = vmatpush2.msra.mxu0 0.0
    %1894 = vmatprep.subr.mxu0 0.0
    %1895 = vmatpush2.msra.mxu0 0.0
    %1896 = vmatprep.mubr.f32.mxu0 0.0
    %1897 = vmatmul.mubr.f32.gmra.mxu0 %v1830
    %v1898 = vpop.f32.mrf.mxu0
    %v1899 = vadd.f32 %v1151, %v1898
    %v1900 = vpop.f32.mrf.mxu0
    %1901 = vdwg.mxu0
    %v1902 = vsel %vm807, %v785, 0
    %1904 = vmatprep.subr.mxu0 0.0
    %1905 = vmatpush1.msra.mxu0 0.0
    %1906 = vmatprep.subr.mxu0 0.0
    %1907 = vmatpush1.msra.mxu0 0.0
    %1908 = vmatprep.subr.mxu0 0.0
    %1909 = vmatpush1.msra.mxu0 0.0
    %1910 = vmatprep.subr.mxu0 0.0
    %1911 = vmatpush1.msra.mxu0 0.0
    %1912 = vmatprep.subr.mxu0 0.0
    %1913 = vmatpush1.msra.mxu0 0.0
    %1914 = vmatprep.subr.mxu0 0.0
    %1915 = vmatpush1.msra.mxu0 0.0
    %1916 = vmatprep.subr.mxu0 0.0
    %1917 = vmatpush1.msra.mxu0 0.0
    %1918 = vmatprep.subr.mxu0 0.0
    %1919 = vmatpush1.msra.mxu0 0.0
    %1920 = vmatprep.subr.mxu0 0.0
    %1921 = vmatpush1.msra.mxu0 %v1162
    %1922 = vmatprep.subr.mxu0 0.0
    %1923 = vmatpush1.msra.mxu0 %v1161
    %1924 = vmatprep.subr.mxu0 0.0
    %1925 = vmatpush1.msra.mxu0 %v1160
    %1926 = vmatprep.subr.mxu0 0.0
    %1927 = vmatpush1.msra.mxu0 %v1159
    %1928 = vmatprep.subr.mxu0 0.0
    %1929 = vmatpush1.msra.mxu0 %v1158
    %1930 = vmatprep.subr.mxu0 0.0
    %1931 = vmatpush1.msra.mxu0 %v1157
    %1932 = vmatprep.subr.mxu0 0.0
    %1933 = vmatpush1.msra.mxu0 %v1156
    %1934 = vmatprep.subr.mxu0 0.0
    %1935 = vmatpush1.msra.mxu0 %v1155
    %1936 = vmatprep.subr.mxu0 0.0
    %1937 = vmatpush2.msra.mxu0 0.0
    %1938 = vmatprep.subr.mxu0 0.0
    %1939 = vmatpush2.msra.mxu0 0.0
    %1940 = vmatprep.subr.mxu0 0.0
    %1941 = vmatpush2.msra.mxu0 0.0
    %1942 = vmatprep.subr.mxu0 0.0
    %1943 = vmatpush2.msra.mxu0 0.0
    %1944 = vmatprep.subr.mxu0 0.0
    %1945 = vmatpush2.msra.mxu0 0.0
    %1946 = vmatprep.subr.mxu0 0.0
    %1947 = vmatpush2.msra.mxu0 0.0
    %1948 = vmatprep.subr.mxu0 0.0
    %1949 = vmatpush2.msra.mxu0 0.0
    %1950 = vmatprep.subr.mxu0 0.0
    %1951 = vmatpush2.msra.mxu0 0.0
    %1952 = vmatprep.subr.mxu0 0.0
    %1953 = vmatpush2.msra.mxu0 0.0
    %1954 = vmatprep.subr.mxu0 0.0
    %1955 = vmatpush2.msra.mxu0 0.0
    %1956 = vmatprep.subr.mxu0 0.0
    %1957 = vmatpush2.msra.mxu0 0.0
    %1958 = vmatprep.subr.mxu0 0.0
    %1959 = vmatpush2.msra.mxu0 0.0
    %1960 = vmatprep.subr.mxu0 0.0
    %1961 = vmatpush2.msra.mxu0 0.0
    %1962 = vmatprep.subr.mxu0 0.0
    %1963 = vmatpush2.msra.mxu0 0.0
    %1964 = vmatprep.subr.mxu0 0.0
    %1965 = vmatpush2.msra.mxu0 0.0
    %1966 = vmatprep.subr.mxu0 0.0
    %1967 = vmatpush2.msra.mxu0 0.0
    %1968 = vmatprep.mubr.f32.mxu0 0.0
    %1969 = vmatmul.mubr.f32.gmra.mxu0 %v1902
    %v1970 = vpop.f32.mrf.mxu0
    %v1971 = vadd.f32 %v1243, %v1970
    %v1972 = vpop.f32.mrf.mxu0
    %1973 = vdwg.mxu0
    %v1974 = vrot.slane %v785, 4
    %v1975 = vsel %vm807, %v1974, 0
    %1977 = vmatprep.subr.mxu0 0.0
    %1978 = vmatpush1.msra.mxu0 0.0
    %1979 = vmatprep.subr.mxu0 0.0
    %1980 = vmatpush1.msra.mxu0 0.0
    %1981 = vmatprep.subr.mxu0 0.0
    %1982 = vmatpush1.msra.mxu0 0.0
    %1983 = vmatprep.subr.mxu0 0.0
    %1984 = vmatpush1.msra.mxu0 0.0
    %1985 = vmatprep.subr.mxu0 0.0
    %1986 = vmatpush1.msra.mxu0 0.0
    %1987 = vmatprep.subr.mxu0 0.0
    %1988 = vmatpush1.msra.mxu0 0.0
    %1989 = vmatprep.subr.mxu0 0.0
    %1990 = vmatpush1.msra.mxu0 0.0
    %1991 = vmatprep.subr.mxu0 0.0
    %1992 = vmatpush1.msra.mxu0 0.0
    %1993 = vmatprep.subr.mxu0 0.0
    %1994 = vmatpush1.msra.mxu0 %v1254
    %1995 = vmatprep.subr.mxu0 0.0
    %1996 = vmatpush1.msra.mxu0 %v1253
    %1997 = vmatprep.subr.mxu0 0.0
    %1998 = vmatpush1.msra.mxu0 %v1252
    %1999 = vmatprep.subr.mxu0 0.0
    %2000 = vmatpush1.msra.mxu0 %v1251
    %2001 = vmatprep.subr.mxu0 0.0
    %2002 = vmatpush1.msra.mxu0 %v1250
    %2003 = vmatprep.subr.mxu0 0.0
    %2004 = vmatpush1.msra.mxu0 %v1249
    %2005 = vmatprep.subr.mxu0 0.0
    %2006 = vmatpush1.msra.mxu0 %v1248
    %2007 = vmatprep.subr.mxu0 0.0
    %2008 = vmatpush1.msra.mxu0 %v1247
    %2009 = vmatprep.subr.mxu0 0.0
    %2010 = vmatpush2.msra.mxu0 0.0
    %2011 = vmatprep.subr.mxu0 0.0
    %2012 = vmatpush2.msra.mxu0 0.0
    %2013 = vmatprep.subr.mxu0 0.0
    %2014 = vmatpush2.msra.mxu0 0.0
    %2015 = vmatprep.subr.mxu0 0.0
    %2016 = vmatpush2.msra.mxu0 0.0
    %2017 = vmatprep.subr.mxu0 0.0
    %2018 = vmatpush2.msra.mxu0 0.0
    %2019 = vmatprep.subr.mxu0 0.0
    %2020 = vmatpush2.msra.mxu0 0.0
    %2021 = vmatprep.subr.mxu0 0.0
    %2022 = vmatpush2.msra.mxu0 0.0
    %2023 = vmatprep.subr.mxu0 0.0
    %2024 = vmatpush2.msra.mxu0 0.0
    %2025 = vmatprep.subr.mxu0 0.0
    %2026 = vmatpush2.msra.mxu0 0.0
    %2027 = vmatprep.subr.mxu0 0.0
    %2028 = vmatpush2.msra.mxu0 0.0
    %2029 = vmatprep.subr.mxu0 0.0
    %2030 = vmatpush2.msra.mxu0 0.0
    %2031 = vmatprep.subr.mxu0 0.0
    %2032 = vmatpush2.msra.mxu0 0.0
    %2033 = vmatprep.subr.mxu0 0.0
    %2034 = vmatpush2.msra.mxu0 0.0
    %2035 = vmatprep.subr.mxu0 0.0
    %2036 = vmatpush2.msra.mxu0 0.0
    %2037 = vmatprep.subr.mxu0 0.0
    %2038 = vmatpush2.msra.mxu0 0.0
    %2039 = vmatprep.subr.mxu0 0.0
    %2040 = vmatpush2.msra.mxu0 0.0
    %2041 = vmatprep.mubr.f32.mxu0 0.0
    %2042 = vmatmul.mubr.f32.gmra.mxu0 %v1975
    %v2043 = vpop.f32.mrf.mxu0
    %v2044 = vadd.f32 %v1334, %v2043
    %v2045 = vpop.f32.mrf.mxu0
    %2046 = vdwg.mxu0
    %v2047 = vsel %vm807, %v786, 0
    %2049 = vmatprep.subr.mxu0 0.0
    %2050 = vmatpush1.msra.mxu0 0.0
    %2051 = vmatprep.subr.mxu0 0.0
    %2052 = vmatpush1.msra.mxu0 0.0
    %2053 = vmatprep.subr.mxu0 0.0
    %2054 = vmatpush1.msra.mxu0 0.0
    %2055 = vmatprep.subr.mxu0 0.0
    %2056 = vmatpush1.msra.mxu0 0.0
    %2057 = vmatprep.subr.mxu0 0.0
    %2058 = vmatpush1.msra.mxu0 0.0
    %2059 = vmatprep.subr.mxu0 0.0
    %2060 = vmatpush1.msra.mxu0 0.0
    %2061 = vmatprep.subr.mxu0 0.0
    %2062 = vmatpush1.msra.mxu0 0.0
    %2063 = vmatprep.subr.mxu0 0.0
    %2064 = vmatpush1.msra.mxu0 0.0
    %2065 = vmatprep.subr.mxu0 0.0
    %2066 = vmatpush1.msra.mxu0 %v1345
    %2067 = vmatprep.subr.mxu0 0.0
    %2068 = vmatpush1.msra.mxu0 %v1344
    %2069 = vmatprep.subr.mxu0 0.0
    %2070 = vmatpush1.msra.mxu0 %v1343
    %2071 = vmatprep.subr.mxu0 0.0
    %2072 = vmatpush1.msra.mxu0 %v1342
    %2073 = vmatprep.subr.mxu0 0.0
    %2074 = vmatpush1.msra.mxu0 %v1341
    %2075 = vmatprep.subr.mxu0 0.0
    %2076 = vmatpush1.msra.mxu0 %v1340
    %2077 = vmatprep.subr.mxu0 0.0
    %2078 = vmatpush1.msra.mxu0 %v1339
    %2079 = vmatprep.subr.mxu0 0.0
    %2080 = vmatpush1.msra.mxu0 %v1338
    %2081 = vmatprep.subr.mxu0 0.0
    %2082 = vmatpush2.msra.mxu0 0.0
    %2083 = vmatprep.subr.mxu0 0.0
    %2084 = vmatpush2.msra.mxu0 0.0
    %2085 = vmatprep.subr.mxu0 0.0
    %2086 = vmatpush2.msra.mxu0 0.0
    %2087 = vmatprep.subr.mxu0 0.0
    %2088 = vmatpush2.msra.mxu0 0.0
    %2089 = vmatprep.subr.mxu0 0.0
    %2090 = vmatpush2.msra.mxu0 0.0
    %2091 = vmatprep.subr.mxu0 0.0
    %2092 = vmatpush2.msra.mxu0 0.0
    %2093 = vmatprep.subr.mxu0 0.0
    %2094 = vmatpush2.msra.mxu0 0.0
    %2095 = vmatprep.subr.mxu0 0.0
    %2096 = vmatpush2.msra.mxu0 0.0
    %2097 = vmatprep.subr.mxu0 0.0
    %2098 = vmatpush2.msra.mxu0 0.0
    %2099 = vmatprep.subr.mxu0 0.0
    %2100 = vmatpush2.msra.mxu0 0.0
    %2101 = vmatprep.subr.mxu0 0.0
    %2102 = vmatpush2.msra.mxu0 0.0
    %2103 = vmatprep.subr.mxu0 0.0
    %2104 = vmatpush2.msra.mxu0 0.0
    %2105 = vmatprep.subr.mxu0 0.0
    %2106 = vmatpush2.msra.mxu0 0.0
    %2107 = vmatprep.subr.mxu0 0.0
    %2108 = vmatpush2.msra.mxu0 0.0
    %2109 = vmatprep.subr.mxu0 0.0
    %2110 = vmatpush2.msra.mxu0 0.0
    %2111 = vmatprep.subr.mxu0 0.0
    %2112 = vmatpush2.msra.mxu0 0.0
    %2113 = vmatprep.mubr.f32.mxu0 0.0
    %2114 = vmatmul.mubr.f32.gmra.mxu0 %v2047
    %v2115 = vpop.f32.mrf.mxu0
    %v2116 = vadd.f32 %v1426, %v2115
    %v2117 = vpop.f32.mrf.mxu0
    %2118 = vdwg.mxu0
    %v2119 = vrot.slane %v786, 4
    %v2120 = vsel %vm807, %v2119, 0
    %2122 = vmatprep.subr.mxu0 0.0
    %2123 = vmatpush1.msra.mxu0 0.0
    %2124 = vmatprep.subr.mxu0 0.0
    %2125 = vmatpush1.msra.mxu0 0.0
    %2126 = vmatprep.subr.mxu0 0.0
    %2127 = vmatpush1.msra.mxu0 0.0
    %2128 = vmatprep.subr.mxu0 0.0
    %2129 = vmatpush1.msra.mxu0 0.0
    %2130 = vmatprep.subr.mxu0 0.0
    %2131 = vmatpush1.msra.mxu0 0.0
    %2132 = vmatprep.subr.mxu0 0.0
    %2133 = vmatpush1.msra.mxu0 0.0
    %2134 = vmatprep.subr.mxu0 0.0
    %2135 = vmatpush1.msra.mxu0 0.0
    %2136 = vmatprep.subr.mxu0 0.0
    %2137 = vmatpush1.msra.mxu0 0.0
    %2138 = vmatprep.subr.mxu0 0.0
    %2139 = vmatpush1.msra.mxu0 %v1437
    %2140 = vmatprep.subr.mxu0 0.0
    %2141 = vmatpush1.msra.mxu0 %v1436
    %2142 = vmatprep.subr.mxu0 0.0
    %2143 = vmatpush1.msra.mxu0 %v1435
    %2144 = vmatprep.subr.mxu0 0.0
    %2145 = vmatpush1.msra.mxu0 %v1434
    %2146 = vmatprep.subr.mxu0 0.0
    %2147 = vmatpush1.msra.mxu0 %v1433
    %2148 = vmatprep.subr.mxu0 0.0
    %2149 = vmatpush1.msra.mxu0 %v1432
    %2150 = vmatprep.subr.mxu0 0.0
    %2151 = vmatpush1.msra.mxu0 %v1431
    %2152 = vmatprep.subr.mxu0 0.0
    %2153 = vmatpush1.msra.mxu0 %v1430
    %2154 = vmatprep.subr.mxu0 0.0
    %2155 = vmatpush2.msra.mxu0 0.0
    %2156 = vmatprep.subr.mxu0 0.0
    %2157 = vmatpush2.msra.mxu0 0.0
    %2158 = vmatprep.subr.mxu0 0.0
    %2159 = vmatpush2.msra.mxu0 0.0
    %2160 = vmatprep.subr.mxu0 0.0
    %2161 = vmatpush2.msra.mxu0 0.0
    %2162 = vmatprep.subr.mxu0 0.0
    %2163 = vmatpush2.msra.mxu0 0.0
    %2164 = vmatprep.subr.mxu0 0.0
    %2165 = vmatpush2.msra.mxu0 0.0
    %2166 = vmatprep.subr.mxu0 0.0
    %2167 = vmatpush2.msra.mxu0 0.0
    %2168 = vmatprep.subr.mxu0 0.0
    %2169 = vmatpush2.msra.mxu0 0.0
    %2170 = vmatprep.subr.mxu0 0.0
    %2171 = vmatpush2.msra.mxu0 0.0
    %2172 = vmatprep.subr.mxu0 0.0
    %2173 = vmatpush2.msra.mxu0 0.0
    %2174 = vmatprep.subr.mxu0 0.0
    %2175 = vmatpush2.msra.mxu0 0.0
    %2176 = vmatprep.subr.mxu0 0.0
    %2177 = vmatpush2.msra.mxu0 0.0
    %2178 = vmatprep.subr.mxu0 0.0
    %2179 = vmatpush2.msra.mxu0 0.0
    %2180 = vmatprep.subr.mxu0 0.0
    %2181 = vmatpush2.msra.mxu0 0.0
    %2182 = vmatprep.subr.mxu0 0.0
    %2183 = vmatpush2.msra.mxu0 0.0
    %2184 = vmatprep.subr.mxu0 0.0
    %2185 = vmatpush2.msra.mxu0 0.0
    %2186 = vmatprep.mubr.f32.mxu0 0.0
    %2187 = vmatmul.mubr.f32.gmra.mxu0 %v2120
    %v2188 = vpop.f32.mrf.mxu0
    %v2189 = vadd.f32 %v1517, %v2188
    %v2190 = vpop.f32.mrf.mxu0
    %2191 = vdwg.mxu0
    %v2192 = vsel %vm807, %v787, 0
    %2194 = vmatprep.subr.mxu0 0.0
    %2195 = vmatpush1.msra.mxu0 0.0
    %2196 = vmatprep.subr.mxu0 0.0
    %2197 = vmatpush1.msra.mxu0 0.0
    %2198 = vmatprep.subr.mxu0 0.0
    %2199 = vmatpush1.msra.mxu0 0.0
    %2200 = vmatprep.subr.mxu0 0.0
    %2201 = vmatpush1.msra.mxu0 0.0
    %2202 = vmatprep.subr.mxu0 0.0
    %2203 = vmatpush1.msra.mxu0 0.0
    %2204 = vmatprep.subr.mxu0 0.0
    %2205 = vmatpush1.msra.mxu0 0.0
    %2206 = vmatprep.subr.mxu0 0.0
    %2207 = vmatpush1.msra.mxu0 0.0
    %2208 = vmatprep.subr.mxu0 0.0
    %2209 = vmatpush1.msra.mxu0 0.0
    %2210 = vmatprep.subr.mxu0 0.0
    %2211 = vmatpush1.msra.mxu0 %v1528
    %2212 = vmatprep.subr.mxu0 0.0
    %2213 = vmatpush1.msra.mxu0 %v1527
    %2214 = vmatprep.subr.mxu0 0.0
    %2215 = vmatpush1.msra.mxu0 %v1526
    %2216 = vmatprep.subr.mxu0 0.0
    %2217 = vmatpush1.msra.mxu0 %v1525
    %2218 = vmatprep.subr.mxu0 0.0
    %2219 = vmatpush1.msra.mxu0 %v1524
    %2220 = vmatprep.subr.mxu0 0.0
    %2221 = vmatpush1.msra.mxu0 %v1523
    %2222 = vmatprep.subr.mxu0 0.0
    %2223 = vmatpush1.msra.mxu0 %v1522
    %2224 = vmatprep.subr.mxu0 0.0
    %2225 = vmatpush1.msra.mxu0 %v1521
    %2226 = vmatprep.subr.mxu0 0.0
    %2227 = vmatpush2.msra.mxu0 0.0
    %2228 = vmatprep.subr.mxu0 0.0
    %2229 = vmatpush2.msra.mxu0 0.0
    %2230 = vmatprep.subr.mxu0 0.0
    %2231 = vmatpush2.msra.mxu0 0.0
    %2232 = vmatprep.subr.mxu0 0.0
    %2233 = vmatpush2.msra.mxu0 0.0
    %2234 = vmatprep.subr.mxu0 0.0
    %2235 = vmatpush2.msra.mxu0 0.0
    %2236 = vmatprep.subr.mxu0 0.0
    %2237 = vmatpush2.msra.mxu0 0.0
    %2238 = vmatprep.subr.mxu0 0.0
    %2239 = vmatpush2.msra.mxu0 0.0
    %2240 = vmatprep.subr.mxu0 0.0
    %2241 = vmatpush2.msra.mxu0 0.0
    %2242 = vmatprep.subr.mxu0 0.0
    %2243 = vmatpush2.msra.mxu0 0.0
    %2244 = vmatprep.subr.mxu0 0.0
    %2245 = vmatpush2.msra.mxu0 0.0
    %2246 = vmatprep.subr.mxu0 0.0
    %2247 = vmatpush2.msra.mxu0 0.0
    %2248 = vmatprep.subr.mxu0 0.0
    %2249 = vmatpush2.msra.mxu0 0.0
    %2250 = vmatprep.subr.mxu0 0.0
    %2251 = vmatpush2.msra.mxu0 0.0
    %2252 = vmatprep.subr.mxu0 0.0
    %2253 = vmatpush2.msra.mxu0 0.0
    %2254 = vmatprep.subr.mxu0 0.0
    %2255 = vmatpush2.msra.mxu0 0.0
    %2256 = vmatprep.subr.mxu0 0.0
    %2257 = vmatpush2.msra.mxu0 0.0
    %2258 = vmatprep.mubr.f32.mxu0 0.0
    %2259 = vmatmul.mubr.f32.gmra.mxu0 %v2192
    %v2260 = vpop.f32.mrf.mxu0
    %v2261 = vadd.f32 %v1609, %v2260
    %v2262 = vpop.f32.mrf.mxu0
    %2263 = vdwg.mxu0
    %v2264 = vadd.f32 %v1681, %v1754
    %v2265 = vadd.f32 %v1826, %v1899
    %v2266 = vadd.f32 %v1971, %v2044
    %v2267 = vadd.f32 %v2116, %v2189
    %v2268 = vadd.f32 %v2264, %v2265
    %v2269 = vadd.f32 %v2266, %v2267
    %v2270 = vadd.f32 %v2268, %v2269
    %v2271 = vadd.f32 %v2270, %v2261
    %v2272 = vld [vmem:[%s6] sm:$0x1]
    %v2274 = vlaneseq
    %v2275 = vshrl.u32 %v2274, 7
    %v2276 = vsub.s32 0, %v2275
    %v2277 = vrot.slane %v2272, %v2276
    %v2279 = vadd.f32 %v2271, %v2277
    %v2280 = vmax.f32 %v2279, 0.0
    %v2281 = vld [vmem:[%s7] sm:$0xff]
    %v2282 = vld [vmem:[%s7 + $0x8] sm:$0xff]
    %v2283 = vld [vmem:[%s7 + $0x10] sm:$0xff]
    %v2284 = vld [vmem:[%s7 + $0x18] sm:$0xff]
    %v2285 = vld [vmem:[%s8] sm:$0x1]
    %v2287 = vlaneseq
    %v2288 = vshrl.u32 %v2287, 7
    %v2289 = vsub.s32 0, %v2288
    %v2290 = vrot.slane %v2285, %v2289
    %v2293 = vsel %vm451, %v2280, 0
    %2295 = vmatprep.subr.mxu0 0.0
    %2296 = vmatpush1.msra.mxu0 0.0
    %2297 = vmatprep.subr.mxu0 0.0
    %2298 = vmatpush1.msra.mxu0 0.0
    %2299 = vmatprep.subr.mxu0 0.0
    %2300 = vmatpush1.msra.mxu0 0.0
    %2301 = vmatprep.subr.mxu0 0.0
    %2302 = vmatpush1.msra.mxu0 0.0
    %2303 = vmatprep.subr.mxu0 0.0
    %2304 = vmatpush1.msra.mxu0 0.0
    %2305 = vmatprep.subr.mxu0 0.0
    %2306 = vmatpush1.msra.mxu0 0.0
    %2307 = vmatprep.subr.mxu0 0.0
    %2308 = vmatpush1.msra.mxu0 0.0
    %2309 = vmatprep.subr.mxu0 0.0
    %2310 = vmatpush1.msra.mxu0 0.0
    %2311 = vmatprep.subr.mxu0 0.0
    %2312 = vmatpush1.msra.mxu0 0.0
    %2313 = vmatprep.subr.mxu0 0.0
    %2314 = vmatpush1.msra.mxu0 0.0
    %2315 = vmatprep.subr.mxu0 0.0
    %2316 = vmatpush1.msra.mxu0 0.0
    %2317 = vmatprep.subr.mxu0 0.0
    %2318 = vmatpush1.msra.mxu0 0.0
    %2319 = vmatprep.subr.mxu0 0.0
    %2320 = vmatpush1.msra.mxu0 %v2284
    %2321 = vmatprep.subr.mxu0 0.0
    %2322 = vmatpush1.msra.mxu0 %v2283
    %2323 = vmatprep.subr.mxu0 0.0
    %2324 = vmatpush1.msra.mxu0 %v2282
    %2325 = vmatprep.subr.mxu0 0.0
    %2326 = vmatpush1.msra.mxu0 %v2281
    %2327 = vmatprep.subr.mxu0 0.0
    %2328 = vmatpush2.msra.mxu0 0.0
    %2329 = vmatprep.subr.mxu0 0.0
    %2330 = vmatpush2.msra.mxu0 0.0
    %2331 = vmatprep.subr.mxu0 0.0
    %2332 = vmatpush2.msra.mxu0 0.0
    %2333 = vmatprep.subr.mxu0 0.0
    %2334 = vmatpush2.msra.mxu0 0.0
    %2335 = vmatprep.subr.mxu0 0.0
    %2336 = vmatpush2.msra.mxu0 0.0
    %2337 = vmatprep.subr.mxu0 0.0
    %2338 = vmatpush2.msra.mxu0 0.0
    %2339 = vmatprep.subr.mxu0 0.0
    %2340 = vmatpush2.msra.mxu0 0.0
    %2341 = vmatprep.subr.mxu0 0.0
    %2342 = vmatpush2.msra.mxu0 0.0
    %2343 = vmatprep.subr.mxu0 0.0
    %2344 = vmatpush2.msra.mxu0 0.0
    %2345 = vmatprep.subr.mxu0 0.0
    %2346 = vmatpush2.msra.mxu0 0.0
    %2347 = vmatprep.subr.mxu0 0.0
    %2348 = vmatpush2.msra.mxu0 0.0
    %2349 = vmatprep.subr.mxu0 0.0
    %2350 = vmatpush2.msra.mxu0 0.0
    %2351 = vmatprep.subr.mxu0 0.0
    %2352 = vmatpush2.msra.mxu0 0.0
    %2353 = vmatprep.subr.mxu0 0.0
    %2354 = vmatpush2.msra.mxu0 0.0
    %2355 = vmatprep.subr.mxu0 0.0
    %2356 = vmatpush2.msra.mxu0 0.0
    %2357 = vmatprep.subr.mxu0 0.0
    %2358 = vmatpush2.msra.mxu0 0.0
    %2359 = vmatprep.mubr.f32.mxu0 0.0
    %2360 = vmatmul.mubr.f32.gmra.mxu0 %v2293
    %v2361 = vpop.f32.mrf.mxu0
    %v2362 = vadd.f32 %v2290, %v2361
    %v2363 = vpop.f32.mrf.mxu0
    %2364 = vdwg.mxu0
    %v2365 = vxor.u32 %v2362, 2147483648
    %v2366 = vmul.f32 %v2365, 1.442695
    %v2367 = vpow.pop %v2366
    %v2368 = vadd.f32 %v2367, 1.0
    %v2369 = vrcp.pop %v2368
    %v2370 = vmul.f32 1.0, %v2369
    %v2371 = vtanh.pop %v2362
    %2373 = vrot.lane.b32.xlu0 %v2371, 96
    %v2374 = vpop.permute.xlu0 %2373
    %v2376 = vmul.f32 %v2370, %v2374
    %v2377 = vtanh.pop %v2376
    %2379 = vrot.lane.b32.xlu0 %v2377, 64
    %v2380 = vpop.permute.xlu0 %2379
    %v2382 = vmul.f32 %v2370, %v2380
    %v2383 = vld [vmem:[%s9] sm:$0xff]
    %v2384 = vld [vmem:[%s9 + $0x8] sm:$0xff]
    %v2385 = vld [vmem:[%s9 + $0x10] sm:$0xff]
    %v2386 = vld [vmem:[%s9 + $0x18] sm:$0xff]
    %v2387 = vld [vmem:[%s10] sm:$0x1]
    %v2389 = vlaneseq
    %v2390 = vshrl.u32 %v2389, 7
    %v2391 = vsub.s32 0, %v2390
    %v2392 = vrot.slane %v2387, %v2391
    %2395 = vrot.lane.b32.xlu0 %v2382, 64
    %v2396 = vpop.permute.xlu0 %2395
    %v2397 = vsel %vm451, %v2396, 0
    %2399 = vmatprep.subr.mxu0 0.0
    %2400 = vmatpush1.msra.mxu0 0.0
    %2401 = vmatprep.subr.mxu0 0.0
    %2402 = vmatpush1.msra.mxu0 0.0
    %2403 = vmatprep.subr.mxu0 0.0
    %2404 = vmatpush1.msra.mxu0 0.0
    %2405 = vmatprep.subr.mxu0 0.0
    %2406 = vmatpush1.msra.mxu0 0.0
    %2407 = vmatprep.subr.mxu0 0.0
    %2408 = vmatpush1.msra.mxu0 0.0
    %2409 = vmatprep.subr.mxu0 0.0
    %2410 = vmatpush1.msra.mxu0 0.0
    %2411 = vmatprep.subr.mxu0 0.0
    %2412 = vmatpush1.msra.mxu0 0.0
    %2413 = vmatprep.subr.mxu0 0.0
    %2414 = vmatpush1.msra.mxu0 0.0
    %2415 = vmatprep.subr.mxu0 0.0
    %2416 = vmatpush1.msra.mxu0 0.0
    %2417 = vmatprep.subr.mxu0 0.0
    %2418 = vmatpush1.msra.mxu0 0.0
    %2419 = vmatprep.subr.mxu0 0.0
    %2420 = vmatpush1.msra.mxu0 0.0
    %2421 = vmatprep.subr.mxu0 0.0
    %2422 = vmatpush1.msra.mxu0 0.0
    %2423 = vmatprep.subr.mxu0 0.0
    %2424 = vmatpush1.msra.mxu0 %v2386
    %2425 = vmatprep.subr.mxu0 0.0
    %2426 = vmatpush1.msra.mxu0 %v2385
    %2427 = vmatprep.subr.mxu0 0.0
    %2428 = vmatpush1.msra.mxu0 %v2384
    %2429 = vmatprep.subr.mxu0 0.0
    %2430 = vmatpush1.msra.mxu0 %v2383
    %2431 = vmatprep.subr.mxu0 0.0
    %2432 = vmatpush2.msra.mxu0 0.0
    %2433 = vmatprep.subr.mxu0 0.0
    %2434 = vmatpush2.msra.mxu0 0.0
    %2435 = vmatprep.subr.mxu0 0.0
    %2436 = vmatpush2.msra.mxu0 0.0
    %2437 = vmatprep.subr.mxu0 0.0
    %2438 = vmatpush2.msra.mxu0 0.0
    %2439 = vmatprep.subr.mxu0 0.0
    %2440 = vmatpush2.msra.mxu0 0.0
    %2441 = vmatprep.subr.mxu0 0.0
    %2442 = vmatpush2.msra.mxu0 0.0
    %2443 = vmatprep.subr.mxu0 0.0
    %2444 = vmatpush2.msra.mxu0 0.0
    %2445 = vmatprep.subr.mxu0 0.0
    %2446 = vmatpush2.msra.mxu0 0.0
    %2447 = vmatprep.subr.mxu0 0.0
    %2448 = vmatpush2.msra.mxu0 0.0
    %2449 = vmatprep.subr.mxu0 0.0
    %2450 = vmatpush2.msra.mxu0 0.0
    %2451 = vmatprep.subr.mxu0 0.0
    %2452 = vmatpush2.msra.mxu0 0.0
    %2453 = vmatprep.subr.mxu0 0.0
    %2454 = vmatpush2.msra.mxu0 0.0
    %2455 = vmatprep.subr.mxu0 0.0
    %2456 = vmatpush2.msra.mxu0 0.0
    %2457 = vmatprep.subr.mxu0 0.0
    %2458 = vmatpush2.msra.mxu0 0.0
    %2459 = vmatprep.subr.mxu0 0.0
    %2460 = vmatpush2.msra.mxu0 0.0
    %2461 = vmatprep.subr.mxu0 0.0
    %2462 = vmatpush2.msra.mxu0 0.0
    %2463 = vmatprep.mubr.f32.mxu0 0.0
    %2464 = vmatmul.mubr.f32.gmra.mxu0 %v2397
    %v2465 = vpop.f32.mrf.mxu0
    %v2466 = vadd.f32 %v2392, %v2465
    %v2467 = vpop.f32.mrf.mxu0
    %2468 = vdwg.mxu0
    %v2469 = vxor.u32 %v2466, 2147483648
    %v2470 = vmul.f32 %v2469, 1.442695
    %v2471 = vpow.pop %v2470
    %v2472 = vadd.f32 %v2471, 1.0
    %v2473 = vrcp.pop %v2472
    %v2474 = vmul.f32 1.0, %v2473
    %v2475 = vtanh.pop %v2466
    %2477 = vrot.lane.b32.xlu0 %v2475, 96
    %v2478 = vpop.permute.xlu0 %2477
    %v2480 = vmul.f32 %v2474, %v2478
    %v2481 = vtanh.pop %v2480
    %2483 = vrot.lane.b32.xlu0 %v2481, 64
    %v2484 = vpop.permute.xlu0 %2483
    %v2486 = vmul.f32 %v2474, %v2484
    %v2487 = vld [vmem:[%s11] sm:$0xff]
    %v2488 = vld [vmem:[%s11 + $0x8] sm:$0xff]
    %v2489 = vld [vmem:[%s11 + $0x10] sm:$0xff]
    %v2490 = vld [vmem:[%s11 + $0x18] sm:$0xff]
    %v2491 = vld [vmem:[%s11 + $0x20] sm:$0xff]
    %v2492 = vld [vmem:[%s11 + $0x28] sm:$0xff]
    %v2493 = vld [vmem:[%s11 + $0x30] sm:$0xff]
    %v2494 = vld [vmem:[%s11 + $0x38] sm:$0xff]
    %2496 = vrot.lane.b32.xlu0 %v2486, 64
    %v2497 = vpop.permute.xlu0 %2496
    %v2498 = vsel %vm451, %v2497, 0
    %2500 = vmatprep.subr.mxu0 0.0
    %2501 = vmatpush1.msra.mxu0 0.0
    %2502 = vmatprep.subr.mxu0 0.0
    %2503 = vmatpush1.msra.mxu0 0.0
    %2504 = vmatprep.subr.mxu0 0.0
    %2505 = vmatpush1.msra.mxu0 0.0
    %2506 = vmatprep.subr.mxu0 0.0
    %2507 = vmatpush1.msra.mxu0 0.0
    %2508 = vmatprep.subr.mxu0 0.0
    %2509 = vmatpush1.msra.mxu0 0.0
    %2510 = vmatprep.subr.mxu0 0.0
    %2511 = vmatpush1.msra.mxu0 0.0
    %2512 = vmatprep.subr.mxu0 0.0
    %2513 = vmatpush1.msra.mxu0 0.0
    %2514 = vmatprep.subr.mxu0 0.0
    %2515 = vmatpush1.msra.mxu0 0.0
    %2516 = vmatprep.subr.mxu0 0.0
    %2517 = vmatpush1.msra.mxu0 0.0
    %2518 = vmatprep.subr.mxu0 0.0
    %2519 = vmatpush1.msra.mxu0 0.0
    %2520 = vmatprep.subr.mxu0 0.0
    %2521 = vmatpush1.msra.mxu0 0.0
    %2522 = vmatprep.subr.mxu0 0.0
    %2523 = vmatpush1.msra.mxu0 0.0
    %2524 = vmatprep.subr.mxu0 0.0
    %2525 = vmatpush1.msra.mxu0 %v2494
    %2526 = vmatprep.subr.mxu0 0.0
    %2527 = vmatpush1.msra.mxu0 %v2493
    %2528 = vmatprep.subr.mxu0 0.0
    %2529 = vmatpush1.msra.mxu0 %v2492
    %2530 = vmatprep.subr.mxu0 0.0
    %2531 = vmatpush1.msra.mxu0 %v2491
    %2532 = vmatprep.subr.mxu0 0.0
    %2533 = vmatpush2.msra.mxu0 0.0
    %2534 = vmatprep.subr.mxu0 0.0
    %2535 = vmatpush2.msra.mxu0 0.0
    %2536 = vmatprep.subr.mxu0 0.0
    %2537 = vmatpush2.msra.mxu0 0.0
    %2538 = vmatprep.subr.mxu0 0.0
    %2539 = vmatpush2.msra.mxu0 0.0
    %2540 = vmatprep.subr.mxu0 0.0
    %2541 = vmatpush2.msra.mxu0 0.0
    %2542 = vmatprep.subr.mxu0 0.0
    %2543 = vmatpush2.msra.mxu0 0.0
    %2544 = vmatprep.subr.mxu0 0.0
    %2545 = vmatpush2.msra.mxu0 0.0
    %2546 = vmatprep.subr.mxu0 0.0
    %2547 = vmatpush2.msra.mxu0 0.0
    %2548 = vmatprep.subr.mxu0 0.0
    %2549 = vmatpush2.msra.mxu0 0.0
    %2550 = vmatprep.subr.mxu0 0.0
    %2551 = vmatpush2.msra.mxu0 0.0
    %2552 = vmatprep.subr.mxu0 0.0
    %2553 = vmatpush2.msra.mxu0 0.0
    %2554 = vmatprep.subr.mxu0 0.0
    %2555 = vmatpush2.msra.mxu0 0.0
    %2556 = vmatprep.subr.mxu0 0.0
    %2557 = vmatpush2.msra.mxu0 0.0
    %2558 = vmatprep.subr.mxu0 0.0
    %2559 = vmatpush2.msra.mxu0 0.0
    %2560 = vmatprep.subr.mxu0 0.0
    %2561 = vmatpush2.msra.mxu0 0.0
    %2562 = vmatprep.subr.mxu0 0.0
    %2563 = vmatpush2.msra.mxu0 0.0
    %2564 = vmatprep.mubr.f32.mxu0 0.0
    %2565 = vmatmul.mubr.f32.gmra.mxu0 %v2498
    %v2566 = vpop.f32.mrf.mxu0
    %v2567 = vadd.f32 0.0, %v2566
    %v2568 = vpop.f32.mrf.mxu0
    %2569 = vdwg.mxu0
    %2570 = vmatprep.subr.mxu0 0.0
    %2571 = vmatpush1.msra.mxu0 0.0
    %2572 = vmatprep.subr.mxu0 0.0
    %2573 = vmatpush1.msra.mxu0 0.0
    %2574 = vmatprep.subr.mxu0 0.0
    %2575 = vmatpush1.msra.mxu0 0.0
    %2576 = vmatprep.subr.mxu0 0.0
    %2577 = vmatpush1.msra.mxu0 0.0
    %2578 = vmatprep.subr.mxu0 0.0
    %2579 = vmatpush1.msra.mxu0 0.0
    %2580 = vmatprep.subr.mxu0 0.0
    %2581 = vmatpush1.msra.mxu0 0.0
    %2582 = vmatprep.subr.mxu0 0.0
    %2583 = vmatpush1.msra.mxu0 0.0
    %2584 = vmatprep.subr.mxu0 0.0
    %2585 = vmatpush1.msra.mxu0 0.0
    %2586 = vmatprep.subr.mxu0 0.0
    %2587 = vmatpush1.msra.mxu0 0.0
    %2588 = vmatprep.subr.mxu0 0.0
    %2589 = vmatpush1.msra.mxu0 0.0
    %2590 = vmatprep.subr.mxu0 0.0
    %2591 = vmatpush1.msra.mxu0 0.0
    %2592 = vmatprep.subr.mxu0 0.0
    %2593 = vmatpush1.msra.mxu0 0.0
    %2594 = vmatprep.subr.mxu0 0.0
    %2595 = vmatpush1.msra.mxu0 %v2490
    %2596 = vmatprep.subr.mxu0 0.0
    %2597 = vmatpush1.msra.mxu0 %v2489
    %2598 = vmatprep.subr.mxu0 0.0
    %2599 = vmatpush1.msra.mxu0 %v2488
    %2600 = vmatprep.subr.mxu0 0.0
    %2601 = vmatpush1.msra.mxu0 %v2487
    %2602 = vmatprep.subr.mxu0 0.0
    %2603 = vmatpush2.msra.mxu0 0.0
    %2604 = vmatprep.subr.mxu0 0.0
    %2605 = vmatpush2.msra.mxu0 0.0
    %2606 = vmatprep.subr.mxu0 0.0
    %2607 = vmatpush2.msra.mxu0 0.0
    %2608 = vmatprep.subr.mxu0 0.0
    %2609 = vmatpush2.msra.mxu0 0.0
    %2610 = vmatprep.subr.mxu0 0.0
    %2611 = vmatpush2.msra.mxu0 0.0
    %2612 = vmatprep.subr.mxu0 0.0
    %2613 = vmatpush2.msra.mxu0 0.0
    %2614 = vmatprep.subr.mxu0 0.0
    %2615 = vmatpush2.msra.mxu0 0.0
    %2616 = vmatprep.subr.mxu0 0.0
    %2617 = vmatpush2.msra.mxu0 0.0
    %2618 = vmatprep.subr.mxu0 0.0
    %2619 = vmatpush2.msra.mxu0 0.0
    %2620 = vmatprep.subr.mxu0 0.0
    %2621 = vmatpush2.msra.mxu0 0.0
    %2622 = vmatprep.subr.mxu0 0.0
    %2623 = vmatpush2.msra.mxu0 0.0
    %2624 = vmatprep.subr.mxu0 0.0
    %2625 = vmatpush2.msra.mxu0 0.0
    %2626 = vmatprep.subr.mxu0 0.0
    %2627 = vmatpush2.msra.mxu0 0.0
    %2628 = vmatprep.subr.mxu0 0.0
    %2629 = vmatpush2.msra.mxu0 0.0
    %2630 = vmatprep.subr.mxu0 0.0
    %2631 = vmatpush2.msra.mxu0 0.0
    %2632 = vmatprep.subr.mxu0 0.0
    %2633 = vmatpush2.msra.mxu0 0.0
    %2634 = vmatprep.mubr.f32.mxu0 0.0
    %2635 = vmatmul.mubr.f32.gmra.mxu0 %v2397
    %v2636 = vpop.f32.mrf.mxu0
    %v2637 = vadd.f32 %v2567, %v2636
    %v2638 = vpop.f32.mrf.mxu0
    %2639 = vdwg.mxu0
    %v2640 = vld [vmem:[%s12] sm:$0x1]
    %v2642 = vlaneseq
    %v2643 = vshrl.u32 %v2642, 7
    %v2644 = vsub.s32 0, %v2643
    %v2645 = vrot.slane %v2640, %v2644
    %v2647 = vadd.f32 %v2637, %v2645
    %vm2648 = vcmask 25600
    %2649 = vst.msk [vmem:[#allocation2] sm:$0x3] %vm2648, %v2647
    // Predicated region
    $region54: #{dnn_net_forward.1} parent=1 // pred_check
      _
    $region55: #{dnn_net_forward.1} parent=1 // pred_check_branch
      %2651 = sbr.rel (0) target = $region57
    $region56: #{dnn_net_forward.1} parent=1 // pred_region
      %s2653 = ssub.s32 32, 32
      %2654 = vsyncadd [#allocation3], %s2653
      %s2656 = sshll.u32 [#allocation2], 4
      %s2657 = int_to_ptr.vmem [resolvable:$true] %s2656
      %2659 = dma.vmem_to_hbm [thread:$0]  %s2657, 32, %s13, [#allocation3]
    $region57: #{dnn_net_forward.1} parent=1 // pred_fallthru
      _
    // Predicated region
    $region58: #{dnn_net_forward.1} parent=1 // pred_check
      _
    $region59: #{dnn_net_forward.1} parent=1 // pred_check_branch
      %2661 = sbr.rel (0) target = $region61
    $region60: #{dnn_net_forward.1} parent=1 // pred_region
      %2662 = dma.done [#allocation3], 32
    $region61: #{dnn_net_forward.1} parent=1 // pred_fallthru
      _
    %2663 = vsyncpa [#allocation3], 1

</llo_original>
